<compile_context>
chip_gen: v5e
topology: v5e:2x2
jax: 0.10.0
libtpu: 0.0.40
codegen_flags: <defaults>
</compile_context>

<pallas_src>
import functools

import jax
import jax.numpy as jnp
import numpy as np
from jax.experimental import pallas as pl
from jax.experimental.pallas import tpu as pltpu

LANE = 128  # gate blocks are 128-lane aligned


def _lstm_kernel(x2_ref, h0_ref, c0_ref, wih_ref, whh_ref, bias_ref,
                 rout_ref, hn_ref, cn_ref, xproj_ref, *, T, B, H):
    """Single-invocation LSTM: fused input projection + full recurrence.

    x2_ref:   (T*B, D)        f32   flattened input sequence
    h0_ref:   (B, H)          f32   initial hidden state
    c0_ref:   (B, H)          f32   initial cell state
    wih_ref:  (D, 4*128)      f32   W_ih^T, gate g in lanes [128g, 128g+H)
    whh_ref:  (H, 4*128)      f32   W_hh^T, same lane-aligned gate layout
    bias_ref: (1, 4*128)      f32   b_ih + b_hh, same layout (zeros elsewhere)
    rout_ref: (T, B, H)             per-step hidden states
    hn_ref:   (1, B, H)             final hidden state
    cn_ref:   (1, B, H)             final cell state
    xproj_ref:(T*B, 4*128)    f32   VMEM scratch for the input projection
    """
    # ---- Prologue: fused input projection (one big MXU matmul) ------------
    # Bias folded in; result parked in VMEM scratch, never touches HBM.
    xproj_ref[...] = (
        jnp.dot(x2_ref[...], wih_ref[...], preferred_element_type=jnp.float32)
        + bias_ref[...]
    )

    # Recurrent weights are loop-invariant (~12 vregs) -> hoist the load.
    whh = whh_ref[...]                           # (H, 4*128)
    h = h0_ref[...].astype(jnp.float32)          # (B, H)
    c = c0_ref[...].astype(jnp.float32)          # (B, H)

    # ---- Recurrence: fully unrolled, static slices everywhere -------------
    for t in range(T):
        xt = xproj_ref[t * B:(t + 1) * B, :]     # (B, 4*128) static row slice
        # One fused-gate MXU dot per step: (B, H) x (H, 4*128) -> (B, 4*128).
        gates = xt + jnp.dot(h, whh, preferred_element_type=jnp.float32)
        # 128-lane-aligned gate blocks: whole-vreg select + prefix narrow,
        # zero lane movement on the serial critical path.
        i_g = jax.nn.sigmoid(gates[:, 0 * LANE:0 * LANE + H])
        f_g = jax.nn.sigmoid(gates[:, 1 * LANE:1 * LANE + H])
        g_g = jnp.tanh(gates[:, 2 * LANE:2 * LANE + H])
        o_g = jax.nn.sigmoid(gates[:, 3 * LANE:3 * LANE + H])
        c = f_g * c + i_g * g_g
        h = o_g * jnp.tanh(c)
        # VMEM-resident output block; HBM writeback happens once at the end.
        rout_ref[t] = h.astype(rout_ref.dtype)

    hn_ref[0] = h.astype(hn_ref.dtype)
    cn_ref[0] = c.astype(cn_ref.dtype)


def make_lstm(w_ih, w_hh, b_ih, b_hh, *, seq_len, batch):
    """Pre-transforms PyTorch-layout LSTM weights once (transpose + 128-lane
    gate padding + bias fold) and returns a jitted (x, h0, c0) callable whose
    traced body is just one bitcast reshape and one pallas_call."""
    w_ih = np.asarray(w_ih, np.float32)          # (4H, D), gates [i, f, g, o]
    w_hh = np.asarray(w_hh, np.float32)          # (4H, H)
    bias = np.asarray(b_ih, np.float32) + np.asarray(b_hh, np.float32)  # (4H,)

    G4, D = w_ih.shape
    H = G4 // 4
    T, B = seq_len, batch
    GP = 4 * LANE                                 # padded gate axis

    # Lane-aligned gate layout: gate g lives in lanes [128*g, 128*g + H).
    wih_pad = np.zeros((D, GP), np.float32)
    whh_pad = np.zeros((H, GP), np.float32)
    bias_pad = np.zeros((1, GP), np.float32)
    for g in range(4):
        wih_pad[:, g * LANE:g * LANE + H] = w_ih[g * H:(g + 1) * H, :].T
        whh_pad[:, g * LANE:g * LANE + H] = w_hh[g * H:(g + 1) * H, :].T
        bias_pad[0, g * LANE:g * LANE + H] = bias[g * H:(g + 1) * H]

    wih_pad = jnp.asarray(wih_pad)
    whh_pad = jnp.asarray(whh_pad)
    bias_pad = jnp.asarray(bias_pad)

    kernel = functools.partial(_lstm_kernel, T=T, B=B, H=H)
    vmem = pltpu.MemorySpace.VMEM

    pallas_fn = pl.pallas_call(
        kernel,
        out_shape=(
            jax.ShapeDtypeStruct((T, B, H), jnp.float32),   # r_out
            jax.ShapeDtypeStruct((1, B, H), jnp.float32),   # h_n
            jax.ShapeDtypeStruct((1, B, H), jnp.float32),   # c_n
        ),
        in_specs=[pl.BlockSpec(memory_space=vmem)] * 6,
        out_specs=(
            pl.BlockSpec(memory_space=vmem),
            pl.BlockSpec(memory_space=vmem),
            pl.BlockSpec(memory_space=vmem),
        ),
        scratch_shapes=[pltpu.VMEM((T * B, GP), jnp.float32)],   # xproj (~180 KB)
    )

    @jax.jit
    def run(x, h0, c0):
        x2 = x.reshape(T * B, D)   # contiguous -> bitcast, no HBM copy
        return pallas_fn(x2, h0, c0, wih_pad, whh_pad, bias_pad)

    return run


def lstm_ref(x, h0, c0, w_ih, w_hh, b_ih, b_hh):
    """Pure-JAX reference implementing torch.nn.LSTM equations."""
    def step(carry, x_t):
        h, c = carry
        gates = x_t @ w_ih.T + b_ih + h @ w_hh.T + b_hh
        i, f, g, o = jnp.split(gates, 4, axis=-1)
        i = jax.nn.sigmoid(i)
        f = jax.nn.sigmoid(f)
        g = jnp.tanh(g)
        o = jax.nn.sigmoid(o)
        c = f * c + i * g
        h = o * jnp.tanh(c)
        return (h, c), h

    (hT, cT), ys = jax.lax.scan(step, (h0, c0), x)
    return ys, hT[None], cT[None]


if __name__ == "__main__":
    # Shapes implied by the module: input (18, 5, 196), hidden_size=20, 1 layer.
    T, B, D, H = 18, 5, 196, 20
    key = jax.random.PRNGKey(0)
    kx, kh, kc, k1, k2, k3, k4 = jax.random.split(key, 7)

    x = jax.random.normal(kx, (T, B, D), dtype=jnp.float32)
    h0 = jax.random.normal(kh, (B, H), dtype=jnp.float32)
    c0 = jax.random.normal(kc, (B, H), dtype=jnp.float32)

    # PyTorch-style init U(-1/sqrt(H), 1/sqrt(H)).
    bound = 1.0 / np.sqrt(H)
    w_ih = jax.random.uniform(k1, (4 * H, D), minval=-bound, maxval=bound, dtype=jnp.float32)
    w_hh = jax.random.uniform(k2, (4 * H, H), minval=-bound, maxval=bound, dtype=jnp.float32)
    b_ih = jax.random.uniform(k3, (4 * H,), minval=-bound, maxval=bound, dtype=jnp.float32)
    b_hh = jax.random.uniform(k4, (4 * H,), minval=-bound, maxval=bound, dtype=jnp.float32)

    lstm = make_lstm(w_ih, w_hh, b_ih, b_hh, seq_len=T, batch=B)
    r_out, h_n, c_n = lstm(x, h0, c0)
    jax.block_until_ready((r_out, h_n, c_n))

    # Correctness check against the pure-JAX reference.
    r_ref, h_ref, c_ref = lstm_ref(x, h0, c0, w_ih, w_hh, b_ih, b_hh)
    np.testing.assert_allclose(np.asarray(r_out), np.asarray(r_ref), rtol=1e-5, atol=2e-5)
    np.testing.assert_allclose(np.asarray(h_n), np.asarray(h_ref), rtol=1e-5, atol=2e-5)
    np.testing.assert_allclose(np.asarray(c_n), np.asarray(c_ref), rtol=1e-5, atol=2e-5)

    print("KERNEL_OK")
</pallas_src>

<mosaic_0001>
module attributes {stable_mosaic.version = 11 : i64} {
  func.func @_lstm_kernel(%arg0: memref<90x196xf32, #tpu.memory_space<vmem>>, %arg1: memref<5x20xf32, #tpu.memory_space<vmem>>, %arg2: memref<5x20xf32, #tpu.memory_space<vmem>>, %arg3: memref<196x512xf32, #tpu.memory_space<vmem>>, %arg4: memref<20x512xf32, #tpu.memory_space<vmem>>, %arg5: memref<1x512xf32, #tpu.memory_space<vmem>>, %arg6: memref<18x5x20xf32, #tpu.memory_space<vmem>>, %arg7: memref<1x5x20xf32, #tpu.memory_space<vmem>>, %arg8: memref<1x5x20xf32, #tpu.memory_space<vmem>>, %arg9: memref<90x512xf32, #tpu.memory_space<vmem>>) attributes {dimension_semantics = [], scalar_prefetch = 0 : i64, scratch_operands = 1 : i64, tpu.core_type = #tpu.core_type<tc>} {
    %c0 = arith.constant 0 : index
    %c0_0 = arith.constant 0 : index
    %0 = vector.load %arg0[%c0, %c0_0] : memref<90x196xf32, #tpu.memory_space<vmem>>, vector<90x196xf32>
    %c0_1 = arith.constant 0 : index
    %c0_2 = arith.constant 0 : index
    %1 = vector.load %arg3[%c0_1, %c0_2] : memref<196x512xf32, #tpu.memory_space<vmem>>, vector<196x512xf32>
    %cst = arith.constant dense<0.000000e+00> : vector<90x512xf32>
    %2 = tpu.matmul %0, %1, %cst {dimension_numbers = #tpu.dot_dimension_numbers<[1], [0], [0], [1], [0, 0, 1, 1], [], []>} : vector<90x196xf32>, vector<196x512xf32>, vector<90x512xf32> -> vector<90x512xf32>
    %c0_3 = arith.constant 0 : index
    %c0_4 = arith.constant 0 : index
    %3 = vector.load %arg5[%c0_3, %c0_4] : memref<1x512xf32, #tpu.memory_space<vmem>>, vector<1x512xf32>
    %4 = vector.broadcast %3 : vector<1x512xf32> to vector<90x512xf32>
    %5 = arith.addf %2, %4 : vector<90x512xf32>
    %c0_5 = arith.constant 0 : index
    %c0_6 = arith.constant 0 : index
    %6 = vector.load %arg9[%c0_5, %c0_6] : memref<90x512xf32, #tpu.memory_space<vmem>>, vector<90x512xf32>
    tpu.vector_store %arg9[%c0_5, %c0_6], %5 {strides = array<i32>} : memref<90x512xf32, #tpu.memory_space<vmem>>, vector<90x512xf32>,
    %c0_7 = arith.constant 0 : index
    %c0_8 = arith.constant 0 : index
    %7 = vector.load %arg4[%c0_7, %c0_8] : memref<20x512xf32, #tpu.memory_space<vmem>>, vector<20x512xf32>
    %c0_9 = arith.constant 0 : index
    %c0_10 = arith.constant 0 : index
    %8 = vector.load %arg1[%c0_9, %c0_10] : memref<5x20xf32, #tpu.memory_space<vmem>>, vector<5x20xf32>
    %c0_11 = arith.constant 0 : index
    %c0_12 = arith.constant 0 : index
    %9 = vector.load %arg2[%c0_11, %c0_12] : memref<5x20xf32, #tpu.memory_space<vmem>>, vector<5x20xf32>
    %c0_13 = arith.constant 0 : index
    %c0_14 = arith.constant 0 : index
    %10 = vector.load %arg9[%c0_13, %c0_14] : memref<90x512xf32, #tpu.memory_space<vmem>>, vector<5x512xf32>
    %cst_15 = arith.constant dense<0.000000e+00> : vector<5x512xf32>
    %11 = tpu.matmul %8, %7, %cst_15 {dimension_numbers = #tpu.dot_dimension_numbers<[1], [0], [0], [1], [0, 0, 1, 1], [], []>} : vector<5x20xf32>, vector<20x512xf32>, vector<5x512xf32> -> vector<5x512xf32>
    %12 = arith.addf %10, %11 : vector<5x512xf32>
    %13 = vector.extract_strided_slice %12 {offsets = [0, 0], sizes = [5, 20], strides = [1, 1]} : vector<5x512xf32> to vector<5x20xf32>
    %14 = arith.negf %13 : vector<5x20xf32>
    %15 = math.exp %14 : vector<5x20xf32>
    %cst_16 = arith.constant 1.000000e+00 : f32
    %16 = vector.broadcast %cst_16 : f32 to vector<5x20xf32>
    %17 = arith.addf %16, %15 : vector<5x20xf32>
    %18 = arith.divf %16, %17 : vector<5x20xf32>
    %19 = vector.extract_strided_slice %12 {offsets = [0, 128], sizes = [5, 20], strides = [1, 1]} : vector<5x512xf32> to vector<5x20xf32>
    %20 = arith.negf %19 : vector<5x20xf32>
    %21 = math.exp %20 : vector<5x20xf32>
    %cst_17 = arith.constant 1.000000e+00 : f32
    %22 = vector.broadcast %cst_17 : f32 to vector<5x20xf32>
    %23 = arith.addf %22, %21 : vector<5x20xf32>
    %24 = arith.divf %22, %23 : vector<5x20xf32>
    %25 = vector.extract_strided_slice %12 {offsets = [0, 256], sizes = [5, 20], strides = [1, 1]} : vector<5x512xf32> to vector<5x20xf32>
    %26 = math.tanh %25 : vector<5x20xf32>
    %27 = vector.extract_strided_slice %12 {offsets = [0, 384], sizes = [5, 20], strides = [1, 1]} : vector<5x512xf32> to vector<5x20xf32>
    %28 = arith.negf %27 : vector<5x20xf32>
    %29 = math.exp %28 : vector<5x20xf32>
    %cst_18 = arith.constant 1.000000e+00 : f32
    %30 = vector.broadcast %cst_18 : f32 to vector<5x20xf32>
    %31 = arith.addf %30, %29 : vector<5x20xf32>
    %32 = arith.divf %30, %31 : vector<5x20xf32>
    %33 = arith.mulf %24, %9 : vector<5x20xf32>
    %34 = arith.mulf %18, %26 : vector<5x20xf32>
    %35 = arith.addf %33, %34 : vector<5x20xf32>
    %36 = math.tanh %35 : vector<5x20xf32>
    %37 = arith.mulf %32, %36 : vector<5x20xf32>
    %c0_19 = arith.constant 0 : index
    %c0_20 = arith.constant 0 : index
    %c0_21 = arith.constant 0 : index
    %38 = vector.load %arg6[%c0_19, %c0_20, %c0_21] : memref<18x5x20xf32, #tpu.memory_space<vmem>>, vector<1x5x20xf32>
    %39 = vector.shape_cast %38 : vector<1x5x20xf32> to vector<5x20xf32>
    %40 = vector.shape_cast %37 : vector<5x20xf32> to vector<1x5x20xf32>
    tpu.vector_store %arg6[%c0_19, %c0_20, %c0_21], %40 {strides = array<i32>} : memref<18x5x20xf32, #tpu.memory_space<vmem>>, vector<1x5x20xf32>,
    %c5 = arith.constant 5 : index
    %c0_22 = arith.constant 0 : index
    %41 = vector.load %arg9[%c5, %c0_22] : memref<90x512xf32, #tpu.memory_space<vmem>>, vector<5x512xf32>
    %cst_23 = arith.constant dense<0.000000e+00> : vector<5x512xf32>
    %42 = tpu.matmul %37, %7, %cst_23 {dimension_numbers = #tpu.dot_dimension_numbers<[1], [0], [0], [1], [0, 0, 1, 1], [], []>} : vector<5x20xf32>, vector<20x512xf32>, vector<5x512xf32> -> vector<5x512xf32>
    %43 = arith.addf %41, %42 : vector<5x512xf32>
    %44 = vector.extract_strided_slice %43 {offsets = [0, 0], sizes = [5, 20], strides = [1, 1]} : vector<5x512xf32> to vector<5x20xf32>
    %45 = arith.negf %44 : vector<5x20xf32>
    %46 = math.exp %45 : vector<5x20xf32>
    %cst_24 = arith.constant 1.000000e+00 : f32
    %47 = vector.broadcast %cst_24 : f32 to vector<5x20xf32>
    %48 = arith.addf %47, %46 : vector<5x20xf32>
    %49 = arith.divf %47, %48 : vector<5x20xf32>
    %50 = vector.extract_strided_slice %43 {offsets = [0, 128], sizes = [5, 20], strides = [1, 1]} : vector<5x512xf32> to vector<5x20xf32>
    %51 = arith.negf %50 : vector<5x20xf32>
    %52 = math.exp %51 : vector<5x20xf32>
    %cst_25 = arith.constant 1.000000e+00 : f32
    %53 = vector.broadcast %cst_25 : f32 to vector<5x20xf32>
    %54 = arith.addf %53, %52 : vector<5x20xf32>
    %55 = arith.divf %53, %54 : vector<5x20xf32>
    %56 = vector.extract_strided_slice %43 {offsets = [0, 256], sizes = [5, 20], strides = [1, 1]} : vector<5x512xf32> to vector<5x20xf32>
    %57 = math.tanh %56 : vector<5x20xf32>
    %58 = vector.extract_strided_slice %43 {offsets = [0, 384], sizes = [5, 20], strides = [1, 1]} : vector<5x512xf32> to vector<5x20xf32>
    %59 = arith.negf %58 : vector<5x20xf32>
    %60 = math.exp %59 : vector<5x20xf32>
    %cst_26 = arith.constant 1.000000e+00 : f32
    %61 = vector.broadcast %cst_26 : f32 to vector<5x20xf32>
    %62 = arith.addf %61, %60 : vector<5x20xf32>
    %63 = arith.divf %61, %62 : vector<5x20xf32>
    %64 = arith.mulf %55, %35 : vector<5x20xf32>
    %65 = arith.mulf %49, %57 : vector<5x20xf32>
    %66 = arith.addf %64, %65 : vector<5x20xf32>
    %67 = math.tanh %66 : vector<5x20xf32>
    %68 = arith.mulf %63, %67 : vector<5x20xf32>
    %c1 = arith.constant 1 : index
    %c0_27 = arith.constant 0 : index
    %c0_28 = arith.constant 0 : index
    %69 = vector.load %arg6[%c1, %c0_27, %c0_28] : memref<18x5x20xf32, #tpu.memory_space<vmem>>, vector<1x5x20xf32>
    %70 = vector.shape_cast %69 : vector<1x5x20xf32> to vector<5x20xf32>
    %71 = vector.shape_cast %68 : vector<5x20xf32> to vector<1x5x20xf32>
    tpu.vector_store %arg6[%c1, %c0_27, %c0_28], %71 {strides = array<i32>} : memref<18x5x20xf32, #tpu.memory_space<vmem>>, vector<1x5x20xf32>,
    %c10 = arith.constant 10 : index
    %c0_29 = arith.constant 0 : index
    %72 = vector.load %arg9[%c10, %c0_29] : memref<90x512xf32, #tpu.memory_space<vmem>>, vector<5x512xf32>
    %cst_30 = arith.constant dense<0.000000e+00> : vector<5x512xf32>
    %73 = tpu.matmul %68, %7, %cst_30 {dimension_numbers = #tpu.dot_dimension_numbers<[1], [0], [0], [1], [0, 0, 1, 1], [], []>} : vector<5x20xf32>, vector<20x512xf32>, vector<5x512xf32> -> vector<5x512xf32>
    %74 = arith.addf %72, %73 : vector<5x512xf32>
    %75 = vector.extract_strided_slice %74 {offsets = [0, 0], sizes = [5, 20], strides = [1, 1]} : vector<5x512xf32> to vector<5x20xf32>
    %76 = arith.negf %75 : vector<5x20xf32>
    %77 = math.exp %76 : vector<5x20xf32>
    %cst_31 = arith.constant 1.000000e+00 : f32
    %78 = vector.broadcast %cst_31 : f32 to vector<5x20xf32>
    %79 = arith.addf %78, %77 : vector<5x20xf32>
    %80 = arith.divf %78, %79 : vector<5x20xf32>
    %81 = vector.extract_strided_slice %74 {offsets = [0, 128], sizes = [5, 20], strides = [1, 1]} : vector<5x512xf32> to vector<5x20xf32>
    %82 = arith.negf %81 : vector<5x20xf32>
    %83 = math.exp %82 : vector<5x20xf32>
    %cst_32 = arith.constant 1.000000e+00 : f32
    %84 = vector.broadcast %cst_32 : f32 to vector<5x20xf32>
    %85 = arith.addf %84, %83 : vector<5x20xf32>
    %86 = arith.divf %84, %85 : vector<5x20xf32>
    %87 = vector.extract_strided_slice %74 {offsets = [0, 256], sizes = [5, 20], strides = [1, 1]} : vector<5x512xf32> to vector<5x20xf32>
    %88 = math.tanh %87 : vector<5x20xf32>
    %89 = vector.extract_strided_slice %74 {offsets = [0, 384], sizes = [5, 20], strides = [1, 1]} : vector<5x512xf32> to vector<5x20xf32>
    %90 = arith.negf %89 : vector<5x20xf32>
    %91 = math.exp %90 : vector<5x20xf32>
    %cst_33 = arith.constant 1.000000e+00 : f32
    %92 = vector.broadcast %cst_33 : f32 to vector<5x20xf32>
    %93 = arith.addf %92, %91 : vector<5x20xf32>
    %94 = arith.divf %92, %93 : vector<5x20xf32>
    %95 = arith.mulf %86, %66 : vector<5x20xf32>
    %96 = arith.mulf %80, %88 : vector<5x20xf32>
    %97 = arith.addf %95, %96 : vector<5x20xf32>
    %98 = math.tanh %97 : vector<5x20xf32>
    %99 = arith.mulf %94, %98 : vector<5x20xf32>
    %c2 = arith.constant 2 : index
    %c0_34 = arith.constant 0 : index
    %c0_35 = arith.constant 0 : index
    %100 = vector.load %arg6[%c2, %c0_34, %c0_35] : memref<18x5x20xf32, #tpu.memory_space<vmem>>, vector<1x5x20xf32>
    %101 = vector.shape_cast %100 : vector<1x5x20xf32> to vector<5x20xf32>
    %102 = vector.shape_cast %99 : vector<5x20xf32> to vector<1x5x20xf32>
    tpu.vector_store %arg6[%c2, %c0_34, %c0_35], %102 {strides = array<i32>} : memref<18x5x20xf32, #tpu.memory_space<vmem>>, vector<1x5x20xf32>,
    %c15 = arith.constant 15 : index
    %c0_36 = arith.constant 0 : index
    %103 = vector.load %arg9[%c15, %c0_36] : memref<90x512xf32, #tpu.memory_space<vmem>>, vector<5x512xf32>
    %cst_37 = arith.constant dense<0.000000e+00> : vector<5x512xf32>
    %104 = tpu.matmul %99, %7, %cst_37 {dimension_numbers = #tpu.dot_dimension_numbers<[1], [0], [0], [1], [0, 0, 1, 1], [], []>} : vector<5x20xf32>, vector<20x512xf32>, vector<5x512xf32> -> vector<5x512xf32>
    %105 = arith.addf %103, %104 : vector<5x512xf32>
    %106 = vector.extract_strided_slice %105 {offsets = [0, 0], sizes = [5, 20], strides = [1, 1]} : vector<5x512xf32> to vector<5x20xf32>
    %107 = arith.negf %106 : vector<5x20xf32>
    %108 = math.exp %107 : vector<5x20xf32>
    %cst_38 = arith.constant 1.000000e+00 : f32
    %109 = vector.broadcast %cst_38 : f32 to vector<5x20xf32>
    %110 = arith.addf %109, %108 : vector<5x20xf32>
    %111 = arith.divf %109, %110 : vector<5x20xf32>
    %112 = vector.extract_strided_slice %105 {offsets = [0, 128], sizes = [5, 20], strides = [1, 1]} : vector<5x512xf32> to vector<5x20xf32>
    %113 = arith.negf %112 : vector<5x20xf32>
    %114 = math.exp %113 : vector<5x20xf32>
    %cst_39 = arith.constant 1.000000e+00 : f32
    %115 = vector.broadcast %cst_39 : f32 to vector<5x20xf32>
    %116 = arith.addf %115, %114 : vector<5x20xf32>
    %117 = arith.divf %115, %116 : vector<5x20xf32>
    %118 = vector.extract_strided_slice %105 {offsets = [0, 256], sizes = [5, 20], strides = [1, 1]} : vector<5x512xf32> to vector<5x20xf32>
    %119 = math.tanh %118 : vector<5x20xf32>
    %120 = vector.extract_strided_slice %105 {offsets = [0, 384], sizes = [5, 20], strides = [1, 1]} : vector<5x512xf32> to vector<5x20xf32>
    %121 = arith.negf %120 : vector<5x20xf32>
    %122 = math.exp %121 : vector<5x20xf32>
    %cst_40 = arith.constant 1.000000e+00 : f32
    %123 = vector.broadcast %cst_40 : f32 to vector<5x20xf32>
    %124 = arith.addf %123, %122 : vector<5x20xf32>
    %125 = arith.divf %123, %124 : vector<5x20xf32>
    %126 = arith.mulf %117, %97 : vector<5x20xf32>
    %127 = arith.mulf %111, %119 : vector<5x20xf32>
    %128 = arith.addf %126, %127 : vector<5x20xf32>
    %129 = math.tanh %128 : vector<5x20xf32>
    %130 = arith.mulf %125, %129 : vector<5x20xf32>
    %c3 = arith.constant 3 : index
    %c0_41 = arith.constant 0 : index
    %c0_42 = arith.constant 0 : index
    %131 = vector.load %arg6[%c3, %c0_41, %c0_42] : memref<18x5x20xf32, #tpu.memory_space<vmem>>, vector<1x5x20xf32>
    %132 = vector.shape_cast %131 : vector<1x5x20xf32> to vector<5x20xf32>
    %133 = vector.shape_cast %130 : vector<5x20xf32> to vector<1x5x20xf32>
    tpu.vector_store %arg6[%c3, %c0_41, %c0_42], %133 {strides = array<i32>} : memref<18x5x20xf32, #tpu.memory_space<vmem>>, vector<1x5x20xf32>,
    %c20 = arith.constant 20 : index
    %c0_43 = arith.constant 0 : index
    %134 = vector.load %arg9[%c20, %c0_43] : memref<90x512xf32, #tpu.memory_space<vmem>>, vector<5x512xf32>
    %cst_44 = arith.constant dense<0.000000e+00> : vector<5x512xf32>
    %135 = tpu.matmul %130, %7, %cst_44 {dimension_numbers = #tpu.dot_dimension_numbers<[1], [0], [0], [1], [0, 0, 1, 1], [], []>} : vector<5x20xf32>, vector<20x512xf32>, vector<5x512xf32> -> vector<5x512xf32>
    %136 = arith.addf %134, %135 : vector<5x512xf32>
    %137 = vector.extract_strided_slice %136 {offsets = [0, 0], sizes = [5, 20], strides = [1, 1]} : vector<5x512xf32> to vector<5x20xf32>
    %138 = arith.negf %137 : vector<5x20xf32>
    %139 = math.exp %138 : vector<5x20xf32>
    %cst_45 = arith.constant 1.000000e+00 : f32
    %140 = vector.broadcast %cst_45 : f32 to vector<5x20xf32>
    %141 = arith.addf %140, %139 : vector<5x20xf32>
    %142 = arith.divf %140, %141 : vector<5x20xf32>
    %143 = vector.extract_strided_slice %136 {offsets = [0, 128], sizes = [5, 20], strides = [1, 1]} : vector<5x512xf32> to vector<5x20xf32>
    %144 = arith.negf %143 : vector<5x20xf32>
    %145 = math.exp %144 : vector<5x20xf32>
    %cst_46 = arith.constant 1.000000e+00 : f32
    %146 = vector.broadcast %cst_46 : f32 to vector<5x20xf32>
    %147 = arith.addf %146, %145 : vector<5x20xf32>
    %148 = arith.divf %146, %147 : vector<5x20xf32>
    %149 = vector.extract_strided_slice %136 {offsets = [0, 256], sizes = [5, 20], strides = [1, 1]} : vector<5x512xf32> to vector<5x20xf32>
    %150 = math.tanh %149 : vector<5x20xf32>
    %151 = vector.extract_strided_slice %136 {offsets = [0, 384], sizes = [5, 20], strides = [1, 1]} : vector<5x512xf32> to vector<5x20xf32>
    %152 = arith.negf %151 : vector<5x20xf32>
    %153 = math.exp %152 : vector<5x20xf32>
    %cst_47 = arith.constant 1.000000e+00 : f32
    %154 = vector.broadcast %cst_47 : f32 to vector<5x20xf32>
    %155 = arith.addf %154, %153 : vector<5x20xf32>
    %156 = arith.divf %154, %155 : vector<5x20xf32>
    %157 = arith.mulf %148, %128 : vector<5x20xf32>
    %158 = arith.mulf %142, %150 : vector<5x20xf32>
    %159 = arith.addf %157, %158 : vector<5x20xf32>
    %160 = math.tanh %159 : vector<5x20xf32>
    %161 = arith.mulf %156, %160 : vector<5x20xf32>
    %c4 = arith.constant 4 : index
    %c0_48 = arith.constant 0 : index
    %c0_49 = arith.constant 0 : index
    %162 = vector.load %arg6[%c4, %c0_48, %c0_49] : memref<18x5x20xf32, #tpu.memory_space<vmem>>, vector<1x5x20xf32>
    %163 = vector.shape_cast %162 : vector<1x5x20xf32> to vector<5x20xf32>
    %164 = vector.shape_cast %161 : vector<5x20xf32> to vector<1x5x20xf32>
    tpu.vector_store %arg6[%c4, %c0_48, %c0_49], %164 {strides = array<i32>} : memref<18x5x20xf32, #tpu.memory_space<vmem>>, vector<1x5x20xf32>,
    %c25 = arith.constant 25 : index
    %c0_50 = arith.constant 0 : index
    %165 = vector.load %arg9[%c25, %c0_50] : memref<90x512xf32, #tpu.memory_space<vmem>>, vector<5x512xf32>
    %cst_51 = arith.constant dense<0.000000e+00> : vector<5x512xf32>
    %166 = tpu.matmul %161, %7, %cst_51 {dimension_numbers = #tpu.dot_dimension_numbers<[1], [0], [0], [1], [0, 0, 1, 1], [], []>} : vector<5x20xf32>, vector<20x512xf32>, vector<5x512xf32> -> vector<5x512xf32>
    %167 = arith.addf %165, %166 : vector<5x512xf32>
    %168 = vector.extract_strided_slice %167 {offsets = [0, 0], sizes = [5, 20], strides = [1, 1]} : vector<5x512xf32> to vector<5x20xf32>
    %169 = arith.negf %168 : vector<5x20xf32>
    %170 = math.exp %169 : vector<5x20xf32>
    %cst_52 = arith.constant 1.000000e+00 : f32
    %171 = vector.broadcast %cst_52 : f32 to vector<5x20xf32>
    %172 = arith.addf %171, %170 : vector<5x20xf32>
    %173 = arith.divf %171, %172 : vector<5x20xf32>
    %174 = vector.extract_strided_slice %167 {offsets = [0, 128], sizes = [5, 20], strides = [1, 1]} : vector<5x512xf32> to vector<5x20xf32>
    %175 = arith.negf %174 : vector<5x20xf32>
    %176 = math.exp %175 : vector<5x20xf32>
    %cst_53 = arith.constant 1.000000e+00 : f32
    %177 = vector.broadcast %cst_53 : f32 to vector<5x20xf32>
    %178 = arith.addf %177, %176 : vector<5x20xf32>
    %179 = arith.divf %177, %178 : vector<5x20xf32>
    %180 = vector.extract_strided_slice %167 {offsets = [0, 256], sizes = [5, 20], strides = [1, 1]} : vector<5x512xf32> to vector<5x20xf32>
    %181 = math.tanh %180 : vector<5x20xf32>
    %182 = vector.extract_strided_slice %167 {offsets = [0, 384], sizes = [5, 20], strides = [1, 1]} : vector<5x512xf32> to vector<5x20xf32>
    %183 = arith.negf %182 : vector<5x20xf32>
    %184 = math.exp %183 : vector<5x20xf32>
    %cst_54 = arith.constant 1.000000e+00 : f32
    %185 = vector.broadcast %cst_54 : f32 to vector<5x20xf32>
    %186 = arith.addf %185, %184 : vector<5x20xf32>
    %187 = arith.divf %185, %186 : vector<5x20xf32>
    %188 = arith.mulf %179, %159 : vector<5x20xf32>
    %189 = arith.mulf %173, %181 : vector<5x20xf32>
    %190 = arith.addf %188, %189 : vector<5x20xf32>
    %191 = math.tanh %190 : vector<5x20xf32>
    %192 = arith.mulf %187, %191 : vector<5x20xf32>
    %c5_55 = arith.constant 5 : index
    %c0_56 = arith.constant 0 : index
    %c0_57 = arith.constant 0 : index
    %193 = vector.load %arg6[%c5_55, %c0_56, %c0_57] : memref<18x5x20xf32, #tpu.memory_space<vmem>>, vector<1x5x20xf32>
    %194 = vector.shape_cast %193 : vector<1x5x20xf32> to vector<5x20xf32>
    %195 = vector.shape_cast %192 : vector<5x20xf32> to vector<1x5x20xf32>
    tpu.vector_store %arg6[%c5_55, %c0_56, %c0_57], %195 {strides = array<i32>} : memref<18x5x20xf32, #tpu.memory_space<vmem>>, vector<1x5x20xf32>,
    %c30 = arith.constant 30 : index
    %c0_58 = arith.constant 0 : index
    %196 = vector.load %arg9[%c30, %c0_58] : memref<90x512xf32, #tpu.memory_space<vmem>>, vector<5x512xf32>
    %cst_59 = arith.constant dense<0.000000e+00> : vector<5x512xf32>
    %197 = tpu.matmul %192, %7, %cst_59 {dimension_numbers = #tpu.dot_dimension_numbers<[1], [0], [0], [1], [0, 0, 1, 1], [], []>} : vector<5x20xf32>, vector<20x512xf32>, vector<5x512xf32> -> vector<5x512xf32>
    %198 = arith.addf %196, %197 : vector<5x512xf32>
    %199 = vector.extract_strided_slice %198 {offsets = [0, 0], sizes = [5, 20], strides = [1, 1]} : vector<5x512xf32> to vector<5x20xf32>
    %200 = arith.negf %199 : vector<5x20xf32>
    %201 = math.exp %200 : vector<5x20xf32>
    %cst_60 = arith.constant 1.000000e+00 : f32
    %202 = vector.broadcast %cst_60 : f32 to vector<5x20xf32>
    %203 = arith.addf %202, %201 : vector<5x20xf32>
    %204 = arith.divf %202, %203 : vector<5x20xf32>
    %205 = vector.extract_strided_slice %198 {offsets = [0, 128], sizes = [5, 20], strides = [1, 1]} : vector<5x512xf32> to vector<5x20xf32>
    %206 = arith.negf %205 : vector<5x20xf32>
    %207 = math.exp %206 : vector<5x20xf32>
    %cst_61 = arith.constant 1.000000e+00 : f32
    %208 = vector.broadcast %cst_61 : f32 to vector<5x20xf32>
    %209 = arith.addf %208, %207 : vector<5x20xf32>
    %210 = arith.divf %208, %209 : vector<5x20xf32>
    %211 = vector.extract_strided_slice %198 {offsets = [0, 256], sizes = [5, 20], strides = [1, 1]} : vector<5x512xf32> to vector<5x20xf32>
    %212 = math.tanh %211 : vector<5x20xf32>
    %213 = vector.extract_strided_slice %198 {offsets = [0, 384], sizes = [5, 20], strides = [1, 1]} : vector<5x512xf32> to vector<5x20xf32>
    %214 = arith.negf %213 : vector<5x20xf32>
    %215 = math.exp %214 : vector<5x20xf32>
    %cst_62 = arith.constant 1.000000e+00 : f32
    %216 = vector.broadcast %cst_62 : f32 to vector<5x20xf32>
    %217 = arith.addf %216, %215 : vector<5x20xf32>
    %218 = arith.divf %216, %217 : vector<5x20xf32>
    %219 = arith.mulf %210, %190 : vector<5x20xf32>
    %220 = arith.mulf %204, %212 : vector<5x20xf32>
    %221 = arith.addf %219, %220 : vector<5x20xf32>
    %222 = math.tanh %221 : vector<5x20xf32>
    %223 = arith.mulf %218, %222 : vector<5x20xf32>
    %c6 = arith.constant 6 : index
    %c0_63 = arith.constant 0 : index
    %c0_64 = arith.constant 0 : index
    %224 = vector.load %arg6[%c6, %c0_63, %c0_64] : memref<18x5x20xf32, #tpu.memory_space<vmem>>, vector<1x5x20xf32>
    %225 = vector.shape_cast %224 : vector<1x5x20xf32> to vector<5x20xf32>
    %226 = vector.shape_cast %223 : vector<5x20xf32> to vector<1x5x20xf32>
    tpu.vector_store %arg6[%c6, %c0_63, %c0_64], %226 {strides = array<i32>} : memref<18x5x20xf32, #tpu.memory_space<vmem>>, vector<1x5x20xf32>,
    %c35 = arith.constant 35 : index
    %c0_65 = arith.constant 0 : index
    %227 = vector.load %arg9[%c35, %c0_65] : memref<90x512xf32, #tpu.memory_space<vmem>>, vector<5x512xf32>
    %cst_66 = arith.constant dense<0.000000e+00> : vector<5x512xf32>
    %228 = tpu.matmul %223, %7, %cst_66 {dimension_numbers = #tpu.dot_dimension_numbers<[1], [0], [0], [1], [0, 0, 1, 1], [], []>} : vector<5x20xf32>, vector<20x512xf32>, vector<5x512xf32> -> vector<5x512xf32>
    %229 = arith.addf %227, %228 : vector<5x512xf32>
    %230 = vector.extract_strided_slice %229 {offsets = [0, 0], sizes = [5, 20], strides = [1, 1]} : vector<5x512xf32> to vector<5x20xf32>
    %231 = arith.negf %230 : vector<5x20xf32>
    %232 = math.exp %231 : vector<5x20xf32>
    %cst_67 = arith.constant 1.000000e+00 : f32
    %233 = vector.broadcast %cst_67 : f32 to vector<5x20xf32>
    %234 = arith.addf %233, %232 : vector<5x20xf32>
    %235 = arith.divf %233, %234 : vector<5x20xf32>
    %236 = vector.extract_strided_slice %229 {offsets = [0, 128], sizes = [5, 20], strides = [1, 1]} : vector<5x512xf32> to vector<5x20xf32>
    %237 = arith.negf %236 : vector<5x20xf32>
    %238 = math.exp %237 : vector<5x20xf32>
    %cst_68 = arith.constant 1.000000e+00 : f32
    %239 = vector.broadcast %cst_68 : f32 to vector<5x20xf32>
    %240 = arith.addf %239, %238 : vector<5x20xf32>
    %241 = arith.divf %239, %240 : vector<5x20xf32>
    %242 = vector.extract_strided_slice %229 {offsets = [0, 256], sizes = [5, 20], strides = [1, 1]} : vector<5x512xf32> to vector<5x20xf32>
    %243 = math.tanh %242 : vector<5x20xf32>
    %244 = vector.extract_strided_slice %229 {offsets = [0, 384], sizes = [5, 20], strides = [1, 1]} : vector<5x512xf32> to vector<5x20xf32>
    %245 = arith.negf %244 : vector<5x20xf32>
    %246 = math.exp %245 : vector<5x20xf32>
    %cst_69 = arith.constant 1.000000e+00 : f32
    %247 = vector.broadcast %cst_69 : f32 to vector<5x20xf32>
    %248 = arith.addf %247, %246 : vector<5x20xf32>
    %249 = arith.divf %247, %248 : vector<5x20xf32>
    %250 = arith.mulf %241, %221 : vector<5x20xf32>
    %251 = arith.mulf %235, %243 : vector<5x20xf32>
    %252 = arith.addf %250, %251 : vector<5x20xf32>
    %253 = math.tanh %252 : vector<5x20xf32>
    %254 = arith.mulf %249, %253 : vector<5x20xf32>
    %c7 = arith.constant 7 : index
    %c0_70 = arith.constant 0 : index
    %c0_71 = arith.constant 0 : index
    %255 = vector.load %arg6[%c7, %c0_70, %c0_71] : memref<18x5x20xf32, #tpu.memory_space<vmem>>, vector<1x5x20xf32>
    %256 = vector.shape_cast %255 : vector<1x5x20xf32> to vector<5x20xf32>
    %257 = vector.shape_cast %254 : vector<5x20xf32> to vector<1x5x20xf32>
    tpu.vector_store %arg6[%c7, %c0_70, %c0_71], %257 {strides = array<i32>} : memref<18x5x20xf32, #tpu.memory_space<vmem>>, vector<1x5x20xf32>,
    %c40 = arith.constant 40 : index
    %c0_72 = arith.constant 0 : index
    %258 = vector.load %arg9[%c40, %c0_72] : memref<90x512xf32, #tpu.memory_space<vmem>>, vector<5x512xf32>
    %cst_73 = arith.constant dense<0.000000e+00> : vector<5x512xf32>
    %259 = tpu.matmul %254, %7, %cst_73 {dimension_numbers = #tpu.dot_dimension_numbers<[1], [0], [0], [1], [0, 0, 1, 1], [], []>} : vector<5x20xf32>, vector<20x512xf32>, vector<5x512xf32> -> vector<5x512xf32>
    %260 = arith.addf %258, %259 : vector<5x512xf32>
    %261 = vector.extract_strided_slice %260 {offsets = [0, 0], sizes = [5, 20], strides = [1, 1]} : vector<5x512xf32> to vector<5x20xf32>
    %262 = arith.negf %261 : vector<5x20xf32>
    %263 = math.exp %262 : vector<5x20xf32>
    %cst_74 = arith.constant 1.000000e+00 : f32
    %264 = vector.broadcast %cst_74 : f32 to vector<5x20xf32>
    %265 = arith.addf %264, %263 : vector<5x20xf32>
    %266 = arith.divf %264, %265 : vector<5x20xf32>
    %267 = vector.extract_strided_slice %260 {offsets = [0, 128], sizes = [5, 20], strides = [1, 1]} : vector<5x512xf32> to vector<5x20xf32>
    %268 = arith.negf %267 : vector<5x20xf32>
    %269 = math.exp %268 : vector<5x20xf32>
    %cst_75 = arith.constant 1.000000e+00 : f32
    %270 = vector.broadcast %cst_75 : f32 to vector<5x20xf32>
    %271 = arith.addf %270, %269 : vector<5x20xf32>
    %272 = arith.divf %270, %271 : vector<5x20xf32>
    %273 = vector.extract_strided_slice %260 {offsets = [0, 256], sizes = [5, 20], strides = [1, 1]} : vector<5x512xf32> to vector<5x20xf32>
    %274 = math.tanh %273 : vector<5x20xf32>
    %275 = vector.extract_strided_slice %260 {offsets = [0, 384], sizes = [5, 20], strides = [1, 1]} : vector<5x512xf32> to vector<5x20xf32>
    %276 = arith.negf %275 : vector<5x20xf32>
    %277 = math.exp %276 : vector<5x20xf32>
    %cst_76 = arith.constant 1.000000e+00 : f32
    %278 = vector.broadcast %cst_76 : f32 to vector<5x20xf32>
    %279 = arith.addf %278, %277 : vector<5x20xf32>
    %280 = arith.divf %278, %279 : vector<5x20xf32>
    %281 = arith.mulf %272, %252 : vector<5x20xf32>
    %282 = arith.mulf %266, %274 : vector<5x20xf32>
    %283 = arith.addf %281, %282 : vector<5x20xf32>
    %284 = math.tanh %283 : vector<5x20xf32>
    %285 = arith.mulf %280, %284 : vector<5x20xf32>
    %c8 = arith.constant 8 : index
    %c0_77 = arith.constant 0 : index
    %c0_78 = arith.constant 0 : index
    %286 = vector.load %arg6[%c8, %c0_77, %c0_78] : memref<18x5x20xf32, #tpu.memory_space<vmem>>, vector<1x5x20xf32>
    %287 = vector.shape_cast %286 : vector<1x5x20xf32> to vector<5x20xf32>
    %288 = vector.shape_cast %285 : vector<5x20xf32> to vector<1x5x20xf32>
    tpu.vector_store %arg6[%c8, %c0_77, %c0_78], %288 {strides = array<i32>} : memref<18x5x20xf32, #tpu.memory_space<vmem>>, vector<1x5x20xf32>,
    %c45 = arith.constant 45 : index
    %c0_79 = arith.constant 0 : index
    %289 = vector.load %arg9[%c45, %c0_79] : memref<90x512xf32, #tpu.memory_space<vmem>>, vector<5x512xf32>
    %cst_80 = arith.constant dense<0.000000e+00> : vector<5x512xf32>
    %290 = tpu.matmul %285, %7, %cst_80 {dimension_numbers = #tpu.dot_dimension_numbers<[1], [0], [0], [1], [0, 0, 1, 1], [], []>} : vector<5x20xf32>, vector<20x512xf32>, vector<5x512xf32> -> vector<5x512xf32>
    %291 = arith.addf %289, %290 : vector<5x512xf32>
    %292 = vector.extract_strided_slice %291 {offsets = [0, 0], sizes = [5, 20], strides = [1, 1]} : vector<5x512xf32> to vector<5x20xf32>
    %293 = arith.negf %292 : vector<5x20xf32>
    %294 = math.exp %293 : vector<5x20xf32>
    %cst_81 = arith.constant 1.000000e+00 : f32
    %295 = vector.broadcast %cst_81 : f32 to vector<5x20xf32>
    %296 = arith.addf %295, %294 : vector<5x20xf32>
    %297 = arith.divf %295, %296 : vector<5x20xf32>
    %298 = vector.extract_strided_slice %291 {offsets = [0, 128], sizes = [5, 20], strides = [1, 1]} : vector<5x512xf32> to vector<5x20xf32>
    %299 = arith.negf %298 : vector<5x20xf32>
    %300 = math.exp %299 : vector<5x20xf32>
    %cst_82 = arith.constant 1.000000e+00 : f32
    %301 = vector.broadcast %cst_82 : f32 to vector<5x20xf32>
    %302 = arith.addf %301, %300 : vector<5x20xf32>
    %303 = arith.divf %301, %302 : vector<5x20xf32>
    %304 = vector.extract_strided_slice %291 {offsets = [0, 256], sizes = [5, 20], strides = [1, 1]} : vector<5x512xf32> to vector<5x20xf32>
    %305 = math.tanh %304 : vector<5x20xf32>
    %306 = vector.extract_strided_slice %291 {offsets = [0, 384], sizes = [5, 20], strides = [1, 1]} : vector<5x512xf32> to vector<5x20xf32>
    %307 = arith.negf %306 : vector<5x20xf32>
    %308 = math.exp %307 : vector<5x20xf32>
    %cst_83 = arith.constant 1.000000e+00 : f32
    %309 = vector.broadcast %cst_83 : f32 to vector<5x20xf32>
    %310 = arith.addf %309, %308 : vector<5x20xf32>
    %311 = arith.divf %309, %310 : vector<5x20xf32>
    %312 = arith.mulf %303, %283 : vector<5x20xf32>
    %313 = arith.mulf %297, %305 : vector<5x20xf32>
    %314 = arith.addf %312, %313 : vector<5x20xf32>
    %315 = math.tanh %314 : vector<5x20xf32>
    %316 = arith.mulf %311, %315 : vector<5x20xf32>
    %c9 = arith.constant 9 : index
    %c0_84 = arith.constant 0 : index
    %c0_85 = arith.constant 0 : index
    %317 = vector.load %arg6[%c9, %c0_84, %c0_85] : memref<18x5x20xf32, #tpu.memory_space<vmem>>, vector<1x5x20xf32>
    %318 = vector.shape_cast %317 : vector<1x5x20xf32> to vector<5x20xf32>
    %319 = vector.shape_cast %316 : vector<5x20xf32> to vector<1x5x20xf32>
    tpu.vector_store %arg6[%c9, %c0_84, %c0_85], %319 {strides = array<i32>} : memref<18x5x20xf32, #tpu.memory_space<vmem>>, vector<1x5x20xf32>,
    %c50 = arith.constant 50 : index
    %c0_86 = arith.constant 0 : index
    %320 = vector.load %arg9[%c50, %c0_86] : memref<90x512xf32, #tpu.memory_space<vmem>>, vector<5x512xf32>
    %cst_87 = arith.constant dense<0.000000e+00> : vector<5x512xf32>
    %321 = tpu.matmul %316, %7, %cst_87 {dimension_numbers = #tpu.dot_dimension_numbers<[1], [0], [0], [1], [0, 0, 1, 1], [], []>} : vector<5x20xf32>, vector<20x512xf32>, vector<5x512xf32> -> vector<5x512xf32>
    %322 = arith.addf %320, %321 : vector<5x512xf32>
    %323 = vector.extract_strided_slice %322 {offsets = [0, 0], sizes = [5, 20], strides = [1, 1]} : vector<5x512xf32> to vector<5x20xf32>
    %324 = arith.negf %323 : vector<5x20xf32>
    %325 = math.exp %324 : vector<5x20xf32>
    %cst_88 = arith.constant 1.000000e+00 : f32
    %326 = vector.broadcast %cst_88 : f32 to vector<5x20xf32>
    %327 = arith.addf %326, %325 : vector<5x20xf32>
    %328 = arith.divf %326, %327 : vector<5x20xf32>
    %329 = vector.extract_strided_slice %322 {offsets = [0, 128], sizes = [5, 20], strides = [1, 1]} : vector<5x512xf32> to vector<5x20xf32>
    %330 = arith.negf %329 : vector<5x20xf32>
    %331 = math.exp %330 : vector<5x20xf32>
    %cst_89 = arith.constant 1.000000e+00 : f32
    %332 = vector.broadcast %cst_89 : f32 to vector<5x20xf32>
    %333 = arith.addf %332, %331 : vector<5x20xf32>
    %334 = arith.divf %332, %333 : vector<5x20xf32>
    %335 = vector.extract_strided_slice %322 {offsets = [0, 256], sizes = [5, 20], strides = [1, 1]} : vector<5x512xf32> to vector<5x20xf32>
    %336 = math.tanh %335 : vector<5x20xf32>
    %337 = vector.extract_strided_slice %322 {offsets = [0, 384], sizes = [5, 20], strides = [1, 1]} : vector<5x512xf32> to vector<5x20xf32>
    %338 = arith.negf %337 : vector<5x20xf32>
    %339 = math.exp %338 : vector<5x20xf32>
    %cst_90 = arith.constant 1.000000e+00 : f32
    %340 = vector.broadcast %cst_90 : f32 to vector<5x20xf32>
    %341 = arith.addf %340, %339 : vector<5x20xf32>
    %342 = arith.divf %340, %341 : vector<5x20xf32>
    %343 = arith.mulf %334, %314 : vector<5x20xf32>
    %344 = arith.mulf %328, %336 : vector<5x20xf32>
    %345 = arith.addf %343, %344 : vector<5x20xf32>
    %346 = math.tanh %345 : vector<5x20xf32>
    %347 = arith.mulf %342, %346 : vector<5x20xf32>
    %c10_91 = arith.constant 10 : index
    %c0_92 = arith.constant 0 : index
    %c0_93 = arith.constant 0 : index
    %348 = vector.load %arg6[%c10_91, %c0_92, %c0_93] : memref<18x5x20xf32, #tpu.memory_space<vmem>>, vector<1x5x20xf32>
    %349 = vector.shape_cast %348 : vector<1x5x20xf32> to vector<5x20xf32>
    %350 = vector.shape_cast %347 : vector<5x20xf32> to vector<1x5x20xf32>
    tpu.vector_store %arg6[%c10_91, %c0_92, %c0_93], %350 {strides = array<i32>} : memref<18x5x20xf32, #tpu.memory_space<vmem>>, vector<1x5x20xf32>,
    %c55 = arith.constant 55 : index
    %c0_94 = arith.constant 0 : index
    %351 = vector.load %arg9[%c55, %c0_94] : memref<90x512xf32, #tpu.memory_space<vmem>>, vector<5x512xf32>
    %cst_95 = arith.constant dense<0.000000e+00> : vector<5x512xf32>
    %352 = tpu.matmul %347, %7, %cst_95 {dimension_numbers = #tpu.dot_dimension_numbers<[1], [0], [0], [1], [0, 0, 1, 1], [], []>} : vector<5x20xf32>, vector<20x512xf32>, vector<5x512xf32> -> vector<5x512xf32>
    %353 = arith.addf %351, %352 : vector<5x512xf32>
    %354 = vector.extract_strided_slice %353 {offsets = [0, 0], sizes = [5, 20], strides = [1, 1]} : vector<5x512xf32> to vector<5x20xf32>
    %355 = arith.negf %354 : vector<5x20xf32>
    %356 = math.exp %355 : vector<5x20xf32>
    %cst_96 = arith.constant 1.000000e+00 : f32
    %357 = vector.broadcast %cst_96 : f32 to vector<5x20xf32>
    %358 = arith.addf %357, %356 : vector<5x20xf32>
    %359 = arith.divf %357, %358 : vector<5x20xf32>
    %360 = vector.extract_strided_slice %353 {offsets = [0, 128], sizes = [5, 20], strides = [1, 1]} : vector<5x512xf32> to vector<5x20xf32>
    %361 = arith.negf %360 : vector<5x20xf32>
    %362 = math.exp %361 : vector<5x20xf32>
    %cst_97 = arith.constant 1.000000e+00 : f32
    %363 = vector.broadcast %cst_97 : f32 to vector<5x20xf32>
    %364 = arith.addf %363, %362 : vector<5x20xf32>
    %365 = arith.divf %363, %364 : vector<5x20xf32>
    %366 = vector.extract_strided_slice %353 {offsets = [0, 256], sizes = [5, 20], strides = [1, 1]} : vector<5x512xf32> to vector<5x20xf32>
    %367 = math.tanh %366 : vector<5x20xf32>
    %368 = vector.extract_strided_slice %353 {offsets = [0, 384], sizes = [5, 20], strides = [1, 1]} : vector<5x512xf32> to vector<5x20xf32>
    %369 = arith.negf %368 : vector<5x20xf32>
    %370 = math.exp %369 : vector<5x20xf32>
    %cst_98 = arith.constant 1.000000e+00 : f32
    %371 = vector.broadcast %cst_98 : f32 to vector<5x20xf32>
    %372 = arith.addf %371, %370 : vector<5x20xf32>
    %373 = arith.divf %371, %372 : vector<5x20xf32>
    %374 = arith.mulf %365, %345 : vector<5x20xf32>
    %375 = arith.mulf %359, %367 : vector<5x20xf32>
    %376 = arith.addf %374, %375 : vector<5x20xf32>
    %377 = math.tanh %376 : vector<5x20xf32>
    %378 = arith.mulf %373, %377 : vector<5x20xf32>
    %c11 = arith.constant 11 : index
    %c0_99 = arith.constant 0 : index
    %c0_100 = arith.constant 0 : index
    %379 = vector.load %arg6[%c11, %c0_99, %c0_100] : memref<18x5x20xf32, #tpu.memory_space<vmem>>, vector<1x5x20xf32>
    %380 = vector.shape_cast %379 : vector<1x5x20xf32> to vector<5x20xf32>
    %381 = vector.shape_cast %378 : vector<5x20xf32> to vector<1x5x20xf32>
    tpu.vector_store %arg6[%c11, %c0_99, %c0_100], %381 {strides = array<i32>} : memref<18x5x20xf32, #tpu.memory_space<vmem>>, vector<1x5x20xf32>,
    %c60 = arith.constant 60 : index
    %c0_101 = arith.constant 0 : index
    %382 = vector.load %arg9[%c60, %c0_101] : memref<90x512xf32, #tpu.memory_space<vmem>>, vector<5x512xf32>
    %cst_102 = arith.constant dense<0.000000e+00> : vector<5x512xf32>
    %383 = tpu.matmul %378, %7, %cst_102 {dimension_numbers = #tpu.dot_dimension_numbers<[1], [0], [0], [1], [0, 0, 1, 1], [], []>} : vector<5x20xf32>, vector<20x512xf32>, vector<5x512xf32> -> vector<5x512xf32>
    %384 = arith.addf %382, %383 : vector<5x512xf32>
    %385 = vector.extract_strided_slice %384 {offsets = [0, 0], sizes = [5, 20], strides = [1, 1]} : vector<5x512xf32> to vector<5x20xf32>
    %386 = arith.negf %385 : vector<5x20xf32>
    %387 = math.exp %386 : vector<5x20xf32>
    %cst_103 = arith.constant 1.000000e+00 : f32
    %388 = vector.broadcast %cst_103 : f32 to vector<5x20xf32>
    %389 = arith.addf %388, %387 : vector<5x20xf32>
    %390 = arith.divf %388, %389 : vector<5x20xf32>
    %391 = vector.extract_strided_slice %384 {offsets = [0, 128], sizes = [5, 20], strides = [1, 1]} : vector<5x512xf32> to vector<5x20xf32>
    %392 = arith.negf %391 : vector<5x20xf32>
    %393 = math.exp %392 : vector<5x20xf32>
    %cst_104 = arith.constant 1.000000e+00 : f32
    %394 = vector.broadcast %cst_104 : f32 to vector<5x20xf32>
    %395 = arith.addf %394, %393 : vector<5x20xf32>
    %396 = arith.divf %394, %395 : vector<5x20xf32>
    %397 = vector.extract_strided_slice %384 {offsets = [0, 256], sizes = [5, 20], strides = [1, 1]} : vector<5x512xf32> to vector<5x20xf32>
    %398 = math.tanh %397 : vector<5x20xf32>
    %399 = vector.extract_strided_slice %384 {offsets = [0, 384], sizes = [5, 20], strides = [1, 1]} : vector<5x512xf32> to vector<5x20xf32>
    %400 = arith.negf %399 : vector<5x20xf32>
    %401 = math.exp %400 : vector<5x20xf32>
    %cst_105 = arith.constant 1.000000e+00 : f32
    %402 = vector.broadcast %cst_105 : f32 to vector<5x20xf32>
    %403 = arith.addf %402, %401 : vector<5x20xf32>
    %404 = arith.divf %402, %403 : vector<5x20xf32>
    %405 = arith.mulf %396, %376 : vector<5x20xf32>
    %406 = arith.mulf %390, %398 : vector<5x20xf32>
    %407 = arith.addf %405, %406 : vector<5x20xf32>
    %408 = math.tanh %407 : vector<5x20xf32>
    %409 = arith.mulf %404, %408 : vector<5x20xf32>
    %c12 = arith.constant 12 : index
    %c0_106 = arith.constant 0 : index
    %c0_107 = arith.constant 0 : index
    %410 = vector.load %arg6[%c12, %c0_106, %c0_107] : memref<18x5x20xf32, #tpu.memory_space<vmem>>, vector<1x5x20xf32>
    %411 = vector.shape_cast %410 : vector<1x5x20xf32> to vector<5x20xf32>
    %412 = vector.shape_cast %409 : vector<5x20xf32> to vector<1x5x20xf32>
    tpu.vector_store %arg6[%c12, %c0_106, %c0_107], %412 {strides = array<i32>} : memref<18x5x20xf32, #tpu.memory_space<vmem>>, vector<1x5x20xf32>,
    %c65 = arith.constant 65 : index
    %c0_108 = arith.constant 0 : index
    %413 = vector.load %arg9[%c65, %c0_108] : memref<90x512xf32, #tpu.memory_space<vmem>>, vector<5x512xf32>
    %cst_109 = arith.constant dense<0.000000e+00> : vector<5x512xf32>
    %414 = tpu.matmul %409, %7, %cst_109 {dimension_numbers = #tpu.dot_dimension_numbers<[1], [0], [0], [1], [0, 0, 1, 1], [], []>} : vector<5x20xf32>, vector<20x512xf32>, vector<5x512xf32> -> vector<5x512xf32>
    %415 = arith.addf %413, %414 : vector<5x512xf32>
    %416 = vector.extract_strided_slice %415 {offsets = [0, 0], sizes = [5, 20], strides = [1, 1]} : vector<5x512xf32> to vector<5x20xf32>
    %417 = arith.negf %416 : vector<5x20xf32>
    %418 = math.exp %417 : vector<5x20xf32>
    %cst_110 = arith.constant 1.000000e+00 : f32
    %419 = vector.broadcast %cst_110 : f32 to vector<5x20xf32>
    %420 = arith.addf %419, %418 : vector<5x20xf32>
    %421 = arith.divf %419, %420 : vector<5x20xf32>
    %422 = vector.extract_strided_slice %415 {offsets = [0, 128], sizes = [5, 20], strides = [1, 1]} : vector<5x512xf32> to vector<5x20xf32>
    %423 = arith.negf %422 : vector<5x20xf32>
    %424 = math.exp %423 : vector<5x20xf32>
    %cst_111 = arith.constant 1.000000e+00 : f32
    %425 = vector.broadcast %cst_111 : f32 to vector<5x20xf32>
    %426 = arith.addf %425, %424 : vector<5x20xf32>
    %427 = arith.divf %425, %426 : vector<5x20xf32>
    %428 = vector.extract_strided_slice %415 {offsets = [0, 256], sizes = [5, 20], strides = [1, 1]} : vector<5x512xf32> to vector<5x20xf32>
    %429 = math.tanh %428 : vector<5x20xf32>
    %430 = vector.extract_strided_slice %415 {offsets = [0, 384], sizes = [5, 20], strides = [1, 1]} : vector<5x512xf32> to vector<5x20xf32>
    %431 = arith.negf %430 : vector<5x20xf32>
    %432 = math.exp %431 : vector<5x20xf32>
    %cst_112 = arith.constant 1.000000e+00 : f32
    %433 = vector.broadcast %cst_112 : f32 to vector<5x20xf32>
    %434 = arith.addf %433, %432 : vector<5x20xf32>
    %435 = arith.divf %433, %434 : vector<5x20xf32>
    %436 = arith.mulf %427, %407 : vector<5x20xf32>
    %437 = arith.mulf %421, %429 : vector<5x20xf32>
    %438 = arith.addf %436, %437 : vector<5x20xf32>
    %439 = math.tanh %438 : vector<5x20xf32>
    %440 = arith.mulf %435, %439 : vector<5x20xf32>
    %c13 = arith.constant 13 : index
    %c0_113 = arith.constant 0 : index
    %c0_114 = arith.constant 0 : index
    %441 = vector.load %arg6[%c13, %c0_113, %c0_114] : memref<18x5x20xf32, #tpu.memory_space<vmem>>, vector<1x5x20xf32>
    %442 = vector.shape_cast %441 : vector<1x5x20xf32> to vector<5x20xf32>
    %443 = vector.shape_cast %440 : vector<5x20xf32> to vector<1x5x20xf32>
    tpu.vector_store %arg6[%c13, %c0_113, %c0_114], %443 {strides = array<i32>} : memref<18x5x20xf32, #tpu.memory_space<vmem>>, vector<1x5x20xf32>,
    %c70 = arith.constant 70 : index
    %c0_115 = arith.constant 0 : index
    %444 = vector.load %arg9[%c70, %c0_115] : memref<90x512xf32, #tpu.memory_space<vmem>>, vector<5x512xf32>
    %cst_116 = arith.constant dense<0.000000e+00> : vector<5x512xf32>
    %445 = tpu.matmul %440, %7, %cst_116 {dimension_numbers = #tpu.dot_dimension_numbers<[1], [0], [0], [1], [0, 0, 1, 1], [], []>} : vector<5x20xf32>, vector<20x512xf32>, vector<5x512xf32> -> vector<5x512xf32>
    %446 = arith.addf %444, %445 : vector<5x512xf32>
    %447 = vector.extract_strided_slice %446 {offsets = [0, 0], sizes = [5, 20], strides = [1, 1]} : vector<5x512xf32> to vector<5x20xf32>
    %448 = arith.negf %447 : vector<5x20xf32>
    %449 = math.exp %448 : vector<5x20xf32>
    %cst_117 = arith.constant 1.000000e+00 : f32
    %450 = vector.broadcast %cst_117 : f32 to vector<5x20xf32>
    %451 = arith.addf %450, %449 : vector<5x20xf32>
    %452 = arith.divf %450, %451 : vector<5x20xf32>
    %453 = vector.extract_strided_slice %446 {offsets = [0, 128], sizes = [5, 20], strides = [1, 1]} : vector<5x512xf32> to vector<5x20xf32>
    %454 = arith.negf %453 : vector<5x20xf32>
    %455 = math.exp %454 : vector<5x20xf32>
    %cst_118 = arith.constant 1.000000e+00 : f32
    %456 = vector.broadcast %cst_118 : f32 to vector<5x20xf32>
    %457 = arith.addf %456, %455 : vector<5x20xf32>
    %458 = arith.divf %456, %457 : vector<5x20xf32>
    %459 = vector.extract_strided_slice %446 {offsets = [0, 256], sizes = [5, 20], strides = [1, 1]} : vector<5x512xf32> to vector<5x20xf32>
    %460 = math.tanh %459 : vector<5x20xf32>
    %461 = vector.extract_strided_slice %446 {offsets = [0, 384], sizes = [5, 20], strides = [1, 1]} : vector<5x512xf32> to vector<5x20xf32>
    %462 = arith.negf %461 : vector<5x20xf32>
    %463 = math.exp %462 : vector<5x20xf32>
    %cst_119 = arith.constant 1.000000e+00 : f32
    %464 = vector.broadcast %cst_119 : f32 to vector<5x20xf32>
    %465 = arith.addf %464, %463 : vector<5x20xf32>
    %466 = arith.divf %464, %465 : vector<5x20xf32>
    %467 = arith.mulf %458, %438 : vector<5x20xf32>
    %468 = arith.mulf %452, %460 : vector<5x20xf32>
    %469 = arith.addf %467, %468 : vector<5x20xf32>
    %470 = math.tanh %469 : vector<5x20xf32>
    %471 = arith.mulf %466, %470 : vector<5x20xf32>
    %c14 = arith.constant 14 : index
    %c0_120 = arith.constant 0 : index
    %c0_121 = arith.constant 0 : index
    %472 = vector.load %arg6[%c14, %c0_120, %c0_121] : memref<18x5x20xf32, #tpu.memory_space<vmem>>, vector<1x5x20xf32>
    %473 = vector.shape_cast %472 : vector<1x5x20xf32> to vector<5x20xf32>
    %474 = vector.shape_cast %471 : vector<5x20xf32> to vector<1x5x20xf32>
    tpu.vector_store %arg6[%c14, %c0_120, %c0_121], %474 {strides = array<i32>} : memref<18x5x20xf32, #tpu.memory_space<vmem>>, vector<1x5x20xf32>,
    %c75 = arith.constant 75 : index
    %c0_122 = arith.constant 0 : index
    %475 = vector.load %arg9[%c75, %c0_122] : memref<90x512xf32, #tpu.memory_space<vmem>>, vector<5x512xf32>
    %cst_123 = arith.constant dense<0.000000e+00> : vector<5x512xf32>
    %476 = tpu.matmul %471, %7, %cst_123 {dimension_numbers = #tpu.dot_dimension_numbers<[1], [0], [0], [1], [0, 0, 1, 1], [], []>} : vector<5x20xf32>, vector<20x512xf32>, vector<5x512xf32> -> vector<5x512xf32>
    %477 = arith.addf %475, %476 : vector<5x512xf32>
    %478 = vector.extract_strided_slice %477 {offsets = [0, 0], sizes = [5, 20], strides = [1, 1]} : vector<5x512xf32> to vector<5x20xf32>
    %479 = arith.negf %478 : vector<5x20xf32>
    %480 = math.exp %479 : vector<5x20xf32>
    %cst_124 = arith.constant 1.000000e+00 : f32
    %481 = vector.broadcast %cst_124 : f32 to vector<5x20xf32>
    %482 = arith.addf %481, %480 : vector<5x20xf32>
    %483 = arith.divf %481, %482 : vector<5x20xf32>
    %484 = vector.extract_strided_slice %477 {offsets = [0, 128], sizes = [5, 20], strides = [1, 1]} : vector<5x512xf32> to vector<5x20xf32>
    %485 = arith.negf %484 : vector<5x20xf32>
    %486 = math.exp %485 : vector<5x20xf32>
    %cst_125 = arith.constant 1.000000e+00 : f32
    %487 = vector.broadcast %cst_125 : f32 to vector<5x20xf32>
    %488 = arith.addf %487, %486 : vector<5x20xf32>
    %489 = arith.divf %487, %488 : vector<5x20xf32>
    %490 = vector.extract_strided_slice %477 {offsets = [0, 256], sizes = [5, 20], strides = [1, 1]} : vector<5x512xf32> to vector<5x20xf32>
    %491 = math.tanh %490 : vector<5x20xf32>
    %492 = vector.extract_strided_slice %477 {offsets = [0, 384], sizes = [5, 20], strides = [1, 1]} : vector<5x512xf32> to vector<5x20xf32>
    %493 = arith.negf %492 : vector<5x20xf32>
    %494 = math.exp %493 : vector<5x20xf32>
    %cst_126 = arith.constant 1.000000e+00 : f32
    %495 = vector.broadcast %cst_126 : f32 to vector<5x20xf32>
    %496 = arith.addf %495, %494 : vector<5x20xf32>
    %497 = arith.divf %495, %496 : vector<5x20xf32>
    %498 = arith.mulf %489, %469 : vector<5x20xf32>
    %499 = arith.mulf %483, %491 : vector<5x20xf32>
    %500 = arith.addf %498, %499 : vector<5x20xf32>
    %501 = math.tanh %500 : vector<5x20xf32>
    %502 = arith.mulf %497, %501 : vector<5x20xf32>
    %c15_127 = arith.constant 15 : index
    %c0_128 = arith.constant 0 : index
    %c0_129 = arith.constant 0 : index
    %503 = vector.load %arg6[%c15_127, %c0_128, %c0_129] : memref<18x5x20xf32, #tpu.memory_space<vmem>>, vector<1x5x20xf32>
    %504 = vector.shape_cast %503 : vector<1x5x20xf32> to vector<5x20xf32>
    %505 = vector.shape_cast %502 : vector<5x20xf32> to vector<1x5x20xf32>
    tpu.vector_store %arg6[%c15_127, %c0_128, %c0_129], %505 {strides = array<i32>} : memref<18x5x20xf32, #tpu.memory_space<vmem>>, vector<1x5x20xf32>,
    %c80 = arith.constant 80 : index
    %c0_130 = arith.constant 0 : index
    %506 = vector.load %arg9[%c80, %c0_130] : memref<90x512xf32, #tpu.memory_space<vmem>>, vector<5x512xf32>
    %cst_131 = arith.constant dense<0.000000e+00> : vector<5x512xf32>
    %507 = tpu.matmul %502, %7, %cst_131 {dimension_numbers = #tpu.dot_dimension_numbers<[1], [0], [0], [1], [0, 0, 1, 1], [], []>} : vector<5x20xf32>, vector<20x512xf32>, vector<5x512xf32> -> vector<5x512xf32>
    %508 = arith.addf %506, %507 : vector<5x512xf32>
    %509 = vector.extract_strided_slice %508 {offsets = [0, 0], sizes = [5, 20], strides = [1, 1]} : vector<5x512xf32> to vector<5x20xf32>
    %510 = arith.negf %509 : vector<5x20xf32>
    %511 = math.exp %510 : vector<5x20xf32>
    %cst_132 = arith.constant 1.000000e+00 : f32
    %512 = vector.broadcast %cst_132 : f32 to vector<5x20xf32>
    %513 = arith.addf %512, %511 : vector<5x20xf32>
    %514 = arith.divf %512, %513 : vector<5x20xf32>
    %515 = vector.extract_strided_slice %508 {offsets = [0, 128], sizes = [5, 20], strides = [1, 1]} : vector<5x512xf32> to vector<5x20xf32>
    %516 = arith.negf %515 : vector<5x20xf32>
    %517 = math.exp %516 : vector<5x20xf32>
    %cst_133 = arith.constant 1.000000e+00 : f32
    %518 = vector.broadcast %cst_133 : f32 to vector<5x20xf32>
    %519 = arith.addf %518, %517 : vector<5x20xf32>
    %520 = arith.divf %518, %519 : vector<5x20xf32>
    %521 = vector.extract_strided_slice %508 {offsets = [0, 256], sizes = [5, 20], strides = [1, 1]} : vector<5x512xf32> to vector<5x20xf32>
    %522 = math.tanh %521 : vector<5x20xf32>
    %523 = vector.extract_strided_slice %508 {offsets = [0, 384], sizes = [5, 20], strides = [1, 1]} : vector<5x512xf32> to vector<5x20xf32>
    %524 = arith.negf %523 : vector<5x20xf32>
    %525 = math.exp %524 : vector<5x20xf32>
    %cst_134 = arith.constant 1.000000e+00 : f32
    %526 = vector.broadcast %cst_134 : f32 to vector<5x20xf32>
    %527 = arith.addf %526, %525 : vector<5x20xf32>
    %528 = arith.divf %526, %527 : vector<5x20xf32>
    %529 = arith.mulf %520, %500 : vector<5x20xf32>
    %530 = arith.mulf %514, %522 : vector<5x20xf32>
    %531 = arith.addf %529, %530 : vector<5x20xf32>
    %532 = math.tanh %531 : vector<5x20xf32>
    %533 = arith.mulf %528, %532 : vector<5x20xf32>
    %c16 = arith.constant 16 : index
    %c0_135 = arith.constant 0 : index
    %c0_136 = arith.constant 0 : index
    %534 = vector.load %arg6[%c16, %c0_135, %c0_136] : memref<18x5x20xf32, #tpu.memory_space<vmem>>, vector<1x5x20xf32>
    %535 = vector.shape_cast %534 : vector<1x5x20xf32> to vector<5x20xf32>
    %536 = vector.shape_cast %533 : vector<5x20xf32> to vector<1x5x20xf32>
    tpu.vector_store %arg6[%c16, %c0_135, %c0_136], %536 {strides = array<i32>} : memref<18x5x20xf32, #tpu.memory_space<vmem>>, vector<1x5x20xf32>,
    %c85 = arith.constant 85 : index
    %c0_137 = arith.constant 0 : index
    %537 = vector.load %arg9[%c85, %c0_137] : memref<90x512xf32, #tpu.memory_space<vmem>>, vector<5x512xf32>
    %cst_138 = arith.constant dense<0.000000e+00> : vector<5x512xf32>
    %538 = tpu.matmul %533, %7, %cst_138 {dimension_numbers = #tpu.dot_dimension_numbers<[1], [0], [0], [1], [0, 0, 1, 1], [], []>} : vector<5x20xf32>, vector<20x512xf32>, vector<5x512xf32> -> vector<5x512xf32>
    %539 = arith.addf %537, %538 : vector<5x512xf32>
    %540 = vector.extract_strided_slice %539 {offsets = [0, 0], sizes = [5, 20], strides = [1, 1]} : vector<5x512xf32> to vector<5x20xf32>
    %541 = arith.negf %540 : vector<5x20xf32>
    %542 = math.exp %541 : vector<5x20xf32>
    %cst_139 = arith.constant 1.000000e+00 : f32
    %543 = vector.broadcast %cst_139 : f32 to vector<5x20xf32>
    %544 = arith.addf %543, %542 : vector<5x20xf32>
    %545 = arith.divf %543, %544 : vector<5x20xf32>
    %546 = vector.extract_strided_slice %539 {offsets = [0, 128], sizes = [5, 20], strides = [1, 1]} : vector<5x512xf32> to vector<5x20xf32>
    %547 = arith.negf %546 : vector<5x20xf32>
    %548 = math.exp %547 : vector<5x20xf32>
    %cst_140 = arith.constant 1.000000e+00 : f32
    %549 = vector.broadcast %cst_140 : f32 to vector<5x20xf32>
    %550 = arith.addf %549, %548 : vector<5x20xf32>
    %551 = arith.divf %549, %550 : vector<5x20xf32>
    %552 = vector.extract_strided_slice %539 {offsets = [0, 256], sizes = [5, 20], strides = [1, 1]} : vector<5x512xf32> to vector<5x20xf32>
    %553 = math.tanh %552 : vector<5x20xf32>
    %554 = vector.extract_strided_slice %539 {offsets = [0, 384], sizes = [5, 20], strides = [1, 1]} : vector<5x512xf32> to vector<5x20xf32>
    %555 = arith.negf %554 : vector<5x20xf32>
    %556 = math.exp %555 : vector<5x20xf32>
    %cst_141 = arith.constant 1.000000e+00 : f32
    %557 = vector.broadcast %cst_141 : f32 to vector<5x20xf32>
    %558 = arith.addf %557, %556 : vector<5x20xf32>
    %559 = arith.divf %557, %558 : vector<5x20xf32>
    %560 = arith.mulf %551, %531 : vector<5x20xf32>
    %561 = arith.mulf %545, %553 : vector<5x20xf32>
    %562 = arith.addf %560, %561 : vector<5x20xf32>
    %563 = math.tanh %562 : vector<5x20xf32>
    %564 = arith.mulf %559, %563 : vector<5x20xf32>
    %c17 = arith.constant 17 : index
    %c0_142 = arith.constant 0 : index
    %c0_143 = arith.constant 0 : index
    %565 = vector.load %arg6[%c17, %c0_142, %c0_143] : memref<18x5x20xf32, #tpu.memory_space<vmem>>, vector<1x5x20xf32>
    %566 = vector.shape_cast %565 : vector<1x5x20xf32> to vector<5x20xf32>
    %567 = vector.shape_cast %564 : vector<5x20xf32> to vector<1x5x20xf32>
    tpu.vector_store %arg6[%c17, %c0_142, %c0_143], %567 {strides = array<i32>} : memref<18x5x20xf32, #tpu.memory_space<vmem>>, vector<1x5x20xf32>,
    %c0_144 = arith.constant 0 : index
    %c0_145 = arith.constant 0 : index
    %c0_146 = arith.constant 0 : index
    %568 = vector.load %arg7[%c0_144, %c0_145, %c0_146] : memref<1x5x20xf32, #tpu.memory_space<vmem>>, vector<1x5x20xf32>
    %569 = vector.shape_cast %568 : vector<1x5x20xf32> to vector<5x20xf32>
    %570 = vector.shape_cast %564 : vector<5x20xf32> to vector<1x5x20xf32>
    tpu.vector_store %arg7[%c0_144, %c0_145, %c0_146], %570 {strides = array<i32>} : memref<1x5x20xf32, #tpu.memory_space<vmem>>, vector<1x5x20xf32>,
    %c0_147 = arith.constant 0 : index
    %c0_148 = arith.constant 0 : index
    %c0_149 = arith.constant 0 : index
    %571 = vector.load %arg8[%c0_147, %c0_148, %c0_149] : memref<1x5x20xf32, #tpu.memory_space<vmem>>, vector<1x5x20xf32>
    %572 = vector.shape_cast %571 : vector<1x5x20xf32> to vector<5x20xf32>
    %573 = vector.shape_cast %562 : vector<5x20xf32> to vector<1x5x20xf32>
    tpu.vector_store %arg8[%c0_147, %c0_148, %c0_149], %573 {strides = array<i32>} : memref<1x5x20xf32, #tpu.memory_space<vmem>>, vector<1x5x20xf32>,
    return
  }
}

</mosaic_0001>

<llo_original>
// kernel: run.1
$region0: #{run.1}
  #allocation0 [shape = 'u32[]', space=smem, size = 0x4, offset = 0x4, fixed_abs, tag = 'smem constant byte address 0x4 - core index']
  #allocation1 [shape = 'u32[72,128]{1,0:T(1,128)}', space=vmem, size = 0x9000, scoped, tag = 'internal scratch']
  #allocation2 [shape = 'f32[90,512]{1,0:T(8,128)}', space=vmem, size = 0x30000, scoped, tag = 'scratch operand']
  %s0 = inlined_call_operand.vmem [shape: f32[90,196], index: 0, kind: input, shape index: {}]
  %s1 = inlined_call_operand.vmem [shape: f32[5,20], index: 1, kind: input, shape index: {}]
  %s2 = inlined_call_operand.vmem [shape: f32[5,20], index: 2, kind: input, shape index: {}]
  %s3 = inlined_call_operand.vmem [shape: f32[196,512], index: 3, kind: input, shape index: {}]
  %s4 = inlined_call_operand.vmem [shape: f32[20,512], index: 4, kind: input, shape index: {}]
  %s5 = inlined_call_operand.vmem [shape: f32[1,512], index: 5, kind: input, shape index: {}]
  %s6 = inlined_call_operand.vmem [shape: f32[18,5,20], index: 6, kind: output, shape index: {0}]
  %s7 = inlined_call_operand.vmem [shape: f32[1,5,20], index: 7, kind: output, shape index: {1}]
  %s8 = inlined_call_operand.vmem [shape: f32[1,5,20], index: 8, kind: output, shape index: {2}]
  %9 = xla_tuple %s6, %s7, %s8
  %s10 = sld [smem:[#allocation0]]
  $region50: #{run.1} parent=0
    _
  %s12 = ssub.s32 1, %s10
  %s13 = scalar_select 0, %s12, %s10
  // Predicated region
  $region2: #{run.1} parent=0 // pred_check
    _
  $region3: #{run.1} parent=0 // pred_check_branch
    %15 = sbr.rel (0) target = $region5
  $region4: #{run.1} parent=0 // pred_region
    _
  $region5: #{run.1} parent=0 // pred_fallthru
    _
  // Predicated region
  $region6: #{run.1} parent=0 // pred_check
    _
  $region7: #{run.1} parent=0 // pred_check_branch
    %17 = sbr.rel (0) target = $region9
  $region8: #{run.1} parent=0 // pred_region
    _
  $region9: #{run.1} parent=0 // pred_fallthru
    _
  // Predicated region
  $region10: #{run.1} parent=0 // pred_check
    _
  $region11: #{run.1} parent=0 // pred_check_branch
    %19 = sbr.rel (0) target = $region13
  $region12: #{run.1} parent=0 // pred_region
    _
  $region13: #{run.1} parent=0 // pred_fallthru
    _
  // Predicated region
  $region14: #{run.1} parent=0 // pred_check
    _
  $region15: #{run.1} parent=0 // pred_check_branch
    %21 = sbr.rel (0) target = $region17
  $region16: #{run.1} parent=0 // pred_region
    _
  $region17: #{run.1} parent=0 // pred_fallthru
    _
  // Predicated region
  $region18: #{run.1} parent=0 // pred_check
    _
  $region19: #{run.1} parent=0 // pred_check_branch
    %23 = sbr.rel (0) target = $region21
  $region20: #{run.1} parent=0 // pred_region
    _
  $region21: #{run.1} parent=0 // pred_fallthru
    _
  // Predicated region
  $region22: #{run.1} parent=0 // pred_check
    _
  $region23: #{run.1} parent=0 // pred_check_branch
    %25 = sbr.rel (0) target = $region25
  $region24: #{run.1} parent=0 // pred_region
    _
  $region25: #{run.1} parent=0 // pred_fallthru
    _
  %v26 = vld [vmem:[%s0] sm:$0xff]
  %v27 = vld [vmem:[%s0 + $0x8] sm:$0xff]
  %v28 = vld [vmem:[%s0 + $0x10] sm:$0xff]
  %v29 = vld [vmem:[%s0 + $0x18] sm:$0xff]
  %v30 = vld [vmem:[%s0 + $0x20] sm:$0xff]
  %v31 = vld [vmem:[%s0 + $0x28] sm:$0xff]
  %v32 = vld [vmem:[%s0 + $0x30] sm:$0xff]
  %v33 = vld [vmem:[%s0 + $0x38] sm:$0xff]
  %v34 = vld [vmem:[%s0 + $0x40] sm:$0xff]
  %v35 = vld [vmem:[%s0 + $0x48] sm:$0xff]
  %v36 = vld [vmem:[%s0 + $0x50] sm:$0xff]
  %v37 = vld [vmem:[%s0 + $0x58] sm:$0xff]
  %v38 = vld [vmem:[%s0 + $0x60] sm:$0xff]
  %v39 = vld [vmem:[%s0 + $0x68] sm:$0xff]
  %v40 = vld [vmem:[%s0 + $0x70] sm:$0xff]
  %v41 = vld [vmem:[%s0 + $0x78] sm:$0xff]
  %v42 = vld [vmem:[%s0 + $0x80] sm:$0xff]
  %v43 = vld [vmem:[%s0 + $0x88] sm:$0xff]
  %v44 = vld [vmem:[%s0 + $0x90] sm:$0xff]
  %v45 = vld [vmem:[%s0 + $0x98] sm:$0xff]
  %v46 = vld [vmem:[%s0 + $0xa0] sm:$0xff]
  %v47 = vld [vmem:[%s0 + $0xa8] sm:$0xff]
  %v48 = vld [vmem:[%s0 + $0xb0] sm:$0x3]
  %v49 = vld [vmem:[%s0 + $0xb8] sm:$0x3]
  %v50 = vld [vmem:[%s3] sm:$0xff]
  %v51 = vld [vmem:[%s3 + $0x8] sm:$0xff]
  %v52 = vld [vmem:[%s3 + $0x10] sm:$0xff]
  %v53 = vld [vmem:[%s3 + $0x18] sm:$0xff]
  %v54 = vld [vmem:[%s3 + $0x20] sm:$0xff]
  %v55 = vld [vmem:[%s3 + $0x28] sm:$0xff]
  %v56 = vld [vmem:[%s3 + $0x30] sm:$0xff]
  %v57 = vld [vmem:[%s3 + $0x38] sm:$0xff]
  %v58 = vld [vmem:[%s3 + $0x40] sm:$0xff]
  %v59 = vld [vmem:[%s3 + $0x48] sm:$0xff]
  %v60 = vld [vmem:[%s3 + $0x50] sm:$0xff]
  %v61 = vld [vmem:[%s3 + $0x58] sm:$0xff]
  %v62 = vld [vmem:[%s3 + $0x60] sm:$0xff]
  %v63 = vld [vmem:[%s3 + $0x68] sm:$0xff]
  %v64 = vld [vmem:[%s3 + $0x70] sm:$0xff]
  %v65 = vld [vmem:[%s3 + $0x78] sm:$0xff]
  %v66 = vld [vmem:[%s3 + $0x80] sm:$0xff]
  %v67 = vld [vmem:[%s3 + $0x88] sm:$0xff]
  %v68 = vld [vmem:[%s3 + $0x90] sm:$0xff]
  %v69 = vld [vmem:[%s3 + $0x98] sm:$0xff]
  %v70 = vld [vmem:[%s3 + $0xa0] sm:$0xff]
  %v71 = vld [vmem:[%s3 + $0xa8] sm:$0xff]
  %v72 = vld [vmem:[%s3 + $0xb0] sm:$0xff]
  %v73 = vld [vmem:[%s3 + $0xb8] sm:$0xff]
  %v74 = vld [vmem:[%s3 + $0xc0] sm:$0xff]
  %v75 = vld [vmem:[%s3 + $0xc8] sm:$0xff]
  %v76 = vld [vmem:[%s3 + $0xd0] sm:$0xff]
  %v77 = vld [vmem:[%s3 + $0xd8] sm:$0xff]
  %v78 = vld [vmem:[%s3 + $0xe0] sm:$0xff]
  %v79 = vld [vmem:[%s3 + $0xe8] sm:$0xff]
  %v80 = vld [vmem:[%s3 + $0xf0] sm:$0xff]
  %v81 = vld [vmem:[%s3 + $0xf8] sm:$0xff]
  %v82 = vld [vmem:[%s3 + $0x100] sm:$0xff]
  %v83 = vld [vmem:[%s3 + $0x108] sm:$0xff]
  %v84 = vld [vmem:[%s3 + $0x110] sm:$0xff]
  %v85 = vld [vmem:[%s3 + $0x118] sm:$0xff]
  %v86 = vld [vmem:[%s3 + $0x120] sm:$0xff]
  %v87 = vld [vmem:[%s3 + $0x128] sm:$0xff]
  %v88 = vld [vmem:[%s3 + $0x130] sm:$0xff]
  %v89 = vld [vmem:[%s3 + $0x138] sm:$0xff]
  %v90 = vld [vmem:[%s3 + $0x140] sm:$0xff]
  %v91 = vld [vmem:[%s3 + $0x148] sm:$0xff]
  %v92 = vld [vmem:[%s3 + $0x150] sm:$0xff]
  %v93 = vld [vmem:[%s3 + $0x158] sm:$0xff]
  %v94 = vld [vmem:[%s3 + $0x160] sm:$0xff]
  %v95 = vld [vmem:[%s3 + $0x168] sm:$0xff]
  %v96 = vld [vmem:[%s3 + $0x170] sm:$0xff]
  %v97 = vld [vmem:[%s3 + $0x178] sm:$0xff]
  %v98 = vld [vmem:[%s3 + $0x180] sm:$0xff]
  %v99 = vld [vmem:[%s3 + $0x188] sm:$0xff]
  %v100 = vld [vmem:[%s3 + $0x190] sm:$0xff]
  %v101 = vld [vmem:[%s3 + $0x198] sm:$0xff]
  %v102 = vld [vmem:[%s3 + $0x1a0] sm:$0xff]
  %v103 = vld [vmem:[%s3 + $0x1a8] sm:$0xff]
  %v104 = vld [vmem:[%s3 + $0x1b0] sm:$0xff]
  %v105 = vld [vmem:[%s3 + $0x1b8] sm:$0xff]
  %v106 = vld [vmem:[%s3 + $0x1c0] sm:$0xff]
  %v107 = vld [vmem:[%s3 + $0x1c8] sm:$0xff]
  %v108 = vld [vmem:[%s3 + $0x1d0] sm:$0xff]
  %v109 = vld [vmem:[%s3 + $0x1d8] sm:$0xff]
  %v110 = vld [vmem:[%s3 + $0x1e0] sm:$0xff]
  %v111 = vld [vmem:[%s3 + $0x1e8] sm:$0xff]
  %v112 = vld [vmem:[%s3 + $0x1f0] sm:$0xff]
  %v113 = vld [vmem:[%s3 + $0x1f8] sm:$0xff]
  %v114 = vld [vmem:[%s3 + $0x200] sm:$0xff]
  %v115 = vld [vmem:[%s3 + $0x208] sm:$0xff]
  %v116 = vld [vmem:[%s3 + $0x210] sm:$0xff]
  %v117 = vld [vmem:[%s3 + $0x218] sm:$0xff]
  %v118 = vld [vmem:[%s3 + $0x220] sm:$0xff]
  %v119 = vld [vmem:[%s3 + $0x228] sm:$0xff]
  %v120 = vld [vmem:[%s3 + $0x230] sm:$0xff]
  %v121 = vld [vmem:[%s3 + $0x238] sm:$0xff]
  %v122 = vld [vmem:[%s3 + $0x240] sm:$0xff]
  %v123 = vld [vmem:[%s3 + $0x248] sm:$0xff]
  %v124 = vld [vmem:[%s3 + $0x250] sm:$0xff]
  %v125 = vld [vmem:[%s3 + $0x258] sm:$0xff]
  %v126 = vld [vmem:[%s3 + $0x260] sm:$0xff]
  %v127 = vld [vmem:[%s3 + $0x268] sm:$0xff]
  %v128 = vld [vmem:[%s3 + $0x270] sm:$0xff]
  %v129 = vld [vmem:[%s3 + $0x278] sm:$0xff]
  %v130 = vld [vmem:[%s3 + $0x280] sm:$0xff]
  %v131 = vld [vmem:[%s3 + $0x288] sm:$0xff]
  %v132 = vld [vmem:[%s3 + $0x290] sm:$0xff]
  %v133 = vld [vmem:[%s3 + $0x298] sm:$0xff]
  %v134 = vld [vmem:[%s3 + $0x2a0] sm:$0xff]
  %v135 = vld [vmem:[%s3 + $0x2a8] sm:$0xff]
  %v136 = vld [vmem:[%s3 + $0x2b0] sm:$0xff]
  %v137 = vld [vmem:[%s3 + $0x2b8] sm:$0xff]
  %v138 = vld [vmem:[%s3 + $0x2c0] sm:$0xff]
  %v139 = vld [vmem:[%s3 + $0x2c8] sm:$0xff]
  %v140 = vld [vmem:[%s3 + $0x2d0] sm:$0xff]
  %v141 = vld [vmem:[%s3 + $0x2d8] sm:$0xff]
  %v142 = vld [vmem:[%s3 + $0x2e0] sm:$0xff]
  %v143 = vld [vmem:[%s3 + $0x2e8] sm:$0xff]
  %v144 = vld [vmem:[%s3 + $0x2f0] sm:$0xff]
  %v145 = vld [vmem:[%s3 + $0x2f8] sm:$0xff]
  %v146 = vld [vmem:[%s3 + $0x300] sm:$0xf]
  %v147 = vld [vmem:[%s3 + $0x308] sm:$0xf]
  %v148 = vld [vmem:[%s3 + $0x310] sm:$0xf]
  %v149 = vld [vmem:[%s3 + $0x318] sm:$0xf]
  %v150 = vld [vmem:[%s5] sm:$0xf]
  %v152 = vperm.slane %v150, 0
  %v153 = vperm.slane %v150, 1
  %v154 = vperm.slane %v150, 2
  %v155 = vperm.slane %v150, 3
  %vm160 = vcmask 556032
  %v162 = vsel %vm160, %v27, 0
  %v165 = vsel %vm160, %v29, 0
  %v168 = vsel %vm160, %v31, 0
  %v171 = vsel %vm160, %v33, 0
  %v174 = vsel %vm160, %v35, 0
  %v177 = vsel %vm160, %v37, 0
  %v180 = vsel %vm160, %v39, 0
  %v183 = vsel %vm160, %v41, 0
  %v186 = vsel %vm160, %v43, 0
  %v189 = vsel %vm160, %v45, 0
  %v192 = vsel %vm160, %v47, 0
  %v195 = vsel %vm160, %v49, 0
  %vm197 = vcmask 1043456
  %v199 = vsel %vm197, %v146, 0
  %v202 = vsel %vm197, %v147, 0
  %v205 = vsel %vm197, %v148, 0
  %v208 = vsel %vm197, %v149, 0
  %210 = vmatpush.msra.mxu0 %v110
  %211 = vmatpush.msra.mxu0 %v106
  %212 = vmatpush.msra.mxu0 %v102
  %213 = vmatpush.msra.mxu0 %v98
  %214 = vmatpush.msra.mxu0 %v94
  %215 = vmatpush.msra.mxu0 %v90
  %216 = vmatpush.msra.mxu0 %v86
  %217 = vmatpush.msra.mxu0 %v82
  %218 = vmatpush.msra.mxu0 %v78
  %219 = vmatpush.msra.mxu0 %v74
  %220 = vmatpush.msra.mxu0 %v70
  %221 = vmatpush.msra.mxu0 %v66
  %222 = vmatpush.msra.mxu0 %v62
  %223 = vmatpush.msra.mxu0 %v58
  %224 = vmatpush.msra.mxu0 %v54
  %225 = vmatpush.msra.mxu0 %v50
  %226 = vmatmul.f32.gmra.mxu0 %v26
  %v227 = vpop.f32.mrf.mxu0
  %v228 = vadd.f32 %v152, %v227
  %229 = vmatmul.f32.gmra.mxu0 %v28
  %v230 = vpop.f32.mrf.mxu0
  %v231 = vadd.f32 %v152, %v230
  %232 = vmatmul.f32.gmra.mxu0 %v30
  %v233 = vpop.f32.mrf.mxu0
  %v234 = vadd.f32 %v152, %v233
  %235 = vmatmul.f32.gmra.mxu0 %v32
  %v236 = vpop.f32.mrf.mxu0
  %v237 = vadd.f32 %v152, %v236
  %238 = vmatmul.f32.gmra.mxu0 %v34
  %v239 = vpop.f32.mrf.mxu0
  %v240 = vadd.f32 %v152, %v239
  %241 = vmatmul.f32.gmra.mxu0 %v36
  %v242 = vpop.f32.mrf.mxu0
  %v243 = vadd.f32 %v152, %v242
  %244 = vmatmul.f32.gmra.mxu0 %v38
  %v245 = vpop.f32.mrf.mxu0
  %v246 = vadd.f32 %v152, %v245
  %247 = vmatmul.f32.gmra.mxu0 %v40
  %v248 = vpop.f32.mrf.mxu0
  %v249 = vadd.f32 %v152, %v248
  %250 = vmatmul.f32.gmra.mxu0 %v42
  %v251 = vpop.f32.mrf.mxu0
  %v252 = vadd.f32 %v152, %v251
  %253 = vmatmul.f32.gmra.mxu0 %v44
  %v254 = vpop.f32.mrf.mxu0
  %v255 = vadd.f32 %v152, %v254
  %256 = vmatmul.f32.gmra.mxu0 %v46
  %v257 = vpop.f32.mrf.mxu0
  %v258 = vadd.f32 %v152, %v257
  %259 = vmatmul.f32.gmra.mxu0 %v48
  %v260 = vpop.f32.mrf.mxu0
  %v261 = vadd.f32 %v152, %v260
  %262 = vdwg.mxu0
  %263 = vmatpush.msra.mxu0 0.0
  %264 = vmatpush.msra.mxu0 0.0
  %265 = vmatpush.msra.mxu0 0.0
  %266 = vmatpush.msra.mxu0 0.0
  %267 = vmatpush.msra.mxu0 0.0
  %268 = vmatpush.msra.mxu0 0.0
  %269 = vmatpush.msra.mxu0 0.0
  %270 = vmatpush.msra.mxu0 %v199
  %271 = vmatpush.msra.mxu0 %v142
  %272 = vmatpush.msra.mxu0 %v138
  %273 = vmatpush.msra.mxu0 %v134
  %274 = vmatpush.msra.mxu0 %v130
  %275 = vmatpush.msra.mxu0 %v126
  %276 = vmatpush.msra.mxu0 %v122
  %277 = vmatpush.msra.mxu0 %v118
  %278 = vmatpush.msra.mxu0 %v114
  %279 = vmatmul.f32.gmra.mxu0 %v162
  %v280 = vpop.f32.mrf.mxu0
  %v281 = vadd.f32 %v228, %v280
  %282 = vmatmul.f32.gmra.mxu0 %v165
  %v283 = vpop.f32.mrf.mxu0
  %v284 = vadd.f32 %v231, %v283
  %285 = vmatmul.f32.gmra.mxu0 %v168
  %v286 = vpop.f32.mrf.mxu0
  %v287 = vadd.f32 %v234, %v286
  %288 = vmatmul.f32.gmra.mxu0 %v171
  %v289 = vpop.f32.mrf.mxu0
  %v290 = vadd.f32 %v237, %v289
  %291 = vmatmul.f32.gmra.mxu0 %v174
  %v292 = vpop.f32.mrf.mxu0
  %v293 = vadd.f32 %v240, %v292
  %294 = vmatmul.f32.gmra.mxu0 %v177
  %v295 = vpop.f32.mrf.mxu0
  %v296 = vadd.f32 %v243, %v295
  %297 = vmatmul.f32.gmra.mxu0 %v180
  %v298 = vpop.f32.mrf.mxu0
  %v299 = vadd.f32 %v246, %v298
  %300 = vmatmul.f32.gmra.mxu0 %v183
  %v301 = vpop.f32.mrf.mxu0
  %v302 = vadd.f32 %v249, %v301
  %303 = vmatmul.f32.gmra.mxu0 %v186
  %v304 = vpop.f32.mrf.mxu0
  %v305 = vadd.f32 %v252, %v304
  %306 = vmatmul.f32.gmra.mxu0 %v189
  %v307 = vpop.f32.mrf.mxu0
  %v308 = vadd.f32 %v255, %v307
  %309 = vmatmul.f32.gmra.mxu0 %v192
  %v310 = vpop.f32.mrf.mxu0
  %v311 = vadd.f32 %v258, %v310
  %312 = vmatmul.f32.gmra.mxu0 %v195
  %v313 = vpop.f32.mrf.mxu0
  %v314 = vadd.f32 %v261, %v313
  %315 = vdwg.mxu0
  %316 = vmatpush.msra.mxu0 %v111
  %317 = vmatpush.msra.mxu0 %v107
  %318 = vmatpush.msra.mxu0 %v103
  %319 = vmatpush.msra.mxu0 %v99
  %320 = vmatpush.msra.mxu0 %v95
  %321 = vmatpush.msra.mxu0 %v91
  %322 = vmatpush.msra.mxu0 %v87
  %323 = vmatpush.msra.mxu0 %v83
  %324 = vmatpush.msra.mxu0 %v79
  %325 = vmatpush.msra.mxu0 %v75
  %326 = vmatpush.msra.mxu0 %v71
  %327 = vmatpush.msra.mxu0 %v67
  %328 = vmatpush.msra.mxu0 %v63
  %329 = vmatpush.msra.mxu0 %v59
  %330 = vmatpush.msra.mxu0 %v55
  %331 = vmatpush.msra.mxu0 %v51
  %332 = vmatmul.f32.gmra.mxu0 %v26
  %v333 = vpop.f32.mrf.mxu0
  %v334 = vadd.f32 %v153, %v333
  %335 = vmatmul.f32.gmra.mxu0 %v28
  %v336 = vpop.f32.mrf.mxu0
  %v337 = vadd.f32 %v153, %v336
  %338 = vmatmul.f32.gmra.mxu0 %v30
  %v339 = vpop.f32.mrf.mxu0
  %v340 = vadd.f32 %v153, %v339
  %341 = vmatmul.f32.gmra.mxu0 %v32
  %v342 = vpop.f32.mrf.mxu0
  %v343 = vadd.f32 %v153, %v342
  %344 = vmatmul.f32.gmra.mxu0 %v34
  %v345 = vpop.f32.mrf.mxu0
  %v346 = vadd.f32 %v153, %v345
  %347 = vmatmul.f32.gmra.mxu0 %v36
  %v348 = vpop.f32.mrf.mxu0
  %v349 = vadd.f32 %v153, %v348
  %350 = vmatmul.f32.gmra.mxu0 %v38
  %v351 = vpop.f32.mrf.mxu0
  %v352 = vadd.f32 %v153, %v351
  %353 = vmatmul.f32.gmra.mxu0 %v40
  %v354 = vpop.f32.mrf.mxu0
  %v355 = vadd.f32 %v153, %v354
  %356 = vmatmul.f32.gmra.mxu0 %v42
  %v357 = vpop.f32.mrf.mxu0
  %v358 = vadd.f32 %v153, %v357
  %359 = vmatmul.f32.gmra.mxu0 %v44
  %v360 = vpop.f32.mrf.mxu0
  %v361 = vadd.f32 %v153, %v360
  %362 = vmatmul.f32.gmra.mxu0 %v46
  %v363 = vpop.f32.mrf.mxu0
  %v364 = vadd.f32 %v153, %v363
  %365 = vmatmul.f32.gmra.mxu0 %v48
  %v366 = vpop.f32.mrf.mxu0
  %v367 = vadd.f32 %v153, %v366
  %368 = vdwg.mxu0
  %369 = vmatpush.msra.mxu0 0.0
  %370 = vmatpush.msra.mxu0 0.0
  %371 = vmatpush.msra.mxu0 0.0
  %372 = vmatpush.msra.mxu0 0.0
  %373 = vmatpush.msra.mxu0 0.0
  %374 = vmatpush.msra.mxu0 0.0
  %375 = vmatpush.msra.mxu0 0.0
  %376 = vmatpush.msra.mxu0 %v202
  %377 = vmatpush.msra.mxu0 %v143
  %378 = vmatpush.msra.mxu0 %v139
  %379 = vmatpush.msra.mxu0 %v135
  %380 = vmatpush.msra.mxu0 %v131
  %381 = vmatpush.msra.mxu0 %v127
  %382 = vmatpush.msra.mxu0 %v123
  %383 = vmatpush.msra.mxu0 %v119
  %384 = vmatpush.msra.mxu0 %v115
  %385 = vmatmul.f32.gmra.mxu0 %v162
  %v386 = vpop.f32.mrf.mxu0
  %v387 = vadd.f32 %v334, %v386
  %388 = vmatmul.f32.gmra.mxu0 %v165
  %v389 = vpop.f32.mrf.mxu0
  %v390 = vadd.f32 %v337, %v389
  %391 = vmatmul.f32.gmra.mxu0 %v168
  %v392 = vpop.f32.mrf.mxu0
  %v393 = vadd.f32 %v340, %v392
  %394 = vmatmul.f32.gmra.mxu0 %v171
  %v395 = vpop.f32.mrf.mxu0
  %v396 = vadd.f32 %v343, %v395
  %397 = vmatmul.f32.gmra.mxu0 %v174
  %v398 = vpop.f32.mrf.mxu0
  %v399 = vadd.f32 %v346, %v398
  %400 = vmatmul.f32.gmra.mxu0 %v177
  %v401 = vpop.f32.mrf.mxu0
  %v402 = vadd.f32 %v349, %v401
  %403 = vmatmul.f32.gmra.mxu0 %v180
  %v404 = vpop.f32.mrf.mxu0
  %v405 = vadd.f32 %v352, %v404
  %406 = vmatmul.f32.gmra.mxu0 %v183
  %v407 = vpop.f32.mrf.mxu0
  %v408 = vadd.f32 %v355, %v407
  %409 = vmatmul.f32.gmra.mxu0 %v186
  %v410 = vpop.f32.mrf.mxu0
  %v411 = vadd.f32 %v358, %v410
  %412 = vmatmul.f32.gmra.mxu0 %v189
  %v413 = vpop.f32.mrf.mxu0
  %v414 = vadd.f32 %v361, %v413
  %415 = vmatmul.f32.gmra.mxu0 %v192
  %v416 = vpop.f32.mrf.mxu0
  %v417 = vadd.f32 %v364, %v416
  %418 = vmatmul.f32.gmra.mxu0 %v195
  %v419 = vpop.f32.mrf.mxu0
  %v420 = vadd.f32 %v367, %v419
  %421 = vdwg.mxu0
  %422 = vmatpush.msra.mxu0 %v112
  %423 = vmatpush.msra.mxu0 %v108
  %424 = vmatpush.msra.mxu0 %v104
  %425 = vmatpush.msra.mxu0 %v100
  %426 = vmatpush.msra.mxu0 %v96
  %427 = vmatpush.msra.mxu0 %v92
  %428 = vmatpush.msra.mxu0 %v88
  %429 = vmatpush.msra.mxu0 %v84
  %430 = vmatpush.msra.mxu0 %v80
  %431 = vmatpush.msra.mxu0 %v76
  %432 = vmatpush.msra.mxu0 %v72
  %433 = vmatpush.msra.mxu0 %v68
  %434 = vmatpush.msra.mxu0 %v64
  %435 = vmatpush.msra.mxu0 %v60
  %436 = vmatpush.msra.mxu0 %v56
  %437 = vmatpush.msra.mxu0 %v52
  %438 = vmatmul.f32.gmra.mxu0 %v26
  %v439 = vpop.f32.mrf.mxu0
  %v440 = vadd.f32 %v154, %v439
  %441 = vmatmul.f32.gmra.mxu0 %v28
  %v442 = vpop.f32.mrf.mxu0
  %v443 = vadd.f32 %v154, %v442
  %444 = vmatmul.f32.gmra.mxu0 %v30
  %v445 = vpop.f32.mrf.mxu0
  %v446 = vadd.f32 %v154, %v445
  %447 = vmatmul.f32.gmra.mxu0 %v32
  %v448 = vpop.f32.mrf.mxu0
  %v449 = vadd.f32 %v154, %v448
  %450 = vmatmul.f32.gmra.mxu0 %v34
  %v451 = vpop.f32.mrf.mxu0
  %v452 = vadd.f32 %v154, %v451
  %453 = vmatmul.f32.gmra.mxu0 %v36
  %v454 = vpop.f32.mrf.mxu0
  %v455 = vadd.f32 %v154, %v454
  %456 = vmatmul.f32.gmra.mxu0 %v38
  %v457 = vpop.f32.mrf.mxu0
  %v458 = vadd.f32 %v154, %v457
  %459 = vmatmul.f32.gmra.mxu0 %v40
  %v460 = vpop.f32.mrf.mxu0
  %v461 = vadd.f32 %v154, %v460
  %462 = vmatmul.f32.gmra.mxu0 %v42
  %v463 = vpop.f32.mrf.mxu0
  %v464 = vadd.f32 %v154, %v463
  %465 = vmatmul.f32.gmra.mxu0 %v44
  %v466 = vpop.f32.mrf.mxu0
  %v467 = vadd.f32 %v154, %v466
  %468 = vmatmul.f32.gmra.mxu0 %v46
  %v469 = vpop.f32.mrf.mxu0
  %v470 = vadd.f32 %v154, %v469
  %471 = vmatmul.f32.gmra.mxu0 %v48
  %v472 = vpop.f32.mrf.mxu0
  %v473 = vadd.f32 %v154, %v472
  %474 = vdwg.mxu0
  %475 = vmatpush.msra.mxu0 0.0
  %476 = vmatpush.msra.mxu0 0.0
  %477 = vmatpush.msra.mxu0 0.0
  %478 = vmatpush.msra.mxu0 0.0
  %479 = vmatpush.msra.mxu0 0.0
  %480 = vmatpush.msra.mxu0 0.0
  %481 = vmatpush.msra.mxu0 0.0
  %482 = vmatpush.msra.mxu0 %v205
  %483 = vmatpush.msra.mxu0 %v144
  %484 = vmatpush.msra.mxu0 %v140
  %485 = vmatpush.msra.mxu0 %v136
  %486 = vmatpush.msra.mxu0 %v132
  %487 = vmatpush.msra.mxu0 %v128
  %488 = vmatpush.msra.mxu0 %v124
  %489 = vmatpush.msra.mxu0 %v120
  %490 = vmatpush.msra.mxu0 %v116
  %491 = vmatmul.f32.gmra.mxu0 %v162
  %v492 = vpop.f32.mrf.mxu0
  %v493 = vadd.f32 %v440, %v492
  %494 = vmatmul.f32.gmra.mxu0 %v165
  %v495 = vpop.f32.mrf.mxu0
  %v496 = vadd.f32 %v443, %v495
  %497 = vmatmul.f32.gmra.mxu0 %v168
  %v498 = vpop.f32.mrf.mxu0
  %v499 = vadd.f32 %v446, %v498
  %500 = vmatmul.f32.gmra.mxu0 %v171
  %v501 = vpop.f32.mrf.mxu0
  %v502 = vadd.f32 %v449, %v501
  %503 = vmatmul.f32.gmra.mxu0 %v174
  %v504 = vpop.f32.mrf.mxu0
  %v505 = vadd.f32 %v452, %v504
  %506 = vmatmul.f32.gmra.mxu0 %v177
  %v507 = vpop.f32.mrf.mxu0
  %v508 = vadd.f32 %v455, %v507
  %509 = vmatmul.f32.gmra.mxu0 %v180
  %v510 = vpop.f32.mrf.mxu0
  %v511 = vadd.f32 %v458, %v510
  %512 = vmatmul.f32.gmra.mxu0 %v183
  %v513 = vpop.f32.mrf.mxu0
  %v514 = vadd.f32 %v461, %v513
  %515 = vmatmul.f32.gmra.mxu0 %v186
  %v516 = vpop.f32.mrf.mxu0
  %v517 = vadd.f32 %v464, %v516
  %518 = vmatmul.f32.gmra.mxu0 %v189
  %v519 = vpop.f32.mrf.mxu0
  %v520 = vadd.f32 %v467, %v519
  %521 = vmatmul.f32.gmra.mxu0 %v192
  %v522 = vpop.f32.mrf.mxu0
  %v523 = vadd.f32 %v470, %v522
  %524 = vmatmul.f32.gmra.mxu0 %v195
  %v525 = vpop.f32.mrf.mxu0
  %v526 = vadd.f32 %v473, %v525
  %527 = vdwg.mxu0
  %528 = vmatpush.msra.mxu0 %v113
  %529 = vmatpush.msra.mxu0 %v109
  %530 = vmatpush.msra.mxu0 %v105
  %531 = vmatpush.msra.mxu0 %v101
  %532 = vmatpush.msra.mxu0 %v97
  %533 = vmatpush.msra.mxu0 %v93
  %534 = vmatpush.msra.mxu0 %v89
  %535 = vmatpush.msra.mxu0 %v85
  %536 = vmatpush.msra.mxu0 %v81
  %537 = vmatpush.msra.mxu0 %v77
  %538 = vmatpush.msra.mxu0 %v73
  %539 = vmatpush.msra.mxu0 %v69
  %540 = vmatpush.msra.mxu0 %v65
  %541 = vmatpush.msra.mxu0 %v61
  %542 = vmatpush.msra.mxu0 %v57
  %543 = vmatpush.msra.mxu0 %v53
  %544 = vmatmul.f32.gmra.mxu0 %v26
  %v545 = vpop.f32.mrf.mxu0
  %v546 = vadd.f32 %v155, %v545
  %547 = vmatmul.f32.gmra.mxu0 %v28
  %v548 = vpop.f32.mrf.mxu0
  %v549 = vadd.f32 %v155, %v548
  %550 = vmatmul.f32.gmra.mxu0 %v30
  %v551 = vpop.f32.mrf.mxu0
  %v552 = vadd.f32 %v155, %v551
  %553 = vmatmul.f32.gmra.mxu0 %v32
  %v554 = vpop.f32.mrf.mxu0
  %v555 = vadd.f32 %v155, %v554
  %556 = vmatmul.f32.gmra.mxu0 %v34
  %v557 = vpop.f32.mrf.mxu0
  %v558 = vadd.f32 %v155, %v557
  %559 = vmatmul.f32.gmra.mxu0 %v36
  %v560 = vpop.f32.mrf.mxu0
  %v561 = vadd.f32 %v155, %v560
  %562 = vmatmul.f32.gmra.mxu0 %v38
  %v563 = vpop.f32.mrf.mxu0
  %v564 = vadd.f32 %v155, %v563
  %565 = vmatmul.f32.gmra.mxu0 %v40
  %v566 = vpop.f32.mrf.mxu0
  %v567 = vadd.f32 %v155, %v566
  %568 = vmatmul.f32.gmra.mxu0 %v42
  %v569 = vpop.f32.mrf.mxu0
  %v570 = vadd.f32 %v155, %v569
  %571 = vmatmul.f32.gmra.mxu0 %v44
  %v572 = vpop.f32.mrf.mxu0
  %v573 = vadd.f32 %v155, %v572
  %574 = vmatmul.f32.gmra.mxu0 %v46
  %v575 = vpop.f32.mrf.mxu0
  %v576 = vadd.f32 %v155, %v575
  %577 = vmatmul.f32.gmra.mxu0 %v48
  %v578 = vpop.f32.mrf.mxu0
  %v579 = vadd.f32 %v155, %v578
  %580 = vdwg.mxu0
  %581 = vmatpush.msra.mxu0 0.0
  %582 = vmatpush.msra.mxu0 0.0
  %583 = vmatpush.msra.mxu0 0.0
  %584 = vmatpush.msra.mxu0 0.0
  %585 = vmatpush.msra.mxu0 0.0
  %586 = vmatpush.msra.mxu0 0.0
  %587 = vmatpush.msra.mxu0 0.0
  %588 = vmatpush.msra.mxu0 %v208
  %589 = vmatpush.msra.mxu0 %v145
  %590 = vmatpush.msra.mxu0 %v141
  %591 = vmatpush.msra.mxu0 %v137
  %592 = vmatpush.msra.mxu0 %v133
  %593 = vmatpush.msra.mxu0 %v129
  %594 = vmatpush.msra.mxu0 %v125
  %595 = vmatpush.msra.mxu0 %v121
  %596 = vmatpush.msra.mxu0 %v117
  %597 = vmatmul.f32.gmra.mxu0 %v162
  %v598 = vpop.f32.mrf.mxu0
  %v599 = vadd.f32 %v546, %v598
  %600 = vmatmul.f32.gmra.mxu0 %v165
  %v601 = vpop.f32.mrf.mxu0
  %v602 = vadd.f32 %v549, %v601
  %603 = vmatmul.f32.gmra.mxu0 %v168
  %v604 = vpop.f32.mrf.mxu0
  %v605 = vadd.f32 %v552, %v604
  %606 = vmatmul.f32.gmra.mxu0 %v171
  %v607 = vpop.f32.mrf.mxu0
  %v608 = vadd.f32 %v555, %v607
  %609 = vmatmul.f32.gmra.mxu0 %v174
  %v610 = vpop.f32.mrf.mxu0
  %v611 = vadd.f32 %v558, %v610
  %612 = vmatmul.f32.gmra.mxu0 %v177
  %v613 = vpop.f32.mrf.mxu0
  %v614 = vadd.f32 %v561, %v613
  %615 = vmatmul.f32.gmra.mxu0 %v180
  %v616 = vpop.f32.mrf.mxu0
  %v617 = vadd.f32 %v564, %v616
  %618 = vmatmul.f32.gmra.mxu0 %v183
  %v619 = vpop.f32.mrf.mxu0
  %v620 = vadd.f32 %v567, %v619
  %621 = vmatmul.f32.gmra.mxu0 %v186
  %v622 = vpop.f32.mrf.mxu0
  %v623 = vadd.f32 %v570, %v622
  %624 = vmatmul.f32.gmra.mxu0 %v189
  %v625 = vpop.f32.mrf.mxu0
  %v626 = vadd.f32 %v573, %v625
  %627 = vmatmul.f32.gmra.mxu0 %v192
  %v628 = vpop.f32.mrf.mxu0
  %v629 = vadd.f32 %v576, %v628
  %630 = vmatmul.f32.gmra.mxu0 %v195
  %v631 = vpop.f32.mrf.mxu0
  %v632 = vadd.f32 %v579, %v631
  %633 = vdwg.mxu0
  %634 = vst [vmem:[#allocation2] sm:$0xff] %v281
  %635 = vst [vmem:[#allocation2 + $0x8] sm:$0xff] %v387
  %636 = vst [vmem:[#allocation2 + $0x10] sm:$0xff] %v493
  %637 = vst [vmem:[#allocation2 + $0x18] sm:$0xff] %v599
  %638 = vst [vmem:[#allocation2 + $0x20] sm:$0xff] %v284
  %639 = vst [vmem:[#allocation2 + $0x28] sm:$0xff] %v390
  %640 = vst [vmem:[#allocation2 + $0x30] sm:$0xff] %v496
  %641 = vst [vmem:[#allocation2 + $0x38] sm:$0xff] %v602
  %642 = vst [vmem:[#allocation2 + $0x40] sm:$0xff] %v287
  %643 = vst [vmem:[#allocation2 + $0x48] sm:$0xff] %v393
  %644 = vst [vmem:[#allocation2 + $0x50] sm:$0xff] %v499
  %645 = vst [vmem:[#allocation2 + $0x58] sm:$0xff] %v605
  %646 = vst [vmem:[#allocation2 + $0x60] sm:$0xff] %v290
  %647 = vst [vmem:[#allocation2 + $0x68] sm:$0xff] %v396
  %648 = vst [vmem:[#allocation2 + $0x70] sm:$0xff] %v502
  %649 = vst [vmem:[#allocation2 + $0x78] sm:$0xff] %v608
  %650 = vst [vmem:[#allocation2 + $0x80] sm:$0xff] %v293
  %651 = vst [vmem:[#allocation2 + $0x88] sm:$0xff] %v399
  %652 = vst [vmem:[#allocation2 + $0x90] sm:$0xff] %v505
  %653 = vst [vmem:[#allocation2 + $0x98] sm:$0xff] %v611
  %654 = vst [vmem:[#allocation2 + $0xa0] sm:$0xff] %v296
  %655 = vst [vmem:[#allocation2 + $0xa8] sm:$0xff] %v402
  %656 = vst [vmem:[#allocation2 + $0xb0] sm:$0xff] %v508
  %657 = vst [vmem:[#allocation2 + $0xb8] sm:$0xff] %v614
  %658 = vst [vmem:[#allocation2 + $0xc0] sm:$0xff] %v299
  %659 = vst [vmem:[#allocation2 + $0xc8] sm:$0xff] %v405
  %660 = vst [vmem:[#allocation2 + $0xd0] sm:$0xff] %v511
  %661 = vst [vmem:[#allocation2 + $0xd8] sm:$0xff] %v617
  %662 = vst [vmem:[#allocation2 + $0xe0] sm:$0xff] %v302
  %663 = vst [vmem:[#allocation2 + $0xe8] sm:$0xff] %v408
  %664 = vst [vmem:[#allocation2 + $0xf0] sm:$0xff] %v514
  %665 = vst [vmem:[#allocation2 + $0xf8] sm:$0xff] %v620
  %666 = vst [vmem:[#allocation2 + $0x100] sm:$0xff] %v305
  %667 = vst [vmem:[#allocation2 + $0x108] sm:$0xff] %v411
  %668 = vst [vmem:[#allocation2 + $0x110] sm:$0xff] %v517
  %669 = vst [vmem:[#allocation2 + $0x118] sm:$0xff] %v623
  %670 = vst [vmem:[#allocation2 + $0x120] sm:$0xff] %v308
  %671 = vst [vmem:[#allocation2 + $0x128] sm:$0xff] %v414
  %672 = vst [vmem:[#allocation2 + $0x130] sm:$0xff] %v520
  %673 = vst [vmem:[#allocation2 + $0x138] sm:$0xff] %v626
  %674 = vst [vmem:[#allocation2 + $0x140] sm:$0xff] %v311
  %675 = vst [vmem:[#allocation2 + $0x148] sm:$0xff] %v417
  %676 = vst [vmem:[#allocation2 + $0x150] sm:$0xff] %v523
  %677 = vst [vmem:[#allocation2 + $0x158] sm:$0xff] %v629
  %678 = vst [vmem:[#allocation2 + $0x160] sm:$0x3] %v314
  %679 = vst [vmem:[#allocation2 + $0x168] sm:$0x3] %v420
  %680 = vst [vmem:[#allocation2 + $0x170] sm:$0x3] %v526
  %681 = vst [vmem:[#allocation2 + $0x178] sm:$0x3] %v632
  %v682 = vld [vmem:[%s4] sm:$0xff]
  %v683 = vld [vmem:[%s4 + $0x8] sm:$0xff]
  %v684 = vld [vmem:[%s4 + $0x10] sm:$0xff]
  %v685 = vld [vmem:[%s4 + $0x18] sm:$0xff]
  %v686 = vld [vmem:[%s4 + $0x20] sm:$0xff]
  %v687 = vld [vmem:[%s4 + $0x28] sm:$0xff]
  %v688 = vld [vmem:[%s4 + $0x30] sm:$0xff]
  %v689 = vld [vmem:[%s4 + $0x38] sm:$0xff]
  %v690 = vld [vmem:[%s4 + $0x40] sm:$0xf]
  %v691 = vld [vmem:[%s4 + $0x48] sm:$0xf]
  %v692 = vld [vmem:[%s4 + $0x50] sm:$0xf]
  %v693 = vld [vmem:[%s4 + $0x58] sm:$0xf]
  %v694 = vld [vmem:[%s1] sm:$0x1f]
  %v695 = vld [vmem:[%s2] sm:$0x1f]
  %v696 = vld [vmem:[#allocation2] sm:$0x1f]
  %v697 = vld [vmem:[#allocation2 + $0x8] sm:$0x1f]
  %v698 = vld [vmem:[#allocation2 + $0x10] sm:$0x1f]
  %v699 = vld [vmem:[#allocation2 + $0x18] sm:$0x1f]
  %vm700 = vcmask 162816
  %v702 = vsel %vm700, %v694, 0
  %v705 = vsel %vm197, %v690, 0
  %v708 = vsel %vm197, %v691, 0
  %v711 = vsel %vm197, %v692, 0
  %v714 = vsel %vm197, %v693, 0
  %716 = vmatpush.msra.mxu0 0.0
  %717 = vmatpush.msra.mxu0 0.0
  %718 = vmatpush.msra.mxu0 0.0
  %719 = vmatpush.msra.mxu0 0.0
  %720 = vmatpush.msra.mxu0 0.0
  %721 = vmatpush.msra.mxu0 0.0
  %722 = vmatpush.msra.mxu0 0.0
  %723 = vmatpush.msra.mxu0 0.0
  %724 = vmatpush.msra.mxu0 0.0
  %725 = vmatpush.msra.mxu0 0.0
  %726 = vmatpush.msra.mxu0 0.0
  %727 = vmatpush.msra.mxu0 0.0
  %728 = vmatpush.msra.mxu0 0.0
  %729 = vmatpush.msra.mxu0 %v705
  %730 = vmatpush.msra.mxu0 %v686
  %731 = vmatpush.msra.mxu0 %v682
  %732 = vmatmul.f32.gmra.mxu0 %v702
  %v733 = vpop.f32.mrf.mxu0
  %v734 = vadd.f32 0.0, %v733
  %735 = vdwg.mxu0
  %736 = vmatpush.msra.mxu0 0.0
  %737 = vmatpush.msra.mxu0 0.0
  %738 = vmatpush.msra.mxu0 0.0
  %739 = vmatpush.msra.mxu0 0.0
  %740 = vmatpush.msra.mxu0 0.0
  %741 = vmatpush.msra.mxu0 0.0
  %742 = vmatpush.msra.mxu0 0.0
  %743 = vmatpush.msra.mxu0 0.0
  %744 = vmatpush.msra.mxu0 0.0
  %745 = vmatpush.msra.mxu0 0.0
  %746 = vmatpush.msra.mxu0 0.0
  %747 = vmatpush.msra.mxu0 0.0
  %748 = vmatpush.msra.mxu0 0.0
  %749 = vmatpush.msra.mxu0 %v708
  %750 = vmatpush.msra.mxu0 %v687
  %751 = vmatpush.msra.mxu0 %v683
  %752 = vmatmul.f32.gmra.mxu0 %v702
  %v753 = vpop.f32.mrf.mxu0
  %v754 = vadd.f32 0.0, %v753
  %755 = vdwg.mxu0
  %756 = vmatpush.msra.mxu0 0.0
  %757 = vmatpush.msra.mxu0 0.0
  %758 = vmatpush.msra.mxu0 0.0
  %759 = vmatpush.msra.mxu0 0.0
  %760 = vmatpush.msra.mxu0 0.0
  %761 = vmatpush.msra.mxu0 0.0
  %762 = vmatpush.msra.mxu0 0.0
  %763 = vmatpush.msra.mxu0 0.0
  %764 = vmatpush.msra.mxu0 0.0
  %765 = vmatpush.msra.mxu0 0.0
  %766 = vmatpush.msra.mxu0 0.0
  %767 = vmatpush.msra.mxu0 0.0
  %768 = vmatpush.msra.mxu0 0.0
  %769 = vmatpush.msra.mxu0 %v711
  %770 = vmatpush.msra.mxu0 %v688
  %771 = vmatpush.msra.mxu0 %v684
  %772 = vmatmul.f32.gmra.mxu0 %v702
  %v773 = vpop.f32.mrf.mxu0
  %v774 = vadd.f32 0.0, %v773
  %775 = vdwg.mxu0
  %776 = vmatpush.msra.mxu0 0.0
  %777 = vmatpush.msra.mxu0 0.0
  %778 = vmatpush.msra.mxu0 0.0
  %779 = vmatpush.msra.mxu0 0.0
  %780 = vmatpush.msra.mxu0 0.0
  %781 = vmatpush.msra.mxu0 0.0
  %782 = vmatpush.msra.mxu0 0.0
  %783 = vmatpush.msra.mxu0 0.0
  %784 = vmatpush.msra.mxu0 0.0
  %785 = vmatpush.msra.mxu0 0.0
  %786 = vmatpush.msra.mxu0 0.0
  %787 = vmatpush.msra.mxu0 0.0
  %788 = vmatpush.msra.mxu0 0.0
  %789 = vmatpush.msra.mxu0 %v714
  %790 = vmatpush.msra.mxu0 %v689
  %791 = vmatpush.msra.mxu0 %v685
  %792 = vmatmul.f32.gmra.mxu0 %v702
  %v793 = vpop.f32.mrf.mxu0
  %v794 = vadd.f32 0.0, %v793
  %795 = vdwg.mxu0
  %v796 = vadd.f32 %v696, %v734
  %v797 = vadd.f32 %v697, %v754
  %v798 = vadd.f32 %v698, %v774
  %v799 = vadd.f32 %v699, %v794
  %v800 = vxor.u32 %v796, 2147483648
  %v801 = vmul.f32 %v800, 1.442695
  %v802 = vpow.pop %v801
  %v803 = vadd.f32 %v802, 1.0
  %v804 = vrcp.pop %v803
  %v805 = vmul.f32 %v803, %v804
  %v806 = vsub.f32 1.0, %v805
  %v807 = vmul.f32 %v804, %v806
  %v808 = vadd.f32 %v804, %v807
  %vm809 = vweird.f32 %v803
  %vm810 = vweird.f32 %v804
  %vm811 = vmor %vm809, %vm810
  %v812 = vsel %vm811, %v804, %v808
  %v813 = vand.u32 2147483647, %v803
  %vm814 = vcmp.eq.f32.partialorder %v813, 8.507059e+37
  %v815 = vand.u32 %v803, 2147483648
  %v816 = vor.u32 1.1754944e-38, %v815
  %v817 = vsel %vm814, %v816, %v812
  %v818 = vmul.f32 1.0, %v817
  %v819 = vxor.u32 %v797, 2147483648
  %v820 = vmul.f32 %v819, 1.442695
  %v821 = vpow.pop %v820
  %v822 = vadd.f32 %v821, 1.0
  %v823 = vrcp.pop %v822
  %v824 = vmul.f32 %v822, %v823
  %v825 = vsub.f32 1.0, %v824
  %v826 = vmul.f32 %v823, %v825
  %v827 = vadd.f32 %v823, %v826
  %vm828 = vweird.f32 %v822
  %vm829 = vweird.f32 %v823
  %vm830 = vmor %vm828, %vm829
  %v831 = vsel %vm830, %v823, %v827
  %v832 = vand.u32 2147483647, %v822
  %vm833 = vcmp.eq.f32.partialorder %v832, 8.507059e+37
  %v834 = vand.u32 %v822, 2147483648
  %v835 = vor.u32 1.1754944e-38, %v834
  %v836 = vsel %vm833, %v835, %v831
  %v837 = vmul.f32 1.0, %v836
  %v838 = vtanh.pop %v798
  %v839 = vxor.u32 %v799, 2147483648
  %v840 = vmul.f32 %v839, 1.442695
  %v841 = vpow.pop %v840
  %v842 = vadd.f32 %v841, 1.0
  %v843 = vrcp.pop %v842
  %v844 = vmul.f32 %v842, %v843
  %v845 = vsub.f32 1.0, %v844
  %v846 = vmul.f32 %v843, %v845
  %v847 = vadd.f32 %v843, %v846
  %vm848 = vweird.f32 %v842
  %vm849 = vweird.f32 %v843
  %vm850 = vmor %vm848, %vm849
  %v851 = vsel %vm850, %v843, %v847
  %v852 = vand.u32 2147483647, %v842
  %vm853 = vcmp.eq.f32.partialorder %v852, 8.507059e+37
  %v854 = vand.u32 %v842, 2147483648
  %v855 = vor.u32 1.1754944e-38, %v854
  %v856 = vsel %vm853, %v855, %v851
  %v857 = vmul.f32 1.0, %v856
  %v858 = vmul.f32 %v837, %v695
  %v859 = vmul.f32 %v818, %v838
  %v860 = vadd.f32 %v858, %v859
  %v861 = vtanh.pop %v860
  %v862 = vmul.f32 %v857, %v861
  %vm863 = vcmask 159744
  %864 = vst.msk [vmem:[%s6] sm:$0x1f] %vm863, %v862
  %v865 = vld [vmem:[#allocation2] sm:$0xe0]
  %v866 = vld [vmem:[#allocation2 + $0x8] sm:$0xe0]
  %v867 = vld [vmem:[#allocation2 + $0x10] sm:$0xe0]
  %v868 = vld [vmem:[#allocation2 + $0x18] sm:$0xe0]
  %v869 = vld [vmem:[#allocation2 + $0x20] sm:$0x3]
  %v870 = vld [vmem:[#allocation2 + $0x28] sm:$0x3]
  %v871 = vld [vmem:[#allocation2 + $0x30] sm:$0x3]
  %v872 = vld [vmem:[#allocation2 + $0x38] sm:$0x3]
  %v874 = vsel %vm700, %v862, 0
  %876 = vmatpush.msra.mxu0 0.0
  %877 = vmatpush.msra.mxu0 0.0
  %878 = vmatpush.msra.mxu0 0.0
  %879 = vmatpush.msra.mxu0 0.0
  %880 = vmatpush.msra.mxu0 0.0
  %881 = vmatpush.msra.mxu0 0.0
  %882 = vmatpush.msra.mxu0 0.0
  %883 = vmatpush.msra.mxu0 0.0
  %884 = vmatpush.msra.mxu0 0.0
  %885 = vmatpush.msra.mxu0 0.0
  %886 = vmatpush.msra.mxu0 0.0
  %887 = vmatpush.msra.mxu0 0.0
  %888 = vmatpush.msra.mxu0 0.0
  %889 = vmatpush.msra.mxu0 %v705
  %890 = vmatpush.msra.mxu0 %v686
  %891 = vmatpush.msra.mxu0 %v682
  %892 = vmatmul.f32.gmra.mxu0 %v874
  %v893 = vpop.f32.mrf.mxu0
  %v894 = vadd.f32 0.0, %v893
  %895 = vdwg.mxu0
  %896 = vmatpush.msra.mxu0 0.0
  %897 = vmatpush.msra.mxu0 0.0
  %898 = vmatpush.msra.mxu0 0.0
  %899 = vmatpush.msra.mxu0 0.0
  %900 = vmatpush.msra.mxu0 0.0
  %901 = vmatpush.msra.mxu0 0.0
  %902 = vmatpush.msra.mxu0 0.0
  %903 = vmatpush.msra.mxu0 0.0
  %904 = vmatpush.msra.mxu0 0.0
  %905 = vmatpush.msra.mxu0 0.0
  %906 = vmatpush.msra.mxu0 0.0
  %907 = vmatpush.msra.mxu0 0.0
  %908 = vmatpush.msra.mxu0 0.0
  %909 = vmatpush.msra.mxu0 %v708
  %910 = vmatpush.msra.mxu0 %v687
  %911 = vmatpush.msra.mxu0 %v683
  %912 = vmatmul.f32.gmra.mxu0 %v874
  %v913 = vpop.f32.mrf.mxu0
  %v914 = vadd.f32 0.0, %v913
  %915 = vdwg.mxu0
  %916 = vmatpush.msra.mxu0 0.0
  %917 = vmatpush.msra.mxu0 0.0
  %918 = vmatpush.msra.mxu0 0.0
  %919 = vmatpush.msra.mxu0 0.0
  %920 = vmatpush.msra.mxu0 0.0
  %921 = vmatpush.msra.mxu0 0.0
  %922 = vmatpush.msra.mxu0 0.0
  %923 = vmatpush.msra.mxu0 0.0
  %924 = vmatpush.msra.mxu0 0.0
  %925 = vmatpush.msra.mxu0 0.0
  %926 = vmatpush.msra.mxu0 0.0
  %927 = vmatpush.msra.mxu0 0.0
  %928 = vmatpush.msra.mxu0 0.0
  %929 = vmatpush.msra.mxu0 %v711
  %930 = vmatpush.msra.mxu0 %v688
  %931 = vmatpush.msra.mxu0 %v684
  %932 = vmatmul.f32.gmra.mxu0 %v874
  %v933 = vpop.f32.mrf.mxu0
  %v934 = vadd.f32 0.0, %v933
  %935 = vdwg.mxu0
  %936 = vmatpush.msra.mxu0 0.0
  %937 = vmatpush.msra.mxu0 0.0
  %938 = vmatpush.msra.mxu0 0.0
  %939 = vmatpush.msra.mxu0 0.0
  %940 = vmatpush.msra.mxu0 0.0
  %941 = vmatpush.msra.mxu0 0.0
  %942 = vmatpush.msra.mxu0 0.0
  %943 = vmatpush.msra.mxu0 0.0
  %944 = vmatpush.msra.mxu0 0.0
  %945 = vmatpush.msra.mxu0 0.0
  %946 = vmatpush.msra.mxu0 0.0
  %947 = vmatpush.msra.mxu0 0.0
  %948 = vmatpush.msra.mxu0 0.0
  %949 = vmatpush.msra.mxu0 %v714
  %950 = vmatpush.msra.mxu0 %v689
  %951 = vmatpush.msra.mxu0 %v685
  %952 = vmatmul.f32.gmra.mxu0 %v874
  %v953 = vpop.f32.mrf.mxu0
  %v954 = vadd.f32 0.0, %v953
  %955 = vdwg.mxu0
  %v960 = vrot.slane %v894, 3
  %v961 = vrot.slane %v914, 3
  %v962 = vrot.slane %v934, 3
  %v963 = vrot.slane %v954, 3
  %v968 = vadd.f32 %v865, %v960
  %v969 = vadd.f32 %v866, %v961
  %v970 = vadd.f32 %v867, %v962
  %v971 = vadd.f32 %v868, %v963
  %v972 = vadd.f32 %v869, %v960
  %v973 = vadd.f32 %v870, %v961
  %v974 = vadd.f32 %v871, %v962
  %v975 = vadd.f32 %v872, %v963
  %v976 = vxor.u32 %v968, 2147483648
  %v977 = vxor.u32 %v972, 2147483648
  %v978 = vmul.f32 %v976, 1.442695
  %v979 = vpow.pop %v978
  %v980 = vmul.f32 %v977, 1.442695
  %v981 = vpow.pop %v980
  %v982 = vadd.f32 %v979, 1.0
  %v983 = vadd.f32 %v981, 1.0
  %v984 = vrcp.pop %v982
  %v985 = vmul.f32 %v982, %v984
  %v986 = vsub.f32 1.0, %v985
  %v987 = vmul.f32 %v984, %v986
  %v988 = vadd.f32 %v984, %v987
  %vm989 = vweird.f32 %v982
  %vm990 = vweird.f32 %v984
  %vm991 = vmor %vm989, %vm990
  %v992 = vsel %vm991, %v984, %v988
  %v993 = vand.u32 2147483647, %v982
  %vm994 = vcmp.eq.f32.partialorder %v993, 8.507059e+37
  %v995 = vand.u32 %v982, 2147483648
  %v996 = vor.u32 1.1754944e-38, %v995
  %v997 = vsel %vm994, %v996, %v992
  %v998 = vmul.f32 1.0, %v997
  %v999 = vrcp.pop %v983
  %v1000 = vmul.f32 %v983, %v999
  %v1001 = vsub.f32 1.0, %v1000
  %v1002 = vmul.f32 %v999, %v1001
  %v1003 = vadd.f32 %v999, %v1002
  %vm1004 = vweird.f32 %v983
  %vm1005 = vweird.f32 %v999
  %vm1006 = vmor %vm1004, %vm1005
  %v1007 = vsel %vm1006, %v999, %v1003
  %v1008 = vand.u32 2147483647, %v983
  %vm1009 = vcmp.eq.f32.partialorder %v1008, 8.507059e+37
  %v1010 = vand.u32 %v983, 2147483648
  %v1011 = vor.u32 1.1754944e-38, %v1010
  %v1012 = vsel %vm1009, %v1011, %v1007
  %v1013 = vmul.f32 1.0, %v1012
  %v1014 = vxor.u32 %v969, 2147483648
  %v1015 = vxor.u32 %v973, 2147483648
  %v1016 = vmul.f32 %v1014, 1.442695
  %v1017 = vpow.pop %v1016
  %v1018 = vmul.f32 %v1015, 1.442695
  %v1019 = vpow.pop %v1018
  %v1020 = vadd.f32 %v1017, 1.0
  %v1021 = vadd.f32 %v1019, 1.0
  %v1022 = vrcp.pop %v1020
  %v1023 = vmul.f32 %v1020, %v1022
  %v1024 = vsub.f32 1.0, %v1023
  %v1025 = vmul.f32 %v1022, %v1024
  %v1026 = vadd.f32 %v1022, %v1025
  %vm1027 = vweird.f32 %v1020
  %vm1028 = vweird.f32 %v1022
  %vm1029 = vmor %vm1027, %vm1028
  %v1030 = vsel %vm1029, %v1022, %v1026
  %v1031 = vand.u32 2147483647, %v1020
  %vm1032 = vcmp.eq.f32.partialorder %v1031, 8.507059e+37
  %v1033 = vand.u32 %v1020, 2147483648
  %v1034 = vor.u32 1.1754944e-38, %v1033
  %v1035 = vsel %vm1032, %v1034, %v1030
  %v1036 = vmul.f32 1.0, %v1035
  %v1037 = vrcp.pop %v1021
  %v1038 = vmul.f32 %v1021, %v1037
  %v1039 = vsub.f32 1.0, %v1038
  %v1040 = vmul.f32 %v1037, %v1039
  %v1041 = vadd.f32 %v1037, %v1040
  %vm1042 = vweird.f32 %v1021
  %vm1043 = vweird.f32 %v1037
  %vm1044 = vmor %vm1042, %vm1043
  %v1045 = vsel %vm1044, %v1037, %v1041
  %v1046 = vand.u32 2147483647, %v1021
  %vm1047 = vcmp.eq.f32.partialorder %v1046, 8.507059e+37
  %v1048 = vand.u32 %v1021, 2147483648
  %v1049 = vor.u32 1.1754944e-38, %v1048
  %v1050 = vsel %vm1047, %v1049, %v1045
  %v1051 = vmul.f32 1.0, %v1050
  %v1052 = vtanh.pop %v970
  %v1053 = vtanh.pop %v974
  %v1054 = vxor.u32 %v971, 2147483648
  %v1055 = vxor.u32 %v975, 2147483648
  %v1056 = vmul.f32 %v1054, 1.442695
  %v1057 = vpow.pop %v1056
  %v1058 = vmul.f32 %v1055, 1.442695
  %v1059 = vpow.pop %v1058
  %v1060 = vadd.f32 %v1057, 1.0
  %v1061 = vadd.f32 %v1059, 1.0
  %v1062 = vrcp.pop %v1060
  %v1063 = vmul.f32 %v1060, %v1062
  %v1064 = vsub.f32 1.0, %v1063
  %v1065 = vmul.f32 %v1062, %v1064
  %v1066 = vadd.f32 %v1062, %v1065
  %vm1067 = vweird.f32 %v1060
  %vm1068 = vweird.f32 %v1062
  %vm1069 = vmor %vm1067, %vm1068
  %v1070 = vsel %vm1069, %v1062, %v1066
  %v1071 = vand.u32 2147483647, %v1060
  %vm1072 = vcmp.eq.f32.partialorder %v1071, 8.507059e+37
  %v1073 = vand.u32 %v1060, 2147483648
  %v1074 = vor.u32 1.1754944e-38, %v1073
  %v1075 = vsel %vm1072, %v1074, %v1070
  %v1076 = vmul.f32 1.0, %v1075
  %v1077 = vrcp.pop %v1061
  %v1078 = vmul.f32 %v1061, %v1077
  %v1079 = vsub.f32 1.0, %v1078
  %v1080 = vmul.f32 %v1077, %v1079
  %v1081 = vadd.f32 %v1077, %v1080
  %vm1082 = vweird.f32 %v1061
  %vm1083 = vweird.f32 %v1077
  %vm1084 = vmor %vm1082, %vm1083
  %v1085 = vsel %vm1084, %v1077, %v1081
  %v1086 = vand.u32 2147483647, %v1061
  %vm1087 = vcmp.eq.f32.partialorder %v1086, 8.507059e+37
  %v1088 = vand.u32 %v1061, 2147483648
  %v1089 = vor.u32 1.1754944e-38, %v1088
  %v1090 = vsel %vm1087, %v1089, %v1085
  %v1091 = vmul.f32 1.0, %v1090
  %v1093 = vrot.slane %v860, 3
  %v1095 = vmul.f32 %v1036, %v1093
  %v1096 = vmul.f32 %v1051, %v1093
  %v1097 = vmul.f32 %v998, %v1052
  %v1098 = vmul.f32 %v1013, %v1053
  %v1099 = vadd.f32 %v1095, %v1097
  %v1100 = vadd.f32 %v1096, %v1098
  %v1101 = vtanh.pop %v1099
  %v1102 = vtanh.pop %v1100
  %v1103 = vmul.f32 %v1076, %v1101
  %v1104 = vmul.f32 %v1091, %v1102
  %s1105 = scalar_lea.vmem %s6, 8
  %vm1106 = vcmask 162821
  %1107 = vst.msk [vmem:[%s1105 - $0x5] sm:$0xe0] %vm1106, %v1103
  %vm1108 = vcmask 156672
  %1109 = vst.msk [vmem:[%s1105 + $0x3] sm:$0x3] %vm1108, %v1104
  %v1110 = vld [vmem:[#allocation2 + $0x20] sm:$0x7c]
  %v1111 = vld [vmem:[#allocation2 + $0x28] sm:$0x7c]
  %v1112 = vld [vmem:[#allocation2 + $0x30] sm:$0x7c]
  %v1113 = vld [vmem:[#allocation2 + $0x38] sm:$0x7c]
  %vm1116 = vcmask 1042432
  %v1117 = vrot.slane %v1103, 5
  %v1118 = vrot.slane %v1104, 5
  %v1119 = vsel %vm1116, %v1117, %v1118
  %v1120 = vsel %vm700, %v1119, 0
  %1122 = vmatpush.msra.mxu0 0.0
  %1123 = vmatpush.msra.mxu0 0.0
  %1124 = vmatpush.msra.mxu0 0.0
  %1125 = vmatpush.msra.mxu0 0.0
  %1126 = vmatpush.msra.mxu0 0.0
  %1127 = vmatpush.msra.mxu0 0.0
  %1128 = vmatpush.msra.mxu0 0.0
  %1129 = vmatpush.msra.mxu0 0.0
  %1130 = vmatpush.msra.mxu0 0.0
  %1131 = vmatpush.msra.mxu0 0.0
  %1132 = vmatpush.msra.mxu0 0.0
  %1133 = vmatpush.msra.mxu0 0.0
  %1134 = vmatpush.msra.mxu0 0.0
  %1135 = vmatpush.msra.mxu0 %v705
  %1136 = vmatpush.msra.mxu0 %v686
  %1137 = vmatpush.msra.mxu0 %v682
  %1138 = vmatmul.f32.gmra.mxu0 %v1120
  %v1139 = vpop.f32.mrf.mxu0
  %v1140 = vadd.f32 0.0, %v1139
  %1141 = vdwg.mxu0
  %1142 = vmatpush.msra.mxu0 0.0
  %1143 = vmatpush.msra.mxu0 0.0
  %1144 = vmatpush.msra.mxu0 0.0
  %1145 = vmatpush.msra.mxu0 0.0
  %1146 = vmatpush.msra.mxu0 0.0
  %1147 = vmatpush.msra.mxu0 0.0
  %1148 = vmatpush.msra.mxu0 0.0
  %1149 = vmatpush.msra.mxu0 0.0
  %1150 = vmatpush.msra.mxu0 0.0
  %1151 = vmatpush.msra.mxu0 0.0
  %1152 = vmatpush.msra.mxu0 0.0
  %1153 = vmatpush.msra.mxu0 0.0
  %1154 = vmatpush.msra.mxu0 0.0
  %1155 = vmatpush.msra.mxu0 %v708
  %1156 = vmatpush.msra.mxu0 %v687
  %1157 = vmatpush.msra.mxu0 %v683
  %1158 = vmatmul.f32.gmra.mxu0 %v1120
  %v1159 = vpop.f32.mrf.mxu0
  %v1160 = vadd.f32 0.0, %v1159
  %1161 = vdwg.mxu0
  %1162 = vmatpush.msra.mxu0 0.0
  %1163 = vmatpush.msra.mxu0 0.0
  %1164 = vmatpush.msra.mxu0 0.0
  %1165 = vmatpush.msra.mxu0 0.0
  %1166 = vmatpush.msra.mxu0 0.0
  %1167 = vmatpush.msra.mxu0 0.0
  %1168 = vmatpush.msra.mxu0 0.0
  %1169 = vmatpush.msra.mxu0 0.0
  %1170 = vmatpush.msra.mxu0 0.0
  %1171 = vmatpush.msra.mxu0 0.0
  %1172 = vmatpush.msra.mxu0 0.0
  %1173 = vmatpush.msra.mxu0 0.0
  %1174 = vmatpush.msra.mxu0 0.0
  %1175 = vmatpush.msra.mxu0 %v711
  %1176 = vmatpush.msra.mxu0 %v688
  %1177 = vmatpush.msra.mxu0 %v684
  %1178 = vmatmul.f32.gmra.mxu0 %v1120
  %v1179 = vpop.f32.mrf.mxu0
  %v1180 = vadd.f32 0.0, %v1179
  %1181 = vdwg.mxu0
  %1182 = vmatpush.msra.mxu0 0.0
  %1183 = vmatpush.msra.mxu0 0.0
  %1184 = vmatpush.msra.mxu0 0.0
  %1185 = vmatpush.msra.mxu0 0.0
  %1186 = vmatpush.msra.mxu0 0.0
  %1187 = vmatpush.msra.mxu0 0.0
  %1188 = vmatpush.msra.mxu0 0.0
  %1189 = vmatpush.msra.mxu0 0.0
  %1190 = vmatpush.msra.mxu0 0.0
  %1191 = vmatpush.msra.mxu0 0.0
  %1192 = vmatpush.msra.mxu0 0.0
  %1193 = vmatpush.msra.mxu0 0.0
  %1194 = vmatpush.msra.mxu0 0.0
  %1195 = vmatpush.msra.mxu0 %v714
  %1196 = vmatpush.msra.mxu0 %v689
  %1197 = vmatpush.msra.mxu0 %v685
  %1198 = vmatmul.f32.gmra.mxu0 %v1120
  %v1199 = vpop.f32.mrf.mxu0
  %v1200 = vadd.f32 0.0, %v1199
  %1201 = vdwg.mxu0
  %v1206 = vrot.slane %v1140, 6
  %v1207 = vrot.slane %v1160, 6
  %v1208 = vrot.slane %v1180, 6
  %v1209 = vrot.slane %v1200, 6
  %v1214 = vadd.f32 %v1110, %v1206
  %v1215 = vadd.f32 %v1111, %v1207
  %v1216 = vadd.f32 %v1112, %v1208
  %v1217 = vadd.f32 %v1113, %v1209
  %v1218 = vxor.u32 %v1214, 2147483648
  %v1219 = vmul.f32 %v1218, 1.442695
  %v1220 = vpow.pop %v1219
  %v1221 = vadd.f32 %v1220, 1.0
  %v1222 = vrcp.pop %v1221
  %v1223 = vmul.f32 %v1221, %v1222
  %v1224 = vsub.f32 1.0, %v1223
  %v1225 = vmul.f32 %v1222, %v1224
  %v1226 = vadd.f32 %v1222, %v1225
  %vm1227 = vweird.f32 %v1221
  %vm1228 = vweird.f32 %v1222
  %vm1229 = vmor %vm1227, %vm1228
  %v1230 = vsel %vm1229, %v1222, %v1226
  %v1231 = vand.u32 2147483647, %v1221
  %vm1232 = vcmp.eq.f32.partialorder %v1231, 8.507059e+37
  %v1233 = vand.u32 %v1221, 2147483648
  %v1234 = vor.u32 1.1754944e-38, %v1233
  %v1235 = vsel %vm1232, %v1234, %v1230
  %v1236 = vmul.f32 1.0, %v1235
  %v1237 = vxor.u32 %v1215, 2147483648
  %v1238 = vmul.f32 %v1237, 1.442695
  %v1239 = vpow.pop %v1238
  %v1240 = vadd.f32 %v1239, 1.0
  %v1241 = vrcp.pop %v1240
  %v1242 = vmul.f32 %v1240, %v1241
  %v1243 = vsub.f32 1.0, %v1242
  %v1244 = vmul.f32 %v1241, %v1243
  %v1245 = vadd.f32 %v1241, %v1244
  %vm1246 = vweird.f32 %v1240
  %vm1247 = vweird.f32 %v1241
  %vm1248 = vmor %vm1246, %vm1247
  %v1249 = vsel %vm1248, %v1241, %v1245
  %v1250 = vand.u32 2147483647, %v1240
  %vm1251 = vcmp.eq.f32.partialorder %v1250, 8.507059e+37
  %v1252 = vand.u32 %v1240, 2147483648
  %v1253 = vor.u32 1.1754944e-38, %v1252
  %v1254 = vsel %vm1251, %v1253, %v1249
  %v1255 = vmul.f32 1.0, %v1254
  %v1256 = vtanh.pop %v1216
  %v1257 = vxor.u32 %v1217, 2147483648
  %v1258 = vmul.f32 %v1257, 1.442695
  %v1259 = vpow.pop %v1258
  %v1260 = vadd.f32 %v1259, 1.0
  %v1261 = vrcp.pop %v1260
  %v1262 = vmul.f32 %v1260, %v1261
  %v1263 = vsub.f32 1.0, %v1262
  %v1264 = vmul.f32 %v1261, %v1263
  %v1265 = vadd.f32 %v1261, %v1264
  %vm1266 = vweird.f32 %v1260
  %vm1267 = vweird.f32 %v1261
  %vm1268 = vmor %vm1266, %vm1267
  %v1269 = vsel %vm1268, %v1261, %v1265
  %v1270 = vand.u32 2147483647, %v1260
  %vm1271 = vcmp.eq.f32.partialorder %v1270, 8.507059e+37
  %v1272 = vand.u32 %v1260, 2147483648
  %v1273 = vor.u32 1.1754944e-38, %v1272
  %v1274 = vsel %vm1271, %v1273, %v1269
  %v1275 = vmul.f32 1.0, %v1274
  %vm1278 = vcmask 1044480
  %v1279 = vrot.slane %v1099, 3
  %v1280 = vrot.slane %v1100, 3
  %v1281 = vsel %vm1278, %v1279, %v1280
  %v1283 = vmul.f32 %v1255, %v1281
  %v1284 = vmul.f32 %v1236, %v1256
  %v1285 = vadd.f32 %v1283, %v1284
  %v1286 = vtanh.pop %v1285
  %v1287 = vmul.f32 %v1275, %v1286
  %s1288 = scalar_lea.vmem %s6, 16
  %vm1289 = vcmask 161794
  %1290 = vst.msk [vmem:[%s1288 - $0x2] sm:$0x7c] %vm1289, %v1287
  %v1291 = vld [vmem:[#allocation2 + $0x20] sm:$0x80]
  %v1292 = vld [vmem:[#allocation2 + $0x28] sm:$0x80]
  %v1293 = vld [vmem:[#allocation2 + $0x30] sm:$0x80]
  %v1294 = vld [vmem:[#allocation2 + $0x38] sm:$0x80]
  %v1295 = vld [vmem:[#allocation2 + $0x40] sm:$0xf]
  %v1296 = vld [vmem:[#allocation2 + $0x48] sm:$0xf]
  %v1297 = vld [vmem:[#allocation2 + $0x50] sm:$0xf]
  %v1298 = vld [vmem:[#allocation2 + $0x58] sm:$0xf]
  %v1300 = vrot.slane %v1287, 2
  %v1301 = vsel %vm700, %v1300, 0
  %1303 = vmatpush.msra.mxu0 0.0
  %1304 = vmatpush.msra.mxu0 0.0
  %1305 = vmatpush.msra.mxu0 0.0
  %1306 = vmatpush.msra.mxu0 0.0
  %1307 = vmatpush.msra.mxu0 0.0
  %1308 = vmatpush.msra.mxu0 0.0
  %1309 = vmatpush.msra.mxu0 0.0
  %1310 = vmatpush.msra.mxu0 0.0
  %1311 = vmatpush.msra.mxu0 0.0
  %1312 = vmatpush.msra.mxu0 0.0
  %1313 = vmatpush.msra.mxu0 0.0
  %1314 = vmatpush.msra.mxu0 0.0
  %1315 = vmatpush.msra.mxu0 0.0
  %1316 = vmatpush.msra.mxu0 %v705
  %1317 = vmatpush.msra.mxu0 %v686
  %1318 = vmatpush.msra.mxu0 %v682
  %1319 = vmatmul.f32.gmra.mxu0 %v1301
  %v1320 = vpop.f32.mrf.mxu0
  %v1321 = vadd.f32 0.0, %v1320
  %1322 = vdwg.mxu0
  %1323 = vmatpush.msra.mxu0 0.0
  %1324 = vmatpush.msra.mxu0 0.0
  %1325 = vmatpush.msra.mxu0 0.0
  %1326 = vmatpush.msra.mxu0 0.0
  %1327 = vmatpush.msra.mxu0 0.0
  %1328 = vmatpush.msra.mxu0 0.0
  %1329 = vmatpush.msra.mxu0 0.0
  %1330 = vmatpush.msra.mxu0 0.0
  %1331 = vmatpush.msra.mxu0 0.0
  %1332 = vmatpush.msra.mxu0 0.0
  %1333 = vmatpush.msra.mxu0 0.0
  %1334 = vmatpush.msra.mxu0 0.0
  %1335 = vmatpush.msra.mxu0 0.0
  %1336 = vmatpush.msra.mxu0 %v708
  %1337 = vmatpush.msra.mxu0 %v687
  %1338 = vmatpush.msra.mxu0 %v683
  %1339 = vmatmul.f32.gmra.mxu0 %v1301
  %v1340 = vpop.f32.mrf.mxu0
  %v1341 = vadd.f32 0.0, %v1340
  %1342 = vdwg.mxu0
  %1343 = vmatpush.msra.mxu0 0.0
  %1344 = vmatpush.msra.mxu0 0.0
  %1345 = vmatpush.msra.mxu0 0.0
  %1346 = vmatpush.msra.mxu0 0.0
  %1347 = vmatpush.msra.mxu0 0.0
  %1348 = vmatpush.msra.mxu0 0.0
  %1349 = vmatpush.msra.mxu0 0.0
  %1350 = vmatpush.msra.mxu0 0.0
  %1351 = vmatpush.msra.mxu0 0.0
  %1352 = vmatpush.msra.mxu0 0.0
  %1353 = vmatpush.msra.mxu0 0.0
  %1354 = vmatpush.msra.mxu0 0.0
  %1355 = vmatpush.msra.mxu0 0.0
  %1356 = vmatpush.msra.mxu0 %v711
  %1357 = vmatpush.msra.mxu0 %v688
  %1358 = vmatpush.msra.mxu0 %v684
  %1359 = vmatmul.f32.gmra.mxu0 %v1301
  %v1360 = vpop.f32.mrf.mxu0
  %v1361 = vadd.f32 0.0, %v1360
  %1362 = vdwg.mxu0
  %1363 = vmatpush.msra.mxu0 0.0
  %1364 = vmatpush.msra.mxu0 0.0
  %1365 = vmatpush.msra.mxu0 0.0
  %1366 = vmatpush.msra.mxu0 0.0
  %1367 = vmatpush.msra.mxu0 0.0
  %1368 = vmatpush.msra.mxu0 0.0
  %1369 = vmatpush.msra.mxu0 0.0
  %1370 = vmatpush.msra.mxu0 0.0
  %1371 = vmatpush.msra.mxu0 0.0
  %1372 = vmatpush.msra.mxu0 0.0
  %1373 = vmatpush.msra.mxu0 0.0
  %1374 = vmatpush.msra.mxu0 0.0
  %1375 = vmatpush.msra.mxu0 0.0
  %1376 = vmatpush.msra.mxu0 %v714
  %1377 = vmatpush.msra.mxu0 %v689
  %1378 = vmatpush.msra.mxu0 %v685
  %1379 = vmatmul.f32.gmra.mxu0 %v1301
  %v1380 = vpop.f32.mrf.mxu0
  %v1381 = vadd.f32 0.0, %v1380
  %1382 = vdwg.mxu0
  %v1387 = vrot.slane %v1321, 1
  %v1388 = vrot.slane %v1341, 1
  %v1389 = vrot.slane %v1361, 1
  %v1390 = vrot.slane %v1381, 1
  %v1395 = vadd.f32 %v1291, %v1387
  %v1396 = vadd.f32 %v1292, %v1388
  %v1397 = vadd.f32 %v1293, %v1389
  %v1398 = vadd.f32 %v1294, %v1390
  %v1399 = vadd.f32 %v1295, %v1387
  %v1400 = vadd.f32 %v1296, %v1388
  %v1401 = vadd.f32 %v1297, %v1389
  %v1402 = vadd.f32 %v1298, %v1390
  %v1403 = vxor.u32 %v1395, 2147483648
  %v1404 = vxor.u32 %v1399, 2147483648
  %v1405 = vmul.f32 %v1403, 1.442695
  %v1406 = vpow.pop %v1405
  %v1407 = vmul.f32 %v1404, 1.442695
  %v1408 = vpow.pop %v1407
  %v1409 = vadd.f32 %v1406, 1.0
  %v1410 = vadd.f32 %v1408, 1.0
  %v1411 = vrcp.pop %v1409
  %v1412 = vmul.f32 %v1409, %v1411
  %v1413 = vsub.f32 1.0, %v1412
  %v1414 = vmul.f32 %v1411, %v1413
  %v1415 = vadd.f32 %v1411, %v1414
  %vm1416 = vweird.f32 %v1409
  %vm1417 = vweird.f32 %v1411
  %vm1418 = vmor %vm1416, %vm1417
  %v1419 = vsel %vm1418, %v1411, %v1415
  %v1420 = vand.u32 2147483647, %v1409
  %vm1421 = vcmp.eq.f32.partialorder %v1420, 8.507059e+37
  %v1422 = vand.u32 %v1409, 2147483648
  %v1423 = vor.u32 1.1754944e-38, %v1422
  %v1424 = vsel %vm1421, %v1423, %v1419
  %v1425 = vmul.f32 1.0, %v1424
  %v1426 = vrcp.pop %v1410
  %v1427 = vmul.f32 %v1410, %v1426
  %v1428 = vsub.f32 1.0, %v1427
  %v1429 = vmul.f32 %v1426, %v1428
  %v1430 = vadd.f32 %v1426, %v1429
  %vm1431 = vweird.f32 %v1410
  %vm1432 = vweird.f32 %v1426
  %vm1433 = vmor %vm1431, %vm1432
  %v1434 = vsel %vm1433, %v1426, %v1430
  %v1435 = vand.u32 2147483647, %v1410
  %vm1436 = vcmp.eq.f32.partialorder %v1435, 8.507059e+37
  %v1437 = vand.u32 %v1410, 2147483648
  %v1438 = vor.u32 1.1754944e-38, %v1437
  %v1439 = vsel %vm1436, %v1438, %v1434
  %v1440 = vmul.f32 1.0, %v1439
  %v1441 = vxor.u32 %v1396, 2147483648
  %v1442 = vxor.u32 %v1400, 2147483648
  %v1443 = vmul.f32 %v1441, 1.442695
  %v1444 = vpow.pop %v1443
  %v1445 = vmul.f32 %v1442, 1.442695
  %v1446 = vpow.pop %v1445
  %v1447 = vadd.f32 %v1444, 1.0
  %v1448 = vadd.f32 %v1446, 1.0
  %v1449 = vrcp.pop %v1447
  %v1450 = vmul.f32 %v1447, %v1449
  %v1451 = vsub.f32 1.0, %v1450
  %v1452 = vmul.f32 %v1449, %v1451
  %v1453 = vadd.f32 %v1449, %v1452
  %vm1454 = vweird.f32 %v1447
  %vm1455 = vweird.f32 %v1449
  %vm1456 = vmor %vm1454, %vm1455
  %v1457 = vsel %vm1456, %v1449, %v1453
  %v1458 = vand.u32 2147483647, %v1447
  %vm1459 = vcmp.eq.f32.partialorder %v1458, 8.507059e+37
  %v1460 = vand.u32 %v1447, 2147483648
  %v1461 = vor.u32 1.1754944e-38, %v1460
  %v1462 = vsel %vm1459, %v1461, %v1457
  %v1463 = vmul.f32 1.0, %v1462
  %v1464 = vrcp.pop %v1448
  %v1465 = vmul.f32 %v1448, %v1464
  %v1466 = vsub.f32 1.0, %v1465
  %v1467 = vmul.f32 %v1464, %v1466
  %v1468 = vadd.f32 %v1464, %v1467
  %vm1469 = vweird.f32 %v1448
  %vm1470 = vweird.f32 %v1464
  %vm1471 = vmor %vm1469, %vm1470
  %v1472 = vsel %vm1471, %v1464, %v1468
  %v1473 = vand.u32 2147483647, %v1448
  %vm1474 = vcmp.eq.f32.partialorder %v1473, 8.507059e+37
  %v1475 = vand.u32 %v1448, 2147483648
  %v1476 = vor.u32 1.1754944e-38, %v1475
  %v1477 = vsel %vm1474, %v1476, %v1472
  %v1478 = vmul.f32 1.0, %v1477
  %v1479 = vtanh.pop %v1397
  %v1480 = vtanh.pop %v1401
  %v1481 = vxor.u32 %v1398, 2147483648
  %v1482 = vxor.u32 %v1402, 2147483648
  %v1483 = vmul.f32 %v1481, 1.442695
  %v1484 = vpow.pop %v1483
  %v1485 = vmul.f32 %v1482, 1.442695
  %v1486 = vpow.pop %v1485
  %v1487 = vadd.f32 %v1484, 1.0
  %v1488 = vadd.f32 %v1486, 1.0
  %v1489 = vrcp.pop %v1487
  %v1490 = vmul.f32 %v1487, %v1489
  %v1491 = vsub.f32 1.0, %v1490
  %v1492 = vmul.f32 %v1489, %v1491
  %v1493 = vadd.f32 %v1489, %v1492
  %vm1494 = vweird.f32 %v1487
  %vm1495 = vweird.f32 %v1489
  %vm1496 = vmor %vm1494, %vm1495
  %v1497 = vsel %vm1496, %v1489, %v1493
  %v1498 = vand.u32 2147483647, %v1487
  %vm1499 = vcmp.eq.f32.partialorder %v1498, 8.507059e+37
  %v1500 = vand.u32 %v1487, 2147483648
  %v1501 = vor.u32 1.1754944e-38, %v1500
  %v1502 = vsel %vm1499, %v1501, %v1497
  %v1503 = vmul.f32 1.0, %v1502
  %v1504 = vrcp.pop %v1488
  %v1505 = vmul.f32 %v1488, %v1504
  %v1506 = vsub.f32 1.0, %v1505
  %v1507 = vmul.f32 %v1504, %v1506
  %v1508 = vadd.f32 %v1504, %v1507
  %vm1509 = vweird.f32 %v1488
  %vm1510 = vweird.f32 %v1504
  %vm1511 = vmor %vm1509, %vm1510
  %v1512 = vsel %vm1511, %v1504, %v1508
  %v1513 = vand.u32 2147483647, %v1488
  %vm1514 = vcmp.eq.f32.partialorder %v1513, 8.507059e+37
  %v1515 = vand.u32 %v1488, 2147483648
  %v1516 = vor.u32 1.1754944e-38, %v1515
  %v1517 = vsel %vm1514, %v1516, %v1512
  %v1518 = vmul.f32 1.0, %v1517
  %v1520 = vrot.slane %v1285, 3
  %v1522 = vmul.f32 %v1463, %v1520
  %v1523 = vmul.f32 %v1478, %v1520
  %v1524 = vmul.f32 %v1425, %v1479
  %v1525 = vmul.f32 %v1440, %v1480
  %v1526 = vadd.f32 %v1522, %v1524
  %v1527 = vadd.f32 %v1523, %v1525
  %v1528 = vtanh.pop %v1526
  %v1529 = vtanh.pop %v1527
  %v1530 = vmul.f32 %v1503, %v1528
  %v1531 = vmul.f32 %v1518, %v1529
  %s1532 = scalar_lea.vmem %s6, 24
  %vm1533 = vcmask 162823
  %1534 = vst.msk [vmem:[%s1532 - $0x7] sm:$0x80] %vm1533, %v1530
  %vm1535 = vcmask 158720
  %1536 = vst.msk [vmem:[%s1532 + $0x1] sm:$0xf] %vm1535, %v1531
  %v1537 = vld [vmem:[#allocation2 + $0x40] sm:$0xf0]
  %v1538 = vld [vmem:[#allocation2 + $0x48] sm:$0xf0]
  %v1539 = vld [vmem:[#allocation2 + $0x50] sm:$0xf0]
  %v1540 = vld [vmem:[#allocation2 + $0x58] sm:$0xf0]
  %v1541 = vld [vmem:[#allocation2 + $0x60] sm:$0x1]
  %v1542 = vld [vmem:[#allocation2 + $0x68] sm:$0x1]
  %v1543 = vld [vmem:[#allocation2 + $0x70] sm:$0x1]
  %v1544 = vld [vmem:[#allocation2 + $0x78] sm:$0x1]
  %vm1547 = vcmask 1040384
  %v1548 = vrot.slane %v1530, 7
  %v1549 = vrot.slane %v1531, 7
  %v1550 = vsel %vm1547, %v1548, %v1549
  %v1551 = vsel %vm700, %v1550, 0
  %1553 = vmatpush.msra.mxu0 0.0
  %1554 = vmatpush.msra.mxu0 0.0
  %1555 = vmatpush.msra.mxu0 0.0
  %1556 = vmatpush.msra.mxu0 0.0
  %1557 = vmatpush.msra.mxu0 0.0
  %1558 = vmatpush.msra.mxu0 0.0
  %1559 = vmatpush.msra.mxu0 0.0
  %1560 = vmatpush.msra.mxu0 0.0
  %1561 = vmatpush.msra.mxu0 0.0
  %1562 = vmatpush.msra.mxu0 0.0
  %1563 = vmatpush.msra.mxu0 0.0
  %1564 = vmatpush.msra.mxu0 0.0
  %1565 = vmatpush.msra.mxu0 0.0
  %1566 = vmatpush.msra.mxu0 %v705
  %1567 = vmatpush.msra.mxu0 %v686
  %1568 = vmatpush.msra.mxu0 %v682
  %1569 = vmatmul.f32.gmra.mxu0 %v1551
  %v1570 = vpop.f32.mrf.mxu0
  %v1571 = vadd.f32 0.0, %v1570
  %1572 = vdwg.mxu0
  %1573 = vmatpush.msra.mxu0 0.0
  %1574 = vmatpush.msra.mxu0 0.0
  %1575 = vmatpush.msra.mxu0 0.0
  %1576 = vmatpush.msra.mxu0 0.0
  %1577 = vmatpush.msra.mxu0 0.0
  %1578 = vmatpush.msra.mxu0 0.0
  %1579 = vmatpush.msra.mxu0 0.0
  %1580 = vmatpush.msra.mxu0 0.0
  %1581 = vmatpush.msra.mxu0 0.0
  %1582 = vmatpush.msra.mxu0 0.0
  %1583 = vmatpush.msra.mxu0 0.0
  %1584 = vmatpush.msra.mxu0 0.0
  %1585 = vmatpush.msra.mxu0 0.0
  %1586 = vmatpush.msra.mxu0 %v708
  %1587 = vmatpush.msra.mxu0 %v687
  %1588 = vmatpush.msra.mxu0 %v683
  %1589 = vmatmul.f32.gmra.mxu0 %v1551
  %v1590 = vpop.f32.mrf.mxu0
  %v1591 = vadd.f32 0.0, %v1590
  %1592 = vdwg.mxu0
  %1593 = vmatpush.msra.mxu0 0.0
  %1594 = vmatpush.msra.mxu0 0.0
  %1595 = vmatpush.msra.mxu0 0.0
  %1596 = vmatpush.msra.mxu0 0.0
  %1597 = vmatpush.msra.mxu0 0.0
  %1598 = vmatpush.msra.mxu0 0.0
  %1599 = vmatpush.msra.mxu0 0.0
  %1600 = vmatpush.msra.mxu0 0.0
  %1601 = vmatpush.msra.mxu0 0.0
  %1602 = vmatpush.msra.mxu0 0.0
  %1603 = vmatpush.msra.mxu0 0.0
  %1604 = vmatpush.msra.mxu0 0.0
  %1605 = vmatpush.msra.mxu0 0.0
  %1606 = vmatpush.msra.mxu0 %v711
  %1607 = vmatpush.msra.mxu0 %v688
  %1608 = vmatpush.msra.mxu0 %v684
  %1609 = vmatmul.f32.gmra.mxu0 %v1551
  %v1610 = vpop.f32.mrf.mxu0
  %v1611 = vadd.f32 0.0, %v1610
  %1612 = vdwg.mxu0
  %1613 = vmatpush.msra.mxu0 0.0
  %1614 = vmatpush.msra.mxu0 0.0
  %1615 = vmatpush.msra.mxu0 0.0
  %1616 = vmatpush.msra.mxu0 0.0
  %1617 = vmatpush.msra.mxu0 0.0
  %1618 = vmatpush.msra.mxu0 0.0
  %1619 = vmatpush.msra.mxu0 0.0
  %1620 = vmatpush.msra.mxu0 0.0
  %1621 = vmatpush.msra.mxu0 0.0
  %1622 = vmatpush.msra.mxu0 0.0
  %1623 = vmatpush.msra.mxu0 0.0
  %1624 = vmatpush.msra.mxu0 0.0
  %1625 = vmatpush.msra.mxu0 0.0
  %1626 = vmatpush.msra.mxu0 %v714
  %1627 = vmatpush.msra.mxu0 %v689
  %1628 = vmatpush.msra.mxu0 %v685
  %1629 = vmatmul.f32.gmra.mxu0 %v1551
  %v1630 = vpop.f32.mrf.mxu0
  %v1631 = vadd.f32 0.0, %v1630
  %1632 = vdwg.mxu0
  %v1637 = vrot.slane %v1571, 4
  %v1638 = vrot.slane %v1591, 4
  %v1639 = vrot.slane %v1611, 4
  %v1640 = vrot.slane %v1631, 4
  %v1645 = vadd.f32 %v1537, %v1637
  %v1646 = vadd.f32 %v1538, %v1638
  %v1647 = vadd.f32 %v1539, %v1639
  %v1648 = vadd.f32 %v1540, %v1640
  %v1649 = vadd.f32 %v1541, %v1637
  %v1650 = vadd.f32 %v1542, %v1638
  %v1651 = vadd.f32 %v1543, %v1639
  %v1652 = vadd.f32 %v1544, %v1640
  %v1653 = vxor.u32 %v1645, 2147483648
  %v1654 = vxor.u32 %v1649, 2147483648
  %v1655 = vmul.f32 %v1653, 1.442695
  %v1656 = vpow.pop %v1655
  %v1657 = vmul.f32 %v1654, 1.442695
  %v1658 = vpow.pop %v1657
  %v1659 = vadd.f32 %v1656, 1.0
  %v1660 = vadd.f32 %v1658, 1.0
  %v1661 = vrcp.pop %v1659
  %v1662 = vmul.f32 %v1659, %v1661
  %v1663 = vsub.f32 1.0, %v1662
  %v1664 = vmul.f32 %v1661, %v1663
  %v1665 = vadd.f32 %v1661, %v1664
  %vm1666 = vweird.f32 %v1659
  %vm1667 = vweird.f32 %v1661
  %vm1668 = vmor %vm1666, %vm1667
  %v1669 = vsel %vm1668, %v1661, %v1665
  %v1670 = vand.u32 2147483647, %v1659
  %vm1671 = vcmp.eq.f32.partialorder %v1670, 8.507059e+37
  %v1672 = vand.u32 %v1659, 2147483648
  %v1673 = vor.u32 1.1754944e-38, %v1672
  %v1674 = vsel %vm1671, %v1673, %v1669
  %v1675 = vmul.f32 1.0, %v1674
  %v1676 = vrcp.pop %v1660
  %v1677 = vmul.f32 %v1660, %v1676
  %v1678 = vsub.f32 1.0, %v1677
  %v1679 = vmul.f32 %v1676, %v1678
  %v1680 = vadd.f32 %v1676, %v1679
  %vm1681 = vweird.f32 %v1660
  %vm1682 = vweird.f32 %v1676
  %vm1683 = vmor %vm1681, %vm1682
  %v1684 = vsel %vm1683, %v1676, %v1680
  %v1685 = vand.u32 2147483647, %v1660
  %vm1686 = vcmp.eq.f32.partialorder %v1685, 8.507059e+37
  %v1687 = vand.u32 %v1660, 2147483648
  %v1688 = vor.u32 1.1754944e-38, %v1687
  %v1689 = vsel %vm1686, %v1688, %v1684
  %v1690 = vmul.f32 1.0, %v1689
  %v1691 = vxor.u32 %v1646, 2147483648
  %v1692 = vxor.u32 %v1650, 2147483648
  %v1693 = vmul.f32 %v1691, 1.442695
  %v1694 = vpow.pop %v1693
  %v1695 = vmul.f32 %v1692, 1.442695
  %v1696 = vpow.pop %v1695
  %v1697 = vadd.f32 %v1694, 1.0
  %v1698 = vadd.f32 %v1696, 1.0
  %v1699 = vrcp.pop %v1697
  %v1700 = vmul.f32 %v1697, %v1699
  %v1701 = vsub.f32 1.0, %v1700
  %v1702 = vmul.f32 %v1699, %v1701
  %v1703 = vadd.f32 %v1699, %v1702
  %vm1704 = vweird.f32 %v1697
  %vm1705 = vweird.f32 %v1699
  %vm1706 = vmor %vm1704, %vm1705
  %v1707 = vsel %vm1706, %v1699, %v1703
  %v1708 = vand.u32 2147483647, %v1697
  %vm1709 = vcmp.eq.f32.partialorder %v1708, 8.507059e+37
  %v1710 = vand.u32 %v1697, 2147483648
  %v1711 = vor.u32 1.1754944e-38, %v1710
  %v1712 = vsel %vm1709, %v1711, %v1707
  %v1713 = vmul.f32 1.0, %v1712
  %v1714 = vrcp.pop %v1698
  %v1715 = vmul.f32 %v1698, %v1714
  %v1716 = vsub.f32 1.0, %v1715
  %v1717 = vmul.f32 %v1714, %v1716
  %v1718 = vadd.f32 %v1714, %v1717
  %vm1719 = vweird.f32 %v1698
  %vm1720 = vweird.f32 %v1714
  %vm1721 = vmor %vm1719, %vm1720
  %v1722 = vsel %vm1721, %v1714, %v1718
  %v1723 = vand.u32 2147483647, %v1698
  %vm1724 = vcmp.eq.f32.partialorder %v1723, 8.507059e+37
  %v1725 = vand.u32 %v1698, 2147483648
  %v1726 = vor.u32 1.1754944e-38, %v1725
  %v1727 = vsel %vm1724, %v1726, %v1722
  %v1728 = vmul.f32 1.0, %v1727
  %v1729 = vtanh.pop %v1647
  %v1730 = vtanh.pop %v1651
  %v1731 = vxor.u32 %v1648, 2147483648
  %v1732 = vxor.u32 %v1652, 2147483648
  %v1733 = vmul.f32 %v1731, 1.442695
  %v1734 = vpow.pop %v1733
  %v1735 = vmul.f32 %v1732, 1.442695
  %v1736 = vpow.pop %v1735
  %v1737 = vadd.f32 %v1734, 1.0
  %v1738 = vadd.f32 %v1736, 1.0
  %v1739 = vrcp.pop %v1737
  %v1740 = vmul.f32 %v1737, %v1739
  %v1741 = vsub.f32 1.0, %v1740
  %v1742 = vmul.f32 %v1739, %v1741
  %v1743 = vadd.f32 %v1739, %v1742
  %vm1744 = vweird.f32 %v1737
  %vm1745 = vweird.f32 %v1739
  %vm1746 = vmor %vm1744, %vm1745
  %v1747 = vsel %vm1746, %v1739, %v1743
  %v1748 = vand.u32 2147483647, %v1737
  %vm1749 = vcmp.eq.f32.partialorder %v1748, 8.507059e+37
  %v1750 = vand.u32 %v1737, 2147483648
  %v1751 = vor.u32 1.1754944e-38, %v1750
  %v1752 = vsel %vm1749, %v1751, %v1747
  %v1753 = vmul.f32 1.0, %v1752
  %v1754 = vrcp.pop %v1738
  %v1755 = vmul.f32 %v1738, %v1754
  %v1756 = vsub.f32 1.0, %v1755
  %v1757 = vmul.f32 %v1754, %v1756
  %v1758 = vadd.f32 %v1754, %v1757
  %vm1759 = vweird.f32 %v1738
  %vm1760 = vweird.f32 %v1754
  %vm1761 = vmor %vm1759, %vm1760
  %v1762 = vsel %vm1761, %v1754, %v1758
  %v1763 = vand.u32 2147483647, %v1738
  %vm1764 = vcmp.eq.f32.partialorder %v1763, 8.507059e+37
  %v1765 = vand.u32 %v1738, 2147483648
  %v1766 = vor.u32 1.1754944e-38, %v1765
  %v1767 = vsel %vm1764, %v1766, %v1762
  %v1768 = vmul.f32 1.0, %v1767
  %v1771 = vrot.slane %v1526, 3
  %v1772 = vrot.slane %v1527, 3
  %v1773 = vsel %vm1278, %v1771, %v1772
  %v1776 = vmul.f32 %v1713, %v1773
  %v1777 = vmul.f32 %v1728, %v1772
  %v1778 = vmul.f32 %v1675, %v1729
  %v1779 = vmul.f32 %v1690, %v1730
  %v1780 = vadd.f32 %v1776, %v1778
  %v1781 = vadd.f32 %v1777, %v1779
  %v1782 = vtanh.pop %v1780
  %v1783 = vtanh.pop %v1781
  %v1784 = vmul.f32 %v1753, %v1782
  %v1785 = vmul.f32 %v1768, %v1783
  %s1786 = scalar_lea.vmem %s6, 32
  %vm1787 = vcmask 162820
  %1788 = vst.msk [vmem:[%s1786 - $0x4] sm:$0xf0] %vm1787, %v1784
  %vm1789 = vcmask 155648
  %1790 = vst.msk [vmem:[%s1786 + $0x4] sm:$0x1] %vm1789, %v1785
  %v1791 = vld [vmem:[#allocation2 + $0x60] sm:$0x3e]
  %v1792 = vld [vmem:[#allocation2 + $0x68] sm:$0x3e]
  %v1793 = vld [vmem:[#allocation2 + $0x70] sm:$0x3e]
  %v1794 = vld [vmem:[#allocation2 + $0x78] sm:$0x3e]
  %v1797 = vrot.slane %v1784, 4
  %v1798 = vrot.slane %v1785, 4
  %v1799 = vsel %vm197, %v1797, %v1798
  %v1800 = vsel %vm700, %v1799, 0
  %1802 = vmatpush.msra.mxu0 0.0
  %1803 = vmatpush.msra.mxu0 0.0
  %1804 = vmatpush.msra.mxu0 0.0
  %1805 = vmatpush.msra.mxu0 0.0
  %1806 = vmatpush.msra.mxu0 0.0
  %1807 = vmatpush.msra.mxu0 0.0
  %1808 = vmatpush.msra.mxu0 0.0
  %1809 = vmatpush.msra.mxu0 0.0
  %1810 = vmatpush.msra.mxu0 0.0
  %1811 = vmatpush.msra.mxu0 0.0
  %1812 = vmatpush.msra.mxu0 0.0
  %1813 = vmatpush.msra.mxu0 0.0
  %1814 = vmatpush.msra.mxu0 0.0
  %1815 = vmatpush.msra.mxu0 %v705
  %1816 = vmatpush.msra.mxu0 %v686
  %1817 = vmatpush.msra.mxu0 %v682
  %1818 = vmatmul.f32.gmra.mxu0 %v1800
  %v1819 = vpop.f32.mrf.mxu0
  %v1820 = vadd.f32 0.0, %v1819
  %1821 = vdwg.mxu0
  %1822 = vmatpush.msra.mxu0 0.0
  %1823 = vmatpush.msra.mxu0 0.0
  %1824 = vmatpush.msra.mxu0 0.0
  %1825 = vmatpush.msra.mxu0 0.0
  %1826 = vmatpush.msra.mxu0 0.0
  %1827 = vmatpush.msra.mxu0 0.0
  %1828 = vmatpush.msra.mxu0 0.0
  %1829 = vmatpush.msra.mxu0 0.0
  %1830 = vmatpush.msra.mxu0 0.0
  %1831 = vmatpush.msra.mxu0 0.0
  %1832 = vmatpush.msra.mxu0 0.0
  %1833 = vmatpush.msra.mxu0 0.0
  %1834 = vmatpush.msra.mxu0 0.0
  %1835 = vmatpush.msra.mxu0 %v708
  %1836 = vmatpush.msra.mxu0 %v687
  %1837 = vmatpush.msra.mxu0 %v683
  %1838 = vmatmul.f32.gmra.mxu0 %v1800
  %v1839 = vpop.f32.mrf.mxu0
  %v1840 = vadd.f32 0.0, %v1839
  %1841 = vdwg.mxu0
  %1842 = vmatpush.msra.mxu0 0.0
  %1843 = vmatpush.msra.mxu0 0.0
  %1844 = vmatpush.msra.mxu0 0.0
  %1845 = vmatpush.msra.mxu0 0.0
  %1846 = vmatpush.msra.mxu0 0.0
  %1847 = vmatpush.msra.mxu0 0.0
  %1848 = vmatpush.msra.mxu0 0.0
  %1849 = vmatpush.msra.mxu0 0.0
  %1850 = vmatpush.msra.mxu0 0.0
  %1851 = vmatpush.msra.mxu0 0.0
  %1852 = vmatpush.msra.mxu0 0.0
  %1853 = vmatpush.msra.mxu0 0.0
  %1854 = vmatpush.msra.mxu0 0.0
  %1855 = vmatpush.msra.mxu0 %v711
  %1856 = vmatpush.msra.mxu0 %v688
  %1857 = vmatpush.msra.mxu0 %v684
  %1858 = vmatmul.f32.gmra.mxu0 %v1800
  %v1859 = vpop.f32.mrf.mxu0
  %v1860 = vadd.f32 0.0, %v1859
  %1861 = vdwg.mxu0
  %1862 = vmatpush.msra.mxu0 0.0
  %1863 = vmatpush.msra.mxu0 0.0
  %1864 = vmatpush.msra.mxu0 0.0
  %1865 = vmatpush.msra.mxu0 0.0
  %1866 = vmatpush.msra.mxu0 0.0
  %1867 = vmatpush.msra.mxu0 0.0
  %1868 = vmatpush.msra.mxu0 0.0
  %1869 = vmatpush.msra.mxu0 0.0
  %1870 = vmatpush.msra.mxu0 0.0
  %1871 = vmatpush.msra.mxu0 0.0
  %1872 = vmatpush.msra.mxu0 0.0
  %1873 = vmatpush.msra.mxu0 0.0
  %1874 = vmatpush.msra.mxu0 0.0
  %1875 = vmatpush.msra.mxu0 %v714
  %1876 = vmatpush.msra.mxu0 %v689
  %1877 = vmatpush.msra.mxu0 %v685
  %1878 = vmatmul.f32.gmra.mxu0 %v1800
  %v1879 = vpop.f32.mrf.mxu0
  %v1880 = vadd.f32 0.0, %v1879
  %1881 = vdwg.mxu0
  %v1886 = vrot.slane %v1820, 7
  %v1887 = vrot.slane %v1840, 7
  %v1888 = vrot.slane %v1860, 7
  %v1889 = vrot.slane %v1880, 7
  %v1894 = vadd.f32 %v1791, %v1886
  %v1895 = vadd.f32 %v1792, %v1887
  %v1896 = vadd.f32 %v1793, %v1888
  %v1897 = vadd.f32 %v1794, %v1889
  %v1898 = vxor.u32 %v1894, 2147483648
  %v1899 = vmul.f32 %v1898, 1.442695
  %v1900 = vpow.pop %v1899
  %v1901 = vadd.f32 %v1900, 1.0
  %v1902 = vrcp.pop %v1901
  %v1903 = vmul.f32 %v1901, %v1902
  %v1904 = vsub.f32 1.0, %v1903
  %v1905 = vmul.f32 %v1902, %v1904
  %v1906 = vadd.f32 %v1902, %v1905
  %vm1907 = vweird.f32 %v1901
  %vm1908 = vweird.f32 %v1902
  %vm1909 = vmor %vm1907, %vm1908
  %v1910 = vsel %vm1909, %v1902, %v1906
  %v1911 = vand.u32 2147483647, %v1901
  %vm1912 = vcmp.eq.f32.partialorder %v1911, 8.507059e+37
  %v1913 = vand.u32 %v1901, 2147483648
  %v1914 = vor.u32 1.1754944e-38, %v1913
  %v1915 = vsel %vm1912, %v1914, %v1910
  %v1916 = vmul.f32 1.0, %v1915
  %v1917 = vxor.u32 %v1895, 2147483648
  %v1918 = vmul.f32 %v1917, 1.442695
  %v1919 = vpow.pop %v1918
  %v1920 = vadd.f32 %v1919, 1.0
  %v1921 = vrcp.pop %v1920
  %v1922 = vmul.f32 %v1920, %v1921
  %v1923 = vsub.f32 1.0, %v1922
  %v1924 = vmul.f32 %v1921, %v1923
  %v1925 = vadd.f32 %v1921, %v1924
  %vm1926 = vweird.f32 %v1920
  %vm1927 = vweird.f32 %v1921
  %vm1928 = vmor %vm1926, %vm1927
  %v1929 = vsel %vm1928, %v1921, %v1925
  %v1930 = vand.u32 2147483647, %v1920
  %vm1931 = vcmp.eq.f32.partialorder %v1930, 8.507059e+37
  %v1932 = vand.u32 %v1920, 2147483648
  %v1933 = vor.u32 1.1754944e-38, %v1932
  %v1934 = vsel %vm1931, %v1933, %v1929
  %v1935 = vmul.f32 1.0, %v1934
  %v1936 = vtanh.pop %v1896
  %v1937 = vxor.u32 %v1897, 2147483648
  %v1938 = vmul.f32 %v1937, 1.442695
  %v1939 = vpow.pop %v1938
  %v1940 = vadd.f32 %v1939, 1.0
  %v1941 = vrcp.pop %v1940
  %v1942 = vmul.f32 %v1940, %v1941
  %v1943 = vsub.f32 1.0, %v1942
  %v1944 = vmul.f32 %v1941, %v1943
  %v1945 = vadd.f32 %v1941, %v1944
  %vm1946 = vweird.f32 %v1940
  %vm1947 = vweird.f32 %v1941
  %vm1948 = vmor %vm1946, %vm1947
  %v1949 = vsel %vm1948, %v1941, %v1945
  %v1950 = vand.u32 2147483647, %v1940
  %vm1951 = vcmp.eq.f32.partialorder %v1950, 8.507059e+37
  %v1952 = vand.u32 %v1940, 2147483648
  %v1953 = vor.u32 1.1754944e-38, %v1952
  %v1954 = vsel %vm1951, %v1953, %v1949
  %v1955 = vmul.f32 1.0, %v1954
  %v1958 = vrot.slane %v1780, 3
  %v1959 = vrot.slane %v1781, 3
  %v1960 = vsel %vm1278, %v1958, %v1959
  %v1962 = vmul.f32 %v1935, %v1960
  %v1963 = vmul.f32 %v1916, %v1936
  %v1964 = vadd.f32 %v1962, %v1963
  %v1965 = vtanh.pop %v1964
  %v1966 = vmul.f32 %v1955, %v1965
  %s1967 = scalar_lea.vmem %s6, 40
  %vm1968 = vcmask 160769
  %1969 = vst.msk [vmem:[%s1967 - $0x1] sm:$0x3e] %vm1968, %v1966
  %v1970 = vld [vmem:[#allocation2 + $0x60] sm:$0xc0]
  %v1971 = vld [vmem:[#allocation2 + $0x68] sm:$0xc0]
  %v1972 = vld [vmem:[#allocation2 + $0x70] sm:$0xc0]
  %v1973 = vld [vmem:[#allocation2 + $0x78] sm:$0xc0]
  %v1974 = vld [vmem:[#allocation2 + $0x80] sm:$0x7]
  %v1975 = vld [vmem:[#allocation2 + $0x88] sm:$0x7]
  %v1976 = vld [vmem:[#allocation2 + $0x90] sm:$0x7]
  %v1977 = vld [vmem:[#allocation2 + $0x98] sm:$0x7]
  %v1979 = vrot.slane %v1966, 1
  %v1980 = vsel %vm700, %v1979, 0
  %1982 = vmatpush.msra.mxu0 0.0
  %1983 = vmatpush.msra.mxu0 0.0
  %1984 = vmatpush.msra.mxu0 0.0
  %1985 = vmatpush.msra.mxu0 0.0
  %1986 = vmatpush.msra.mxu0 0.0
  %1987 = vmatpush.msra.mxu0 0.0
  %1988 = vmatpush.msra.mxu0 0.0
  %1989 = vmatpush.msra.mxu0 0.0
  %1990 = vmatpush.msra.mxu0 0.0
  %1991 = vmatpush.msra.mxu0 0.0
  %1992 = vmatpush.msra.mxu0 0.0
  %1993 = vmatpush.msra.mxu0 0.0
  %1994 = vmatpush.msra.mxu0 0.0
  %1995 = vmatpush.msra.mxu0 %v705
  %1996 = vmatpush.msra.mxu0 %v686
  %1997 = vmatpush.msra.mxu0 %v682
  %1998 = vmatmul.f32.gmra.mxu0 %v1980
  %v1999 = vpop.f32.mrf.mxu0
  %v2000 = vadd.f32 0.0, %v1999
  %2001 = vdwg.mxu0
  %2002 = vmatpush.msra.mxu0 0.0
  %2003 = vmatpush.msra.mxu0 0.0
  %2004 = vmatpush.msra.mxu0 0.0
  %2005 = vmatpush.msra.mxu0 0.0
  %2006 = vmatpush.msra.mxu0 0.0
  %2007 = vmatpush.msra.mxu0 0.0
  %2008 = vmatpush.msra.mxu0 0.0
  %2009 = vmatpush.msra.mxu0 0.0
  %2010 = vmatpush.msra.mxu0 0.0
  %2011 = vmatpush.msra.mxu0 0.0
  %2012 = vmatpush.msra.mxu0 0.0
  %2013 = vmatpush.msra.mxu0 0.0
  %2014 = vmatpush.msra.mxu0 0.0
  %2015 = vmatpush.msra.mxu0 %v708
  %2016 = vmatpush.msra.mxu0 %v687
  %2017 = vmatpush.msra.mxu0 %v683
  %2018 = vmatmul.f32.gmra.mxu0 %v1980
  %v2019 = vpop.f32.mrf.mxu0
  %v2020 = vadd.f32 0.0, %v2019
  %2021 = vdwg.mxu0
  %2022 = vmatpush.msra.mxu0 0.0
  %2023 = vmatpush.msra.mxu0 0.0
  %2024 = vmatpush.msra.mxu0 0.0
  %2025 = vmatpush.msra.mxu0 0.0
  %2026 = vmatpush.msra.mxu0 0.0
  %2027 = vmatpush.msra.mxu0 0.0
  %2028 = vmatpush.msra.mxu0 0.0
  %2029 = vmatpush.msra.mxu0 0.0
  %2030 = vmatpush.msra.mxu0 0.0
  %2031 = vmatpush.msra.mxu0 0.0
  %2032 = vmatpush.msra.mxu0 0.0
  %2033 = vmatpush.msra.mxu0 0.0
  %2034 = vmatpush.msra.mxu0 0.0
  %2035 = vmatpush.msra.mxu0 %v711
  %2036 = vmatpush.msra.mxu0 %v688
  %2037 = vmatpush.msra.mxu0 %v684
  %2038 = vmatmul.f32.gmra.mxu0 %v1980
  %v2039 = vpop.f32.mrf.mxu0
  %v2040 = vadd.f32 0.0, %v2039
  %2041 = vdwg.mxu0
  %2042 = vmatpush.msra.mxu0 0.0
  %2043 = vmatpush.msra.mxu0 0.0
  %2044 = vmatpush.msra.mxu0 0.0
  %2045 = vmatpush.msra.mxu0 0.0
  %2046 = vmatpush.msra.mxu0 0.0
  %2047 = vmatpush.msra.mxu0 0.0
  %2048 = vmatpush.msra.mxu0 0.0
  %2049 = vmatpush.msra.mxu0 0.0
  %2050 = vmatpush.msra.mxu0 0.0
  %2051 = vmatpush.msra.mxu0 0.0
  %2052 = vmatpush.msra.mxu0 0.0
  %2053 = vmatpush.msra.mxu0 0.0
  %2054 = vmatpush.msra.mxu0 0.0
  %2055 = vmatpush.msra.mxu0 %v714
  %2056 = vmatpush.msra.mxu0 %v689
  %2057 = vmatpush.msra.mxu0 %v685
  %2058 = vmatmul.f32.gmra.mxu0 %v1980
  %v2059 = vpop.f32.mrf.mxu0
  %v2060 = vadd.f32 0.0, %v2059
  %2061 = vdwg.mxu0
  %v2066 = vrot.slane %v2000, 2
  %v2067 = vrot.slane %v2020, 2
  %v2068 = vrot.slane %v2040, 2
  %v2069 = vrot.slane %v2060, 2
  %v2074 = vadd.f32 %v1970, %v2066
  %v2075 = vadd.f32 %v1971, %v2067
  %v2076 = vadd.f32 %v1972, %v2068
  %v2077 = vadd.f32 %v1973, %v2069
  %v2078 = vadd.f32 %v1974, %v2066
  %v2079 = vadd.f32 %v1975, %v2067
  %v2080 = vadd.f32 %v1976, %v2068
  %v2081 = vadd.f32 %v1977, %v2069
  %v2082 = vxor.u32 %v2074, 2147483648
  %v2083 = vxor.u32 %v2078, 2147483648
  %v2084 = vmul.f32 %v2082, 1.442695
  %v2085 = vpow.pop %v2084
  %v2086 = vmul.f32 %v2083, 1.442695
  %v2087 = vpow.pop %v2086
  %v2088 = vadd.f32 %v2085, 1.0
  %v2089 = vadd.f32 %v2087, 1.0
  %v2090 = vrcp.pop %v2088
  %v2091 = vmul.f32 %v2088, %v2090
  %v2092 = vsub.f32 1.0, %v2091
  %v2093 = vmul.f32 %v2090, %v2092
  %v2094 = vadd.f32 %v2090, %v2093
  %vm2095 = vweird.f32 %v2088
  %vm2096 = vweird.f32 %v2090
  %vm2097 = vmor %vm2095, %vm2096
  %v2098 = vsel %vm2097, %v2090, %v2094
  %v2099 = vand.u32 2147483647, %v2088
  %vm2100 = vcmp.eq.f32.partialorder %v2099, 8.507059e+37
  %v2101 = vand.u32 %v2088, 2147483648
  %v2102 = vor.u32 1.1754944e-38, %v2101
  %v2103 = vsel %vm2100, %v2102, %v2098
  %v2104 = vmul.f32 1.0, %v2103
  %v2105 = vrcp.pop %v2089
  %v2106 = vmul.f32 %v2089, %v2105
  %v2107 = vsub.f32 1.0, %v2106
  %v2108 = vmul.f32 %v2105, %v2107
  %v2109 = vadd.f32 %v2105, %v2108
  %vm2110 = vweird.f32 %v2089
  %vm2111 = vweird.f32 %v2105
  %vm2112 = vmor %vm2110, %vm2111
  %v2113 = vsel %vm2112, %v2105, %v2109
  %v2114 = vand.u32 2147483647, %v2089
  %vm2115 = vcmp.eq.f32.partialorder %v2114, 8.507059e+37
  %v2116 = vand.u32 %v2089, 2147483648
  %v2117 = vor.u32 1.1754944e-38, %v2116
  %v2118 = vsel %vm2115, %v2117, %v2113
  %v2119 = vmul.f32 1.0, %v2118
  %v2120 = vxor.u32 %v2075, 2147483648
  %v2121 = vxor.u32 %v2079, 2147483648
  %v2122 = vmul.f32 %v2120, 1.442695
  %v2123 = vpow.pop %v2122
  %v2124 = vmul.f32 %v2121, 1.442695
  %v2125 = vpow.pop %v2124
  %v2126 = vadd.f32 %v2123, 1.0
  %v2127 = vadd.f32 %v2125, 1.0
  %v2128 = vrcp.pop %v2126
  %v2129 = vmul.f32 %v2126, %v2128
  %v2130 = vsub.f32 1.0, %v2129
  %v2131 = vmul.f32 %v2128, %v2130
  %v2132 = vadd.f32 %v2128, %v2131
  %vm2133 = vweird.f32 %v2126
  %vm2134 = vweird.f32 %v2128
  %vm2135 = vmor %vm2133, %vm2134
  %v2136 = vsel %vm2135, %v2128, %v2132
  %v2137 = vand.u32 2147483647, %v2126
  %vm2138 = vcmp.eq.f32.partialorder %v2137, 8.507059e+37
  %v2139 = vand.u32 %v2126, 2147483648
  %v2140 = vor.u32 1.1754944e-38, %v2139
  %v2141 = vsel %vm2138, %v2140, %v2136
  %v2142 = vmul.f32 1.0, %v2141
  %v2143 = vrcp.pop %v2127
  %v2144 = vmul.f32 %v2127, %v2143
  %v2145 = vsub.f32 1.0, %v2144
  %v2146 = vmul.f32 %v2143, %v2145
  %v2147 = vadd.f32 %v2143, %v2146
  %vm2148 = vweird.f32 %v2127
  %vm2149 = vweird.f32 %v2143
  %vm2150 = vmor %vm2148, %vm2149
  %v2151 = vsel %vm2150, %v2143, %v2147
  %v2152 = vand.u32 2147483647, %v2127
  %vm2153 = vcmp.eq.f32.partialorder %v2152, 8.507059e+37
  %v2154 = vand.u32 %v2127, 2147483648
  %v2155 = vor.u32 1.1754944e-38, %v2154
  %v2156 = vsel %vm2153, %v2155, %v2151
  %v2157 = vmul.f32 1.0, %v2156
  %v2158 = vtanh.pop %v2076
  %v2159 = vtanh.pop %v2080
  %v2160 = vxor.u32 %v2077, 2147483648
  %v2161 = vxor.u32 %v2081, 2147483648
  %v2162 = vmul.f32 %v2160, 1.442695
  %v2163 = vpow.pop %v2162
  %v2164 = vmul.f32 %v2161, 1.442695
  %v2165 = vpow.pop %v2164
  %v2166 = vadd.f32 %v2163, 1.0
  %v2167 = vadd.f32 %v2165, 1.0
  %v2168 = vrcp.pop %v2166
  %v2169 = vmul.f32 %v2166, %v2168
  %v2170 = vsub.f32 1.0, %v2169
  %v2171 = vmul.f32 %v2168, %v2170
  %v2172 = vadd.f32 %v2168, %v2171
  %vm2173 = vweird.f32 %v2166
  %vm2174 = vweird.f32 %v2168
  %vm2175 = vmor %vm2173, %vm2174
  %v2176 = vsel %vm2175, %v2168, %v2172
  %v2177 = vand.u32 2147483647, %v2166
  %vm2178 = vcmp.eq.f32.partialorder %v2177, 8.507059e+37
  %v2179 = vand.u32 %v2166, 2147483648
  %v2180 = vor.u32 1.1754944e-38, %v2179
  %v2181 = vsel %vm2178, %v2180, %v2176
  %v2182 = vmul.f32 1.0, %v2181
  %v2183 = vrcp.pop %v2167
  %v2184 = vmul.f32 %v2167, %v2183
  %v2185 = vsub.f32 1.0, %v2184
  %v2186 = vmul.f32 %v2183, %v2185
  %v2187 = vadd.f32 %v2183, %v2186
  %vm2188 = vweird.f32 %v2167
  %vm2189 = vweird.f32 %v2183
  %vm2190 = vmor %vm2188, %vm2189
  %v2191 = vsel %vm2190, %v2183, %v2187
  %v2192 = vand.u32 2147483647, %v2167
  %vm2193 = vcmp.eq.f32.partialorder %v2192, 8.507059e+37
  %v2194 = vand.u32 %v2167, 2147483648
  %v2195 = vor.u32 1.1754944e-38, %v2194
  %v2196 = vsel %vm2193, %v2195, %v2191
  %v2197 = vmul.f32 1.0, %v2196
  %v2199 = vrot.slane %v1964, 3
  %v2201 = vmul.f32 %v2142, %v2199
  %v2202 = vmul.f32 %v2157, %v2199
  %v2203 = vmul.f32 %v2104, %v2158
  %v2204 = vmul.f32 %v2119, %v2159
  %v2205 = vadd.f32 %v2201, %v2203
  %v2206 = vadd.f32 %v2202, %v2204
  %v2207 = vtanh.pop %v2205
  %v2208 = vtanh.pop %v2206
  %v2209 = vmul.f32 %v2182, %v2207
  %v2210 = vmul.f32 %v2197, %v2208
  %s2211 = scalar_lea.vmem %s6, 48
  %vm2212 = vcmask 162822
  %2213 = vst.msk [vmem:[%s2211 - $0x6] sm:$0xc0] %vm2212, %v2209
  %vm2214 = vcmask 157696
  %2215 = vst.msk [vmem:[%s2211 + $0x2] sm:$0x7] %vm2214, %v2210
  %v2216 = vld [vmem:[#allocation2 + $0x80] sm:$0xf8]
  %v2217 = vld [vmem:[#allocation2 + $0x88] sm:$0xf8]
  %v2218 = vld [vmem:[#allocation2 + $0x90] sm:$0xf8]
  %v2219 = vld [vmem:[#allocation2 + $0x98] sm:$0xf8]
  %vm2222 = vcmask 1041408
  %v2223 = vrot.slane %v2209, 6
  %v2224 = vrot.slane %v2210, 6
  %v2225 = vsel %vm2222, %v2223, %v2224
  %v2226 = vsel %vm700, %v2225, 0
  %2228 = vmatpush.msra.mxu0 0.0
  %2229 = vmatpush.msra.mxu0 0.0
  %2230 = vmatpush.msra.mxu0 0.0
  %2231 = vmatpush.msra.mxu0 0.0
  %2232 = vmatpush.msra.mxu0 0.0
  %2233 = vmatpush.msra.mxu0 0.0
  %2234 = vmatpush.msra.mxu0 0.0
  %2235 = vmatpush.msra.mxu0 0.0
  %2236 = vmatpush.msra.mxu0 0.0
  %2237 = vmatpush.msra.mxu0 0.0
  %2238 = vmatpush.msra.mxu0 0.0
  %2239 = vmatpush.msra.mxu0 0.0
  %2240 = vmatpush.msra.mxu0 0.0
  %2241 = vmatpush.msra.mxu0 %v705
  %2242 = vmatpush.msra.mxu0 %v686
  %2243 = vmatpush.msra.mxu0 %v682
  %2244 = vmatmul.f32.gmra.mxu0 %v2226
  %v2245 = vpop.f32.mrf.mxu0
  %v2246 = vadd.f32 0.0, %v2245
  %2247 = vdwg.mxu0
  %2248 = vmatpush.msra.mxu0 0.0
  %2249 = vmatpush.msra.mxu0 0.0
  %2250 = vmatpush.msra.mxu0 0.0
  %2251 = vmatpush.msra.mxu0 0.0
  %2252 = vmatpush.msra.mxu0 0.0
  %2253 = vmatpush.msra.mxu0 0.0
  %2254 = vmatpush.msra.mxu0 0.0
  %2255 = vmatpush.msra.mxu0 0.0
  %2256 = vmatpush.msra.mxu0 0.0
  %2257 = vmatpush.msra.mxu0 0.0
  %2258 = vmatpush.msra.mxu0 0.0
  %2259 = vmatpush.msra.mxu0 0.0
  %2260 = vmatpush.msra.mxu0 0.0
  %2261 = vmatpush.msra.mxu0 %v708
  %2262 = vmatpush.msra.mxu0 %v687
  %2263 = vmatpush.msra.mxu0 %v683
  %2264 = vmatmul.f32.gmra.mxu0 %v2226
  %v2265 = vpop.f32.mrf.mxu0
  %v2266 = vadd.f32 0.0, %v2265
  %2267 = vdwg.mxu0
  %2268 = vmatpush.msra.mxu0 0.0
  %2269 = vmatpush.msra.mxu0 0.0
  %2270 = vmatpush.msra.mxu0 0.0
  %2271 = vmatpush.msra.mxu0 0.0
  %2272 = vmatpush.msra.mxu0 0.0
  %2273 = vmatpush.msra.mxu0 0.0
  %2274 = vmatpush.msra.mxu0 0.0
  %2275 = vmatpush.msra.mxu0 0.0
  %2276 = vmatpush.msra.mxu0 0.0
  %2277 = vmatpush.msra.mxu0 0.0
  %2278 = vmatpush.msra.mxu0 0.0
  %2279 = vmatpush.msra.mxu0 0.0
  %2280 = vmatpush.msra.mxu0 0.0
  %2281 = vmatpush.msra.mxu0 %v711
  %2282 = vmatpush.msra.mxu0 %v688
  %2283 = vmatpush.msra.mxu0 %v684
  %2284 = vmatmul.f32.gmra.mxu0 %v2226
  %v2285 = vpop.f32.mrf.mxu0
  %v2286 = vadd.f32 0.0, %v2285
  %2287 = vdwg.mxu0
  %2288 = vmatpush.msra.mxu0 0.0
  %2289 = vmatpush.msra.mxu0 0.0
  %2290 = vmatpush.msra.mxu0 0.0
  %2291 = vmatpush.msra.mxu0 0.0
  %2292 = vmatpush.msra.mxu0 0.0
  %2293 = vmatpush.msra.mxu0 0.0
  %2294 = vmatpush.msra.mxu0 0.0
  %2295 = vmatpush.msra.mxu0 0.0
  %2296 = vmatpush.msra.mxu0 0.0
  %2297 = vmatpush.msra.mxu0 0.0
  %2298 = vmatpush.msra.mxu0 0.0
  %2299 = vmatpush.msra.mxu0 0.0
  %2300 = vmatpush.msra.mxu0 0.0
  %2301 = vmatpush.msra.mxu0 %v714
  %2302 = vmatpush.msra.mxu0 %v689
  %2303 = vmatpush.msra.mxu0 %v685
  %2304 = vmatmul.f32.gmra.mxu0 %v2226
  %v2305 = vpop.f32.mrf.mxu0
  %v2306 = vadd.f32 0.0, %v2305
  %2307 = vdwg.mxu0
  %v2312 = vrot.slane %v2246, 5
  %v2313 = vrot.slane %v2266, 5
  %v2314 = vrot.slane %v2286, 5
  %v2315 = vrot.slane %v2306, 5
  %v2320 = vadd.f32 %v2216, %v2312
  %v2321 = vadd.f32 %v2217, %v2313
  %v2322 = vadd.f32 %v2218, %v2314
  %v2323 = vadd.f32 %v2219, %v2315
  %v2324 = vxor.u32 %v2320, 2147483648
  %v2325 = vmul.f32 %v2324, 1.442695
  %v2326 = vpow.pop %v2325
  %v2327 = vadd.f32 %v2326, 1.0
  %v2328 = vrcp.pop %v2327
  %v2329 = vmul.f32 %v2327, %v2328
  %v2330 = vsub.f32 1.0, %v2329
  %v2331 = vmul.f32 %v2328, %v2330
  %v2332 = vadd.f32 %v2328, %v2331
  %vm2333 = vweird.f32 %v2327
  %vm2334 = vweird.f32 %v2328
  %vm2335 = vmor %vm2333, %vm2334
  %v2336 = vsel %vm2335, %v2328, %v2332
  %v2337 = vand.u32 2147483647, %v2327
  %vm2338 = vcmp.eq.f32.partialorder %v2337, 8.507059e+37
  %v2339 = vand.u32 %v2327, 2147483648
  %v2340 = vor.u32 1.1754944e-38, %v2339
  %v2341 = vsel %vm2338, %v2340, %v2336
  %v2342 = vmul.f32 1.0, %v2341
  %v2343 = vxor.u32 %v2321, 2147483648
  %v2344 = vmul.f32 %v2343, 1.442695
  %v2345 = vpow.pop %v2344
  %v2346 = vadd.f32 %v2345, 1.0
  %v2347 = vrcp.pop %v2346
  %v2348 = vmul.f32 %v2346, %v2347
  %v2349 = vsub.f32 1.0, %v2348
  %v2350 = vmul.f32 %v2347, %v2349
  %v2351 = vadd.f32 %v2347, %v2350
  %vm2352 = vweird.f32 %v2346
  %vm2353 = vweird.f32 %v2347
  %vm2354 = vmor %vm2352, %vm2353
  %v2355 = vsel %vm2354, %v2347, %v2351
  %v2356 = vand.u32 2147483647, %v2346
  %vm2357 = vcmp.eq.f32.partialorder %v2356, 8.507059e+37
  %v2358 = vand.u32 %v2346, 2147483648
  %v2359 = vor.u32 1.1754944e-38, %v2358
  %v2360 = vsel %vm2357, %v2359, %v2355
  %v2361 = vmul.f32 1.0, %v2360
  %v2362 = vtanh.pop %v2322
  %v2363 = vxor.u32 %v2323, 2147483648
  %v2364 = vmul.f32 %v2363, 1.442695
  %v2365 = vpow.pop %v2364
  %v2366 = vadd.f32 %v2365, 1.0
  %v2367 = vrcp.pop %v2366
  %v2368 = vmul.f32 %v2366, %v2367
  %v2369 = vsub.f32 1.0, %v2368
  %v2370 = vmul.f32 %v2367, %v2369
  %v2371 = vadd.f32 %v2367, %v2370
  %vm2372 = vweird.f32 %v2366
  %vm2373 = vweird.f32 %v2367
  %vm2374 = vmor %vm2372, %vm2373
  %v2375 = vsel %vm2374, %v2367, %v2371
  %v2376 = vand.u32 2147483647, %v2366
  %vm2377 = vcmp.eq.f32.partialorder %v2376, 8.507059e+37
  %v2378 = vand.u32 %v2366, 2147483648
  %v2379 = vor.u32 1.1754944e-38, %v2378
  %v2380 = vsel %vm2377, %v2379, %v2375
  %v2381 = vmul.f32 1.0, %v2380
  %v2384 = vrot.slane %v2205, 3
  %v2385 = vrot.slane %v2206, 3
  %v2386 = vsel %vm1278, %v2384, %v2385
  %v2388 = vmul.f32 %v2361, %v2386
  %v2389 = vmul.f32 %v2342, %v2362
  %v2390 = vadd.f32 %v2388, %v2389
  %v2391 = vtanh.pop %v2390
  %v2392 = vmul.f32 %v2381, %v2391
  %s2393 = scalar_lea.vmem %s6, 56
  %vm2394 = vcmask 162819
  %2395 = vst.msk [vmem:[%s2393 - $0x3] sm:$0xf8] %vm2394, %v2392
  %v2396 = vld [vmem:[#allocation2 + $0xa0] sm:$0x1f]
  %v2397 = vld [vmem:[#allocation2 + $0xa8] sm:$0x1f]
  %v2398 = vld [vmem:[#allocation2 + $0xb0] sm:$0x1f]
  %v2399 = vld [vmem:[#allocation2 + $0xb8] sm:$0x1f]
  %v2401 = vrot.slane %v2392, 3
  %v2402 = vsel %vm700, %v2401, 0
  %2404 = vmatpush.msra.mxu0 0.0
  %2405 = vmatpush.msra.mxu0 0.0
  %2406 = vmatpush.msra.mxu0 0.0
  %2407 = vmatpush.msra.mxu0 0.0
  %2408 = vmatpush.msra.mxu0 0.0
  %2409 = vmatpush.msra.mxu0 0.0
  %2410 = vmatpush.msra.mxu0 0.0
  %2411 = vmatpush.msra.mxu0 0.0
  %2412 = vmatpush.msra.mxu0 0.0
  %2413 = vmatpush.msra.mxu0 0.0
  %2414 = vmatpush.msra.mxu0 0.0
  %2415 = vmatpush.msra.mxu0 0.0
  %2416 = vmatpush.msra.mxu0 0.0
  %2417 = vmatpush.msra.mxu0 %v705
  %2418 = vmatpush.msra.mxu0 %v686
  %2419 = vmatpush.msra.mxu0 %v682
  %2420 = vmatmul.f32.gmra.mxu0 %v2402
  %v2421 = vpop.f32.mrf.mxu0
  %v2422 = vadd.f32 0.0, %v2421
  %2423 = vdwg.mxu0
  %2424 = vmatpush.msra.mxu0 0.0
  %2425 = vmatpush.msra.mxu0 0.0
  %2426 = vmatpush.msra.mxu0 0.0
  %2427 = vmatpush.msra.mxu0 0.0
  %2428 = vmatpush.msra.mxu0 0.0
  %2429 = vmatpush.msra.mxu0 0.0
  %2430 = vmatpush.msra.mxu0 0.0
  %2431 = vmatpush.msra.mxu0 0.0
  %2432 = vmatpush.msra.mxu0 0.0
  %2433 = vmatpush.msra.mxu0 0.0
  %2434 = vmatpush.msra.mxu0 0.0
  %2435 = vmatpush.msra.mxu0 0.0
  %2436 = vmatpush.msra.mxu0 0.0
  %2437 = vmatpush.msra.mxu0 %v708
  %2438 = vmatpush.msra.mxu0 %v687
  %2439 = vmatpush.msra.mxu0 %v683
  %2440 = vmatmul.f32.gmra.mxu0 %v2402
  %v2441 = vpop.f32.mrf.mxu0
  %v2442 = vadd.f32 0.0, %v2441
  %2443 = vdwg.mxu0
  %2444 = vmatpush.msra.mxu0 0.0
  %2445 = vmatpush.msra.mxu0 0.0
  %2446 = vmatpush.msra.mxu0 0.0
  %2447 = vmatpush.msra.mxu0 0.0
  %2448 = vmatpush.msra.mxu0 0.0
  %2449 = vmatpush.msra.mxu0 0.0
  %2450 = vmatpush.msra.mxu0 0.0
  %2451 = vmatpush.msra.mxu0 0.0
  %2452 = vmatpush.msra.mxu0 0.0
  %2453 = vmatpush.msra.mxu0 0.0
  %2454 = vmatpush.msra.mxu0 0.0
  %2455 = vmatpush.msra.mxu0 0.0
  %2456 = vmatpush.msra.mxu0 0.0
  %2457 = vmatpush.msra.mxu0 %v711
  %2458 = vmatpush.msra.mxu0 %v688
  %2459 = vmatpush.msra.mxu0 %v684
  %2460 = vmatmul.f32.gmra.mxu0 %v2402
  %v2461 = vpop.f32.mrf.mxu0
  %v2462 = vadd.f32 0.0, %v2461
  %2463 = vdwg.mxu0
  %2464 = vmatpush.msra.mxu0 0.0
  %2465 = vmatpush.msra.mxu0 0.0
  %2466 = vmatpush.msra.mxu0 0.0
  %2467 = vmatpush.msra.mxu0 0.0
  %2468 = vmatpush.msra.mxu0 0.0
  %2469 = vmatpush.msra.mxu0 0.0
  %2470 = vmatpush.msra.mxu0 0.0
  %2471 = vmatpush.msra.mxu0 0.0
  %2472 = vmatpush.msra.mxu0 0.0
  %2473 = vmatpush.msra.mxu0 0.0
  %2474 = vmatpush.msra.mxu0 0.0
  %2475 = vmatpush.msra.mxu0 0.0
  %2476 = vmatpush.msra.mxu0 0.0
  %2477 = vmatpush.msra.mxu0 %v714
  %2478 = vmatpush.msra.mxu0 %v689
  %2479 = vmatpush.msra.mxu0 %v685
  %2480 = vmatmul.f32.gmra.mxu0 %v2402
  %v2481 = vpop.f32.mrf.mxu0
  %v2482 = vadd.f32 0.0, %v2481
  %2483 = vdwg.mxu0
  %v2484 = vadd.f32 %v2396, %v2422
  %v2485 = vadd.f32 %v2397, %v2442
  %v2486 = vadd.f32 %v2398, %v2462
  %v2487 = vadd.f32 %v2399, %v2482
  %v2488 = vxor.u32 %v2484, 2147483648
  %v2489 = vmul.f32 %v2488, 1.442695
  %v2490 = vpow.pop %v2489
  %v2491 = vadd.f32 %v2490, 1.0
  %v2492 = vrcp.pop %v2491
  %v2493 = vmul.f32 %v2491, %v2492
  %v2494 = vsub.f32 1.0, %v2493
  %v2495 = vmul.f32 %v2492, %v2494
  %v2496 = vadd.f32 %v2492, %v2495
  %vm2497 = vweird.f32 %v2491
  %vm2498 = vweird.f32 %v2492
  %vm2499 = vmor %vm2497, %vm2498
  %v2500 = vsel %vm2499, %v2492, %v2496
  %v2501 = vand.u32 2147483647, %v2491
  %vm2502 = vcmp.eq.f32.partialorder %v2501, 8.507059e+37
  %v2503 = vand.u32 %v2491, 2147483648
  %v2504 = vor.u32 1.1754944e-38, %v2503
  %v2505 = vsel %vm2502, %v2504, %v2500
  %v2506 = vmul.f32 1.0, %v2505
  %v2507 = vxor.u32 %v2485, 2147483648
  %v2508 = vmul.f32 %v2507, 1.442695
  %v2509 = vpow.pop %v2508
  %v2510 = vadd.f32 %v2509, 1.0
  %v2511 = vrcp.pop %v2510
  %v2512 = vmul.f32 %v2510, %v2511
  %v2513 = vsub.f32 1.0, %v2512
  %v2514 = vmul.f32 %v2511, %v2513
  %v2515 = vadd.f32 %v2511, %v2514
  %vm2516 = vweird.f32 %v2510
  %vm2517 = vweird.f32 %v2511
  %vm2518 = vmor %vm2516, %vm2517
  %v2519 = vsel %vm2518, %v2511, %v2515
  %v2520 = vand.u32 2147483647, %v2510
  %vm2521 = vcmp.eq.f32.partialorder %v2520, 8.507059e+37
  %v2522 = vand.u32 %v2510, 2147483648
  %v2523 = vor.u32 1.1754944e-38, %v2522
  %v2524 = vsel %vm2521, %v2523, %v2519
  %v2525 = vmul.f32 1.0, %v2524
  %v2526 = vtanh.pop %v2486
  %v2527 = vxor.u32 %v2487, 2147483648
  %v2528 = vmul.f32 %v2527, 1.442695
  %v2529 = vpow.pop %v2528
  %v2530 = vadd.f32 %v2529, 1.0
  %v2531 = vrcp.pop %v2530
  %v2532 = vmul.f32 %v2530, %v2531
  %v2533 = vsub.f32 1.0, %v2532
  %v2534 = vmul.f32 %v2531, %v2533
  %v2535 = vadd.f32 %v2531, %v2534
  %vm2536 = vweird.f32 %v2530
  %vm2537 = vweird.f32 %v2531
  %vm2538 = vmor %vm2536, %vm2537
  %v2539 = vsel %vm2538, %v2531, %v2535
  %v2540 = vand.u32 2147483647, %v2530
  %vm2541 = vcmp.eq.f32.partialorder %v2540, 8.507059e+37
  %v2542 = vand.u32 %v2530, 2147483648
  %v2543 = vor.u32 1.1754944e-38, %v2542
  %v2544 = vsel %vm2541, %v2543, %v2539
  %v2545 = vmul.f32 1.0, %v2544
  %v2547 = vrot.slane %v2390, 3
  %v2549 = vmul.f32 %v2525, %v2547
  %v2550 = vmul.f32 %v2506, %v2526
  %v2551 = vadd.f32 %v2549, %v2550
  %v2552 = vtanh.pop %v2551
  %v2553 = vmul.f32 %v2545, %v2552
  %s2554 = scalar_lea.vmem %s6, 64
  %2555 = vst.msk [vmem:[%s2554] sm:$0x1f] %vm863, %v2553
  %v2556 = vld [vmem:[#allocation2 + $0xa0] sm:$0xe0]
  %v2557 = vld [vmem:[#allocation2 + $0xa8] sm:$0xe0]
  %v2558 = vld [vmem:[#allocation2 + $0xb0] sm:$0xe0]
  %v2559 = vld [vmem:[#allocation2 + $0xb8] sm:$0xe0]
  %v2560 = vld [vmem:[#allocation2 + $0xc0] sm:$0x3]
  %v2561 = vld [vmem:[#allocation2 + $0xc8] sm:$0x3]
  %v2562 = vld [vmem:[#allocation2 + $0xd0] sm:$0x3]
  %v2563 = vld [vmem:[#allocation2 + $0xd8] sm:$0x3]
  %v2565 = vsel %vm700, %v2553, 0
  %2567 = vmatpush.msra.mxu0 0.0
  %2568 = vmatpush.msra.mxu0 0.0
  %2569 = vmatpush.msra.mxu0 0.0
  %2570 = vmatpush.msra.mxu0 0.0
  %2571 = vmatpush.msra.mxu0 0.0
  %2572 = vmatpush.msra.mxu0 0.0
  %2573 = vmatpush.msra.mxu0 0.0
  %2574 = vmatpush.msra.mxu0 0.0
  %2575 = vmatpush.msra.mxu0 0.0
  %2576 = vmatpush.msra.mxu0 0.0
  %2577 = vmatpush.msra.mxu0 0.0
  %2578 = vmatpush.msra.mxu0 0.0
  %2579 = vmatpush.msra.mxu0 0.0
  %2580 = vmatpush.msra.mxu0 %v705
  %2581 = vmatpush.msra.mxu0 %v686
  %2582 = vmatpush.msra.mxu0 %v682
  %2583 = vmatmul.f32.gmra.mxu0 %v2565
  %v2584 = vpop.f32.mrf.mxu0
  %v2585 = vadd.f32 0.0, %v2584
  %2586 = vdwg.mxu0
  %2587 = vmatpush.msra.mxu0 0.0
  %2588 = vmatpush.msra.mxu0 0.0
  %2589 = vmatpush.msra.mxu0 0.0
  %2590 = vmatpush.msra.mxu0 0.0
  %2591 = vmatpush.msra.mxu0 0.0
  %2592 = vmatpush.msra.mxu0 0.0
  %2593 = vmatpush.msra.mxu0 0.0
  %2594 = vmatpush.msra.mxu0 0.0
  %2595 = vmatpush.msra.mxu0 0.0
  %2596 = vmatpush.msra.mxu0 0.0
  %2597 = vmatpush.msra.mxu0 0.0
  %2598 = vmatpush.msra.mxu0 0.0
  %2599 = vmatpush.msra.mxu0 0.0
  %2600 = vmatpush.msra.mxu0 %v708
  %2601 = vmatpush.msra.mxu0 %v687
  %2602 = vmatpush.msra.mxu0 %v683
  %2603 = vmatmul.f32.gmra.mxu0 %v2565
  %v2604 = vpop.f32.mrf.mxu0
  %v2605 = vadd.f32 0.0, %v2604
  %2606 = vdwg.mxu0
  %2607 = vmatpush.msra.mxu0 0.0
  %2608 = vmatpush.msra.mxu0 0.0
  %2609 = vmatpush.msra.mxu0 0.0
  %2610 = vmatpush.msra.mxu0 0.0
  %2611 = vmatpush.msra.mxu0 0.0
  %2612 = vmatpush.msra.mxu0 0.0
  %2613 = vmatpush.msra.mxu0 0.0
  %2614 = vmatpush.msra.mxu0 0.0
  %2615 = vmatpush.msra.mxu0 0.0
  %2616 = vmatpush.msra.mxu0 0.0
  %2617 = vmatpush.msra.mxu0 0.0
  %2618 = vmatpush.msra.mxu0 0.0
  %2619 = vmatpush.msra.mxu0 0.0
  %2620 = vmatpush.msra.mxu0 %v711
  %2621 = vmatpush.msra.mxu0 %v688
  %2622 = vmatpush.msra.mxu0 %v684
  %2623 = vmatmul.f32.gmra.mxu0 %v2565
  %v2624 = vpop.f32.mrf.mxu0
  %v2625 = vadd.f32 0.0, %v2624
  %2626 = vdwg.mxu0
  %2627 = vmatpush.msra.mxu0 0.0
  %2628 = vmatpush.msra.mxu0 0.0
  %2629 = vmatpush.msra.mxu0 0.0
  %2630 = vmatpush.msra.mxu0 0.0
  %2631 = vmatpush.msra.mxu0 0.0
  %2632 = vmatpush.msra.mxu0 0.0
  %2633 = vmatpush.msra.mxu0 0.0
  %2634 = vmatpush.msra.mxu0 0.0
  %2635 = vmatpush.msra.mxu0 0.0
  %2636 = vmatpush.msra.mxu0 0.0
  %2637 = vmatpush.msra.mxu0 0.0
  %2638 = vmatpush.msra.mxu0 0.0
  %2639 = vmatpush.msra.mxu0 0.0
  %2640 = vmatpush.msra.mxu0 %v714
  %2641 = vmatpush.msra.mxu0 %v689
  %2642 = vmatpush.msra.mxu0 %v685
  %2643 = vmatmul.f32.gmra.mxu0 %v2565
  %v2644 = vpop.f32.mrf.mxu0
  %v2645 = vadd.f32 0.0, %v2644
  %2646 = vdwg.mxu0
  %v2651 = vrot.slane %v2585, 3
  %v2652 = vrot.slane %v2605, 3
  %v2653 = vrot.slane %v2625, 3
  %v2654 = vrot.slane %v2645, 3
  %v2659 = vadd.f32 %v2556, %v2651
  %v2660 = vadd.f32 %v2557, %v2652
  %v2661 = vadd.f32 %v2558, %v2653
  %v2662 = vadd.f32 %v2559, %v2654
  %v2663 = vadd.f32 %v2560, %v2651
  %v2664 = vadd.f32 %v2561, %v2652
  %v2665 = vadd.f32 %v2562, %v2653
  %v2666 = vadd.f32 %v2563, %v2654
  %v2667 = vxor.u32 %v2659, 2147483648
  %v2668 = vxor.u32 %v2663, 2147483648
  %v2669 = vmul.f32 %v2667, 1.442695
  %v2670 = vpow.pop %v2669
  %v2671 = vmul.f32 %v2668, 1.442695
  %v2672 = vpow.pop %v2671
  %v2673 = vadd.f32 %v2670, 1.0
  %v2674 = vadd.f32 %v2672, 1.0
  %v2675 = vrcp.pop %v2673
  %v2676 = vmul.f32 %v2673, %v2675
  %v2677 = vsub.f32 1.0, %v2676
  %v2678 = vmul.f32 %v2675, %v2677
  %v2679 = vadd.f32 %v2675, %v2678
  %vm2680 = vweird.f32 %v2673
  %vm2681 = vweird.f32 %v2675
  %vm2682 = vmor %vm2680, %vm2681
  %v2683 = vsel %vm2682, %v2675, %v2679
  %v2684 = vand.u32 2147483647, %v2673
  %vm2685 = vcmp.eq.f32.partialorder %v2684, 8.507059e+37
  %v2686 = vand.u32 %v2673, 2147483648
  %v2687 = vor.u32 1.1754944e-38, %v2686
  %v2688 = vsel %vm2685, %v2687, %v2683
  %v2689 = vmul.f32 1.0, %v2688
  %v2690 = vrcp.pop %v2674
  %v2691 = vmul.f32 %v2674, %v2690
  %v2692 = vsub.f32 1.0, %v2691
  %v2693 = vmul.f32 %v2690, %v2692
  %v2694 = vadd.f32 %v2690, %v2693
  %vm2695 = vweird.f32 %v2674
  %vm2696 = vweird.f32 %v2690
  %vm2697 = vmor %vm2695, %vm2696
  %v2698 = vsel %vm2697, %v2690, %v2694
  %v2699 = vand.u32 2147483647, %v2674
  %vm2700 = vcmp.eq.f32.partialorder %v2699, 8.507059e+37
  %v2701 = vand.u32 %v2674, 2147483648
  %v2702 = vor.u32 1.1754944e-38, %v2701
  %v2703 = vsel %vm2700, %v2702, %v2698
  %v2704 = vmul.f32 1.0, %v2703
  %v2705 = vxor.u32 %v2660, 2147483648
  %v2706 = vxor.u32 %v2664, 2147483648
  %v2707 = vmul.f32 %v2705, 1.442695
  %v2708 = vpow.pop %v2707
  %v2709 = vmul.f32 %v2706, 1.442695
  %v2710 = vpow.pop %v2709
  %v2711 = vadd.f32 %v2708, 1.0
  %v2712 = vadd.f32 %v2710, 1.0
  %v2713 = vrcp.pop %v2711
  %v2714 = vmul.f32 %v2711, %v2713
  %v2715 = vsub.f32 1.0, %v2714
  %v2716 = vmul.f32 %v2713, %v2715
  %v2717 = vadd.f32 %v2713, %v2716
  %vm2718 = vweird.f32 %v2711
  %vm2719 = vweird.f32 %v2713
  %vm2720 = vmor %vm2718, %vm2719
  %v2721 = vsel %vm2720, %v2713, %v2717
  %v2722 = vand.u32 2147483647, %v2711
  %vm2723 = vcmp.eq.f32.partialorder %v2722, 8.507059e+37
  %v2724 = vand.u32 %v2711, 2147483648
  %v2725 = vor.u32 1.1754944e-38, %v2724
  %v2726 = vsel %vm2723, %v2725, %v2721
  %v2727 = vmul.f32 1.0, %v2726
  %v2728 = vrcp.pop %v2712
  %v2729 = vmul.f32 %v2712, %v2728
  %v2730 = vsub.f32 1.0, %v2729
  %v2731 = vmul.f32 %v2728, %v2730
  %v2732 = vadd.f32 %v2728, %v2731
  %vm2733 = vweird.f32 %v2712
  %vm2734 = vweird.f32 %v2728
  %vm2735 = vmor %vm2733, %vm2734
  %v2736 = vsel %vm2735, %v2728, %v2732
  %v2737 = vand.u32 2147483647, %v2712
  %vm2738 = vcmp.eq.f32.partialorder %v2737, 8.507059e+37
  %v2739 = vand.u32 %v2712, 2147483648
  %v2740 = vor.u32 1.1754944e-38, %v2739
  %v2741 = vsel %vm2738, %v2740, %v2736
  %v2742 = vmul.f32 1.0, %v2741
  %v2743 = vtanh.pop %v2661
  %v2744 = vtanh.pop %v2665
  %v2745 = vxor.u32 %v2662, 2147483648
  %v2746 = vxor.u32 %v2666, 2147483648
  %v2747 = vmul.f32 %v2745, 1.442695
  %v2748 = vpow.pop %v2747
  %v2749 = vmul.f32 %v2746, 1.442695
  %v2750 = vpow.pop %v2749
  %v2751 = vadd.f32 %v2748, 1.0
  %v2752 = vadd.f32 %v2750, 1.0
  %v2753 = vrcp.pop %v2751
  %v2754 = vmul.f32 %v2751, %v2753
  %v2755 = vsub.f32 1.0, %v2754
  %v2756 = vmul.f32 %v2753, %v2755
  %v2757 = vadd.f32 %v2753, %v2756
  %vm2758 = vweird.f32 %v2751
  %vm2759 = vweird.f32 %v2753
  %vm2760 = vmor %vm2758, %vm2759
  %v2761 = vsel %vm2760, %v2753, %v2757
  %v2762 = vand.u32 2147483647, %v2751
  %vm2763 = vcmp.eq.f32.partialorder %v2762, 8.507059e+37
  %v2764 = vand.u32 %v2751, 2147483648
  %v2765 = vor.u32 1.1754944e-38, %v2764
  %v2766 = vsel %vm2763, %v2765, %v2761
  %v2767 = vmul.f32 1.0, %v2766
  %v2768 = vrcp.pop %v2752
  %v2769 = vmul.f32 %v2752, %v2768
  %v2770 = vsub.f32 1.0, %v2769
  %v2771 = vmul.f32 %v2768, %v2770
  %v2772 = vadd.f32 %v2768, %v2771
  %vm2773 = vweird.f32 %v2752
  %vm2774 = vweird.f32 %v2768
  %vm2775 = vmor %vm2773, %vm2774
  %v2776 = vsel %vm2775, %v2768, %v2772
  %v2777 = vand.u32 2147483647, %v2752
  %vm2778 = vcmp.eq.f32.partialorder %v2777, 8.507059e+37
  %v2779 = vand.u32 %v2752, 2147483648
  %v2780 = vor.u32 1.1754944e-38, %v2779
  %v2781 = vsel %vm2778, %v2780, %v2776
  %v2782 = vmul.f32 1.0, %v2781
  %v2784 = vrot.slane %v2551, 3
  %v2786 = vmul.f32 %v2727, %v2784
  %v2787 = vmul.f32 %v2742, %v2784
  %v2788 = vmul.f32 %v2689, %v2743
  %v2789 = vmul.f32 %v2704, %v2744
  %v2790 = vadd.f32 %v2786, %v2788
  %v2791 = vadd.f32 %v2787, %v2789
  %v2792 = vtanh.pop %v2790
  %v2793 = vtanh.pop %v2791
  %v2794 = vmul.f32 %v2767, %v2792
  %v2795 = vmul.f32 %v2782, %v2793
  %s2796 = scalar_lea.vmem %s6, 72
  %2797 = vst.msk [vmem:[%s2796 - $0x5] sm:$0xe0] %vm1106, %v2794
  %2798 = vst.msk [vmem:[%s2796 + $0x3] sm:$0x3] %vm1108, %v2795
  %v2799 = vld [vmem:[#allocation2 + $0xc0] sm:$0x7c]
  %v2800 = vld [vmem:[#allocation2 + $0xc8] sm:$0x7c]
  %v2801 = vld [vmem:[#allocation2 + $0xd0] sm:$0x7c]
  %v2802 = vld [vmem:[#allocation2 + $0xd8] sm:$0x7c]
  %v2805 = vrot.slane %v2794, 5
  %v2806 = vrot.slane %v2795, 5
  %v2807 = vsel %vm1116, %v2805, %v2806
  %v2808 = vsel %vm700, %v2807, 0
  %2810 = vmatpush.msra.mxu0 0.0
  %2811 = vmatpush.msra.mxu0 0.0
  %2812 = vmatpush.msra.mxu0 0.0
  %2813 = vmatpush.msra.mxu0 0.0
  %2814 = vmatpush.msra.mxu0 0.0
  %2815 = vmatpush.msra.mxu0 0.0
  %2816 = vmatpush.msra.mxu0 0.0
  %2817 = vmatpush.msra.mxu0 0.0
  %2818 = vmatpush.msra.mxu0 0.0
  %2819 = vmatpush.msra.mxu0 0.0
  %2820 = vmatpush.msra.mxu0 0.0
  %2821 = vmatpush.msra.mxu0 0.0
  %2822 = vmatpush.msra.mxu0 0.0
  %2823 = vmatpush.msra.mxu0 %v705
  %2824 = vmatpush.msra.mxu0 %v686
  %2825 = vmatpush.msra.mxu0 %v682
  %2826 = vmatmul.f32.gmra.mxu0 %v2808
  %v2827 = vpop.f32.mrf.mxu0
  %v2828 = vadd.f32 0.0, %v2827
  %2829 = vdwg.mxu0
  %2830 = vmatpush.msra.mxu0 0.0
  %2831 = vmatpush.msra.mxu0 0.0
  %2832 = vmatpush.msra.mxu0 0.0
  %2833 = vmatpush.msra.mxu0 0.0
  %2834 = vmatpush.msra.mxu0 0.0
  %2835 = vmatpush.msra.mxu0 0.0
  %2836 = vmatpush.msra.mxu0 0.0
  %2837 = vmatpush.msra.mxu0 0.0
  %2838 = vmatpush.msra.mxu0 0.0
  %2839 = vmatpush.msra.mxu0 0.0
  %2840 = vmatpush.msra.mxu0 0.0
  %2841 = vmatpush.msra.mxu0 0.0
  %2842 = vmatpush.msra.mxu0 0.0
  %2843 = vmatpush.msra.mxu0 %v708
  %2844 = vmatpush.msra.mxu0 %v687
  %2845 = vmatpush.msra.mxu0 %v683
  %2846 = vmatmul.f32.gmra.mxu0 %v2808
  %v2847 = vpop.f32.mrf.mxu0
  %v2848 = vadd.f32 0.0, %v2847
  %2849 = vdwg.mxu0
  %2850 = vmatpush.msra.mxu0 0.0
  %2851 = vmatpush.msra.mxu0 0.0
  %2852 = vmatpush.msra.mxu0 0.0
  %2853 = vmatpush.msra.mxu0 0.0
  %2854 = vmatpush.msra.mxu0 0.0
  %2855 = vmatpush.msra.mxu0 0.0
  %2856 = vmatpush.msra.mxu0 0.0
  %2857 = vmatpush.msra.mxu0 0.0
  %2858 = vmatpush.msra.mxu0 0.0
  %2859 = vmatpush.msra.mxu0 0.0
  %2860 = vmatpush.msra.mxu0 0.0
  %2861 = vmatpush.msra.mxu0 0.0
  %2862 = vmatpush.msra.mxu0 0.0
  %2863 = vmatpush.msra.mxu0 %v711
  %2864 = vmatpush.msra.mxu0 %v688
  %2865 = vmatpush.msra.mxu0 %v684
  %2866 = vmatmul.f32.gmra.mxu0 %v2808
  %v2867 = vpop.f32.mrf.mxu0
  %v2868 = vadd.f32 0.0, %v2867
  %2869 = vdwg.mxu0
  %2870 = vmatpush.msra.mxu0 0.0
  %2871 = vmatpush.msra.mxu0 0.0
  %2872 = vmatpush.msra.mxu0 0.0
  %2873 = vmatpush.msra.mxu0 0.0
  %2874 = vmatpush.msra.mxu0 0.0
  %2875 = vmatpush.msra.mxu0 0.0
  %2876 = vmatpush.msra.mxu0 0.0
  %2877 = vmatpush.msra.mxu0 0.0
  %2878 = vmatpush.msra.mxu0 0.0
  %2879 = vmatpush.msra.mxu0 0.0
  %2880 = vmatpush.msra.mxu0 0.0
  %2881 = vmatpush.msra.mxu0 0.0
  %2882 = vmatpush.msra.mxu0 0.0
  %2883 = vmatpush.msra.mxu0 %v714
  %2884 = vmatpush.msra.mxu0 %v689
  %2885 = vmatpush.msra.mxu0 %v685
  %2886 = vmatmul.f32.gmra.mxu0 %v2808
  %v2887 = vpop.f32.mrf.mxu0
  %v2888 = vadd.f32 0.0, %v2887
  %2889 = vdwg.mxu0
  %v2894 = vrot.slane %v2828, 6
  %v2895 = vrot.slane %v2848, 6
  %v2896 = vrot.slane %v2868, 6
  %v2897 = vrot.slane %v2888, 6
  %v2902 = vadd.f32 %v2799, %v2894
  %v2903 = vadd.f32 %v2800, %v2895
  %v2904 = vadd.f32 %v2801, %v2896
  %v2905 = vadd.f32 %v2802, %v2897
  %v2906 = vxor.u32 %v2902, 2147483648
  %v2907 = vmul.f32 %v2906, 1.442695
  %v2908 = vpow.pop %v2907
  %v2909 = vadd.f32 %v2908, 1.0
  %v2910 = vrcp.pop %v2909
  %v2911 = vmul.f32 %v2909, %v2910
  %v2912 = vsub.f32 1.0, %v2911
  %v2913 = vmul.f32 %v2910, %v2912
  %v2914 = vadd.f32 %v2910, %v2913
  %vm2915 = vweird.f32 %v2909
  %vm2916 = vweird.f32 %v2910
  %vm2917 = vmor %vm2915, %vm2916
  %v2918 = vsel %vm2917, %v2910, %v2914
  %v2919 = vand.u32 2147483647, %v2909
  %vm2920 = vcmp.eq.f32.partialorder %v2919, 8.507059e+37
  %v2921 = vand.u32 %v2909, 2147483648
  %v2922 = vor.u32 1.1754944e-38, %v2921
  %v2923 = vsel %vm2920, %v2922, %v2918
  %v2924 = vmul.f32 1.0, %v2923
  %v2925 = vxor.u32 %v2903, 2147483648
  %v2926 = vmul.f32 %v2925, 1.442695
  %v2927 = vpow.pop %v2926
  %v2928 = vadd.f32 %v2927, 1.0
  %v2929 = vrcp.pop %v2928
  %v2930 = vmul.f32 %v2928, %v2929
  %v2931 = vsub.f32 1.0, %v2930
  %v2932 = vmul.f32 %v2929, %v2931
  %v2933 = vadd.f32 %v2929, %v2932
  %vm2934 = vweird.f32 %v2928
  %vm2935 = vweird.f32 %v2929
  %vm2936 = vmor %vm2934, %vm2935
  %v2937 = vsel %vm2936, %v2929, %v2933
  %v2938 = vand.u32 2147483647, %v2928
  %vm2939 = vcmp.eq.f32.partialorder %v2938, 8.507059e+37
  %v2940 = vand.u32 %v2928, 2147483648
  %v2941 = vor.u32 1.1754944e-38, %v2940
  %v2942 = vsel %vm2939, %v2941, %v2937
  %v2943 = vmul.f32 1.0, %v2942
  %v2944 = vtanh.pop %v2904
  %v2945 = vxor.u32 %v2905, 2147483648
  %v2946 = vmul.f32 %v2945, 1.442695
  %v2947 = vpow.pop %v2946
  %v2948 = vadd.f32 %v2947, 1.0
  %v2949 = vrcp.pop %v2948
  %v2950 = vmul.f32 %v2948, %v2949
  %v2951 = vsub.f32 1.0, %v2950
  %v2952 = vmul.f32 %v2949, %v2951
  %v2953 = vadd.f32 %v2949, %v2952
  %vm2954 = vweird.f32 %v2948
  %vm2955 = vweird.f32 %v2949
  %vm2956 = vmor %vm2954, %vm2955
  %v2957 = vsel %vm2956, %v2949, %v2953
  %v2958 = vand.u32 2147483647, %v2948
  %vm2959 = vcmp.eq.f32.partialorder %v2958, 8.507059e+37
  %v2960 = vand.u32 %v2948, 2147483648
  %v2961 = vor.u32 1.1754944e-38, %v2960
  %v2962 = vsel %vm2959, %v2961, %v2957
  %v2963 = vmul.f32 1.0, %v2962
  %v2966 = vrot.slane %v2790, 3
  %v2967 = vrot.slane %v2791, 3
  %v2968 = vsel %vm1278, %v2966, %v2967
  %v2970 = vmul.f32 %v2943, %v2968
  %v2971 = vmul.f32 %v2924, %v2944
  %v2972 = vadd.f32 %v2970, %v2971
  %v2973 = vtanh.pop %v2972
  %v2974 = vmul.f32 %v2963, %v2973
  %s2975 = scalar_lea.vmem %s6, 80
  %2976 = vst.msk [vmem:[%s2975 - $0x2] sm:$0x7c] %vm1289, %v2974
  %v2977 = vld [vmem:[#allocation2 + $0xc0] sm:$0x80]
  %v2978 = vld [vmem:[#allocation2 + $0xc8] sm:$0x80]
  %v2979 = vld [vmem:[#allocation2 + $0xd0] sm:$0x80]
  %v2980 = vld [vmem:[#allocation2 + $0xd8] sm:$0x80]
  %v2981 = vld [vmem:[#allocation2 + $0xe0] sm:$0xf]
  %v2982 = vld [vmem:[#allocation2 + $0xe8] sm:$0xf]
  %v2983 = vld [vmem:[#allocation2 + $0xf0] sm:$0xf]
  %v2984 = vld [vmem:[#allocation2 + $0xf8] sm:$0xf]
  %v2986 = vrot.slane %v2974, 2
  %v2987 = vsel %vm700, %v2986, 0
  %2989 = vmatpush.msra.mxu0 0.0
  %2990 = vmatpush.msra.mxu0 0.0
  %2991 = vmatpush.msra.mxu0 0.0
  %2992 = vmatpush.msra.mxu0 0.0
  %2993 = vmatpush.msra.mxu0 0.0
  %2994 = vmatpush.msra.mxu0 0.0
  %2995 = vmatpush.msra.mxu0 0.0
  %2996 = vmatpush.msra.mxu0 0.0
  %2997 = vmatpush.msra.mxu0 0.0
  %2998 = vmatpush.msra.mxu0 0.0
  %2999 = vmatpush.msra.mxu0 0.0
  %3000 = vmatpush.msra.mxu0 0.0
  %3001 = vmatpush.msra.mxu0 0.0
  %3002 = vmatpush.msra.mxu0 %v705
  %3003 = vmatpush.msra.mxu0 %v686
  %3004 = vmatpush.msra.mxu0 %v682
  %3005 = vmatmul.f32.gmra.mxu0 %v2987
  %v3006 = vpop.f32.mrf.mxu0
  %v3007 = vadd.f32 0.0, %v3006
  %3008 = vdwg.mxu0
  %3009 = vmatpush.msra.mxu0 0.0
  %3010 = vmatpush.msra.mxu0 0.0
  %3011 = vmatpush.msra.mxu0 0.0
  %3012 = vmatpush.msra.mxu0 0.0
  %3013 = vmatpush.msra.mxu0 0.0
  %3014 = vmatpush.msra.mxu0 0.0
  %3015 = vmatpush.msra.mxu0 0.0
  %3016 = vmatpush.msra.mxu0 0.0
  %3017 = vmatpush.msra.mxu0 0.0
  %3018 = vmatpush.msra.mxu0 0.0
  %3019 = vmatpush.msra.mxu0 0.0
  %3020 = vmatpush.msra.mxu0 0.0
  %3021 = vmatpush.msra.mxu0 0.0
  %3022 = vmatpush.msra.mxu0 %v708
  %3023 = vmatpush.msra.mxu0 %v687
  %3024 = vmatpush.msra.mxu0 %v683
  %3025 = vmatmul.f32.gmra.mxu0 %v2987
  %v3026 = vpop.f32.mrf.mxu0
  %v3027 = vadd.f32 0.0, %v3026
  %3028 = vdwg.mxu0
  %3029 = vmatpush.msra.mxu0 0.0
  %3030 = vmatpush.msra.mxu0 0.0
  %3031 = vmatpush.msra.mxu0 0.0
  %3032 = vmatpush.msra.mxu0 0.0
  %3033 = vmatpush.msra.mxu0 0.0
  %3034 = vmatpush.msra.mxu0 0.0
  %3035 = vmatpush.msra.mxu0 0.0
  %3036 = vmatpush.msra.mxu0 0.0
  %3037 = vmatpush.msra.mxu0 0.0
  %3038 = vmatpush.msra.mxu0 0.0
  %3039 = vmatpush.msra.mxu0 0.0
  %3040 = vmatpush.msra.mxu0 0.0
  %3041 = vmatpush.msra.mxu0 0.0
  %3042 = vmatpush.msra.mxu0 %v711
  %3043 = vmatpush.msra.mxu0 %v688
  %3044 = vmatpush.msra.mxu0 %v684
  %3045 = vmatmul.f32.gmra.mxu0 %v2987
  %v3046 = vpop.f32.mrf.mxu0
  %v3047 = vadd.f32 0.0, %v3046
  %3048 = vdwg.mxu0
  %3049 = vmatpush.msra.mxu0 0.0
  %3050 = vmatpush.msra.mxu0 0.0
  %3051 = vmatpush.msra.mxu0 0.0
  %3052 = vmatpush.msra.mxu0 0.0
  %3053 = vmatpush.msra.mxu0 0.0
  %3054 = vmatpush.msra.mxu0 0.0
  %3055 = vmatpush.msra.mxu0 0.0
  %3056 = vmatpush.msra.mxu0 0.0
  %3057 = vmatpush.msra.mxu0 0.0
  %3058 = vmatpush.msra.mxu0 0.0
  %3059 = vmatpush.msra.mxu0 0.0
  %3060 = vmatpush.msra.mxu0 0.0
  %3061 = vmatpush.msra.mxu0 0.0
  %3062 = vmatpush.msra.mxu0 %v714
  %3063 = vmatpush.msra.mxu0 %v689
  %3064 = vmatpush.msra.mxu0 %v685
  %3065 = vmatmul.f32.gmra.mxu0 %v2987
  %v3066 = vpop.f32.mrf.mxu0
  %v3067 = vadd.f32 0.0, %v3066
  %3068 = vdwg.mxu0
  %v3073 = vrot.slane %v3007, 1
  %v3074 = vrot.slane %v3027, 1
  %v3075 = vrot.slane %v3047, 1
  %v3076 = vrot.slane %v3067, 1
  %v3081 = vadd.f32 %v2977, %v3073
  %v3082 = vadd.f32 %v2978, %v3074
  %v3083 = vadd.f32 %v2979, %v3075
  %v3084 = vadd.f32 %v2980, %v3076
  %v3085 = vadd.f32 %v2981, %v3073
  %v3086 = vadd.f32 %v2982, %v3074
  %v3087 = vadd.f32 %v2983, %v3075
  %v3088 = vadd.f32 %v2984, %v3076
  %v3089 = vxor.u32 %v3081, 2147483648
  %v3090 = vxor.u32 %v3085, 2147483648
  %v3091 = vmul.f32 %v3089, 1.442695
  %v3092 = vpow.pop %v3091
  %v3093 = vmul.f32 %v3090, 1.442695
  %v3094 = vpow.pop %v3093
  %v3095 = vadd.f32 %v3092, 1.0
  %v3096 = vadd.f32 %v3094, 1.0
  %v3097 = vrcp.pop %v3095
  %v3098 = vmul.f32 %v3095, %v3097
  %v3099 = vsub.f32 1.0, %v3098
  %v3100 = vmul.f32 %v3097, %v3099
  %v3101 = vadd.f32 %v3097, %v3100
  %vm3102 = vweird.f32 %v3095
  %vm3103 = vweird.f32 %v3097
  %vm3104 = vmor %vm3102, %vm3103
  %v3105 = vsel %vm3104, %v3097, %v3101
  %v3106 = vand.u32 2147483647, %v3095
  %vm3107 = vcmp.eq.f32.partialorder %v3106, 8.507059e+37
  %v3108 = vand.u32 %v3095, 2147483648
  %v3109 = vor.u32 1.1754944e-38, %v3108
  %v3110 = vsel %vm3107, %v3109, %v3105
  %v3111 = vmul.f32 1.0, %v3110
  %v3112 = vrcp.pop %v3096
  %v3113 = vmul.f32 %v3096, %v3112
  %v3114 = vsub.f32 1.0, %v3113
  %v3115 = vmul.f32 %v3112, %v3114
  %v3116 = vadd.f32 %v3112, %v3115
  %vm3117 = vweird.f32 %v3096
  %vm3118 = vweird.f32 %v3112
  %vm3119 = vmor %vm3117, %vm3118
  %v3120 = vsel %vm3119, %v3112, %v3116
  %v3121 = vand.u32 2147483647, %v3096
  %vm3122 = vcmp.eq.f32.partialorder %v3121, 8.507059e+37
  %v3123 = vand.u32 %v3096, 2147483648
  %v3124 = vor.u32 1.1754944e-38, %v3123
  %v3125 = vsel %vm3122, %v3124, %v3120
  %v3126 = vmul.f32 1.0, %v3125
  %v3127 = vxor.u32 %v3082, 2147483648
  %v3128 = vxor.u32 %v3086, 2147483648
  %v3129 = vmul.f32 %v3127, 1.442695
  %v3130 = vpow.pop %v3129
  %v3131 = vmul.f32 %v3128, 1.442695
  %v3132 = vpow.pop %v3131
  %v3133 = vadd.f32 %v3130, 1.0
  %v3134 = vadd.f32 %v3132, 1.0
  %v3135 = vrcp.pop %v3133
  %v3136 = vmul.f32 %v3133, %v3135
  %v3137 = vsub.f32 1.0, %v3136
  %v3138 = vmul.f32 %v3135, %v3137
  %v3139 = vadd.f32 %v3135, %v3138
  %vm3140 = vweird.f32 %v3133
  %vm3141 = vweird.f32 %v3135
  %vm3142 = vmor %vm3140, %vm3141
  %v3143 = vsel %vm3142, %v3135, %v3139
  %v3144 = vand.u32 2147483647, %v3133
  %vm3145 = vcmp.eq.f32.partialorder %v3144, 8.507059e+37
  %v3146 = vand.u32 %v3133, 2147483648
  %v3147 = vor.u32 1.1754944e-38, %v3146
  %v3148 = vsel %vm3145, %v3147, %v3143
  %v3149 = vmul.f32 1.0, %v3148
  %v3150 = vrcp.pop %v3134
  %v3151 = vmul.f32 %v3134, %v3150
  %v3152 = vsub.f32 1.0, %v3151
  %v3153 = vmul.f32 %v3150, %v3152
  %v3154 = vadd.f32 %v3150, %v3153
  %vm3155 = vweird.f32 %v3134
  %vm3156 = vweird.f32 %v3150
  %vm3157 = vmor %vm3155, %vm3156
  %v3158 = vsel %vm3157, %v3150, %v3154
  %v3159 = vand.u32 2147483647, %v3134
  %vm3160 = vcmp.eq.f32.partialorder %v3159, 8.507059e+37
  %v3161 = vand.u32 %v3134, 2147483648
  %v3162 = vor.u32 1.1754944e-38, %v3161
  %v3163 = vsel %vm3160, %v3162, %v3158
  %v3164 = vmul.f32 1.0, %v3163
  %v3165 = vtanh.pop %v3083
  %v3166 = vtanh.pop %v3087
  %v3167 = vxor.u32 %v3084, 2147483648
  %v3168 = vxor.u32 %v3088, 2147483648
  %v3169 = vmul.f32 %v3167, 1.442695
  %v3170 = vpow.pop %v3169
  %v3171 = vmul.f32 %v3168, 1.442695
  %v3172 = vpow.pop %v3171
  %v3173 = vadd.f32 %v3170, 1.0
  %v3174 = vadd.f32 %v3172, 1.0
  %v3175 = vrcp.pop %v3173
  %v3176 = vmul.f32 %v3173, %v3175
  %v3177 = vsub.f32 1.0, %v3176
  %v3178 = vmul.f32 %v3175, %v3177
  %v3179 = vadd.f32 %v3175, %v3178
  %vm3180 = vweird.f32 %v3173
  %vm3181 = vweird.f32 %v3175
  %vm3182 = vmor %vm3180, %vm3181
  %v3183 = vsel %vm3182, %v3175, %v3179
  %v3184 = vand.u32 2147483647, %v3173
  %vm3185 = vcmp.eq.f32.partialorder %v3184, 8.507059e+37
  %v3186 = vand.u32 %v3173, 2147483648
  %v3187 = vor.u32 1.1754944e-38, %v3186
  %v3188 = vsel %vm3185, %v3187, %v3183
  %v3189 = vmul.f32 1.0, %v3188
  %v3190 = vrcp.pop %v3174
  %v3191 = vmul.f32 %v3174, %v3190
  %v3192 = vsub.f32 1.0, %v3191
  %v3193 = vmul.f32 %v3190, %v3192
  %v3194 = vadd.f32 %v3190, %v3193
  %vm3195 = vweird.f32 %v3174
  %vm3196 = vweird.f32 %v3190
  %vm3197 = vmor %vm3195, %vm3196
  %v3198 = vsel %vm3197, %v3190, %v3194
  %v3199 = vand.u32 2147483647, %v3174
  %vm3200 = vcmp.eq.f32.partialorder %v3199, 8.507059e+37
  %v3201 = vand.u32 %v3174, 2147483648
  %v3202 = vor.u32 1.1754944e-38, %v3201
  %v3203 = vsel %vm3200, %v3202, %v3198
  %v3204 = vmul.f32 1.0, %v3203
  %v3206 = vrot.slane %v2972, 3
  %v3208 = vmul.f32 %v3149, %v3206
  %v3209 = vmul.f32 %v3164, %v3206
  %v3210 = vmul.f32 %v3111, %v3165
  %v3211 = vmul.f32 %v3126, %v3166
  %v3212 = vadd.f32 %v3208, %v3210
  %v3213 = vadd.f32 %v3209, %v3211
  %v3214 = vtanh.pop %v3212
  %v3215 = vtanh.pop %v3213
  %v3216 = vmul.f32 %v3189, %v3214
  %v3217 = vmul.f32 %v3204, %v3215
  %s3218 = scalar_lea.vmem %s6, 88
  %3219 = vst.msk [vmem:[%s3218 - $0x7] sm:$0x80] %vm1533, %v3216
  %3220 = vst.msk [vmem:[%s3218 + $0x1] sm:$0xf] %vm1535, %v3217
  %v3221 = vld [vmem:[#allocation2 + $0xe0] sm:$0xf0]
  %v3222 = vld [vmem:[#allocation2 + $0xe8] sm:$0xf0]
  %v3223 = vld [vmem:[#allocation2 + $0xf0] sm:$0xf0]
  %v3224 = vld [vmem:[#allocation2 + $0xf8] sm:$0xf0]
  %v3225 = vld [vmem:[#allocation2 + $0x100] sm:$0x1]
  %v3226 = vld [vmem:[#allocation2 + $0x108] sm:$0x1]
  %v3227 = vld [vmem:[#allocation2 + $0x110] sm:$0x1]
  %v3228 = vld [vmem:[#allocation2 + $0x118] sm:$0x1]
  %v3231 = vrot.slane %v3216, 7
  %v3232 = vrot.slane %v3217, 7
  %v3233 = vsel %vm1547, %v3231, %v3232
  %v3234 = vsel %vm700, %v3233, 0
  %3236 = vmatpush.msra.mxu0 0.0
  %3237 = vmatpush.msra.mxu0 0.0
  %3238 = vmatpush.msra.mxu0 0.0
  %3239 = vmatpush.msra.mxu0 0.0
  %3240 = vmatpush.msra.mxu0 0.0
  %3241 = vmatpush.msra.mxu0 0.0
  %3242 = vmatpush.msra.mxu0 0.0
  %3243 = vmatpush.msra.mxu0 0.0
  %3244 = vmatpush.msra.mxu0 0.0
  %3245 = vmatpush.msra.mxu0 0.0
  %3246 = vmatpush.msra.mxu0 0.0
  %3247 = vmatpush.msra.mxu0 0.0
  %3248 = vmatpush.msra.mxu0 0.0
  %3249 = vmatpush.msra.mxu0 %v705
  %3250 = vmatpush.msra.mxu0 %v686
  %3251 = vmatpush.msra.mxu0 %v682
  %3252 = vmatmul.f32.gmra.mxu0 %v3234
  %v3253 = vpop.f32.mrf.mxu0
  %v3254 = vadd.f32 0.0, %v3253
  %3255 = vdwg.mxu0
  %3256 = vmatpush.msra.mxu0 0.0
  %3257 = vmatpush.msra.mxu0 0.0
  %3258 = vmatpush.msra.mxu0 0.0
  %3259 = vmatpush.msra.mxu0 0.0
  %3260 = vmatpush.msra.mxu0 0.0
  %3261 = vmatpush.msra.mxu0 0.0
  %3262 = vmatpush.msra.mxu0 0.0
  %3263 = vmatpush.msra.mxu0 0.0
  %3264 = vmatpush.msra.mxu0 0.0
  %3265 = vmatpush.msra.mxu0 0.0
  %3266 = vmatpush.msra.mxu0 0.0
  %3267 = vmatpush.msra.mxu0 0.0
  %3268 = vmatpush.msra.mxu0 0.0
  %3269 = vmatpush.msra.mxu0 %v708
  %3270 = vmatpush.msra.mxu0 %v687
  %3271 = vmatpush.msra.mxu0 %v683
  %3272 = vmatmul.f32.gmra.mxu0 %v3234
  %v3273 = vpop.f32.mrf.mxu0
  %v3274 = vadd.f32 0.0, %v3273
  %3275 = vdwg.mxu0
  %3276 = vmatpush.msra.mxu0 0.0
  %3277 = vmatpush.msra.mxu0 0.0
  %3278 = vmatpush.msra.mxu0 0.0
  %3279 = vmatpush.msra.mxu0 0.0
  %3280 = vmatpush.msra.mxu0 0.0
  %3281 = vmatpush.msra.mxu0 0.0
  %3282 = vmatpush.msra.mxu0 0.0
  %3283 = vmatpush.msra.mxu0 0.0
  %3284 = vmatpush.msra.mxu0 0.0
  %3285 = vmatpush.msra.mxu0 0.0
  %3286 = vmatpush.msra.mxu0 0.0
  %3287 = vmatpush.msra.mxu0 0.0
  %3288 = vmatpush.msra.mxu0 0.0
  %3289 = vmatpush.msra.mxu0 %v711
  %3290 = vmatpush.msra.mxu0 %v688
  %3291 = vmatpush.msra.mxu0 %v684
  %3292 = vmatmul.f32.gmra.mxu0 %v3234
  %v3293 = vpop.f32.mrf.mxu0
  %v3294 = vadd.f32 0.0, %v3293
  %3295 = vdwg.mxu0
  %3296 = vmatpush.msra.mxu0 0.0
  %3297 = vmatpush.msra.mxu0 0.0
  %3298 = vmatpush.msra.mxu0 0.0
  %3299 = vmatpush.msra.mxu0 0.0
  %3300 = vmatpush.msra.mxu0 0.0
  %3301 = vmatpush.msra.mxu0 0.0
  %3302 = vmatpush.msra.mxu0 0.0
  %3303 = vmatpush.msra.mxu0 0.0
  %3304 = vmatpush.msra.mxu0 0.0
  %3305 = vmatpush.msra.mxu0 0.0
  %3306 = vmatpush.msra.mxu0 0.0
  %3307 = vmatpush.msra.mxu0 0.0
  %3308 = vmatpush.msra.mxu0 0.0
  %3309 = vmatpush.msra.mxu0 %v714
  %3310 = vmatpush.msra.mxu0 %v689
  %3311 = vmatpush.msra.mxu0 %v685
  %3312 = vmatmul.f32.gmra.mxu0 %v3234
  %v3313 = vpop.f32.mrf.mxu0
  %v3314 = vadd.f32 0.0, %v3313
  %3315 = vdwg.mxu0
  %v3320 = vrot.slane %v3254, 4
  %v3321 = vrot.slane %v3274, 4
  %v3322 = vrot.slane %v3294, 4
  %v3323 = vrot.slane %v3314, 4
  %v3328 = vadd.f32 %v3221, %v3320
  %v3329 = vadd.f32 %v3222, %v3321
  %v3330 = vadd.f32 %v3223, %v3322
  %v3331 = vadd.f32 %v3224, %v3323
  %v3332 = vadd.f32 %v3225, %v3320
  %v3333 = vadd.f32 %v3226, %v3321
  %v3334 = vadd.f32 %v3227, %v3322
  %v3335 = vadd.f32 %v3228, %v3323
  %v3336 = vxor.u32 %v3328, 2147483648
  %v3337 = vxor.u32 %v3332, 2147483648
  %v3338 = vmul.f32 %v3336, 1.442695
  %v3339 = vpow.pop %v3338
  %v3340 = vmul.f32 %v3337, 1.442695
  %v3341 = vpow.pop %v3340
  %v3342 = vadd.f32 %v3339, 1.0
  %v3343 = vadd.f32 %v3341, 1.0
  %v3344 = vrcp.pop %v3342
  %v3345 = vmul.f32 %v3342, %v3344
  %v3346 = vsub.f32 1.0, %v3345
  %v3347 = vmul.f32 %v3344, %v3346
  %v3348 = vadd.f32 %v3344, %v3347
  %vm3349 = vweird.f32 %v3342
  %vm3350 = vweird.f32 %v3344
  %vm3351 = vmor %vm3349, %vm3350
  %v3352 = vsel %vm3351, %v3344, %v3348
  %v3353 = vand.u32 2147483647, %v3342
  %vm3354 = vcmp.eq.f32.partialorder %v3353, 8.507059e+37
  %v3355 = vand.u32 %v3342, 2147483648
  %v3356 = vor.u32 1.1754944e-38, %v3355
  %v3357 = vsel %vm3354, %v3356, %v3352
  %v3358 = vmul.f32 1.0, %v3357
  %v3359 = vrcp.pop %v3343
  %v3360 = vmul.f32 %v3343, %v3359
  %v3361 = vsub.f32 1.0, %v3360
  %v3362 = vmul.f32 %v3359, %v3361
  %v3363 = vadd.f32 %v3359, %v3362
  %vm3364 = vweird.f32 %v3343
  %vm3365 = vweird.f32 %v3359
  %vm3366 = vmor %vm3364, %vm3365
  %v3367 = vsel %vm3366, %v3359, %v3363
  %v3368 = vand.u32 2147483647, %v3343
  %vm3369 = vcmp.eq.f32.partialorder %v3368, 8.507059e+37
  %v3370 = vand.u32 %v3343, 2147483648
  %v3371 = vor.u32 1.1754944e-38, %v3370
  %v3372 = vsel %vm3369, %v3371, %v3367
  %v3373 = vmul.f32 1.0, %v3372
  %v3374 = vxor.u32 %v3329, 2147483648
  %v3375 = vxor.u32 %v3333, 2147483648
  %v3376 = vmul.f32 %v3374, 1.442695
  %v3377 = vpow.pop %v3376
  %v3378 = vmul.f32 %v3375, 1.442695
  %v3379 = vpow.pop %v3378
  %v3380 = vadd.f32 %v3377, 1.0
  %v3381 = vadd.f32 %v3379, 1.0
  %v3382 = vrcp.pop %v3380
  %v3383 = vmul.f32 %v3380, %v3382
  %v3384 = vsub.f32 1.0, %v3383
  %v3385 = vmul.f32 %v3382, %v3384
  %v3386 = vadd.f32 %v3382, %v3385
  %vm3387 = vweird.f32 %v3380
  %vm3388 = vweird.f32 %v3382
  %vm3389 = vmor %vm3387, %vm3388
  %v3390 = vsel %vm3389, %v3382, %v3386
  %v3391 = vand.u32 2147483647, %v3380
  %vm3392 = vcmp.eq.f32.partialorder %v3391, 8.507059e+37
  %v3393 = vand.u32 %v3380, 2147483648
  %v3394 = vor.u32 1.1754944e-38, %v3393
  %v3395 = vsel %vm3392, %v3394, %v3390
  %v3396 = vmul.f32 1.0, %v3395
  %v3397 = vrcp.pop %v3381
  %v3398 = vmul.f32 %v3381, %v3397
  %v3399 = vsub.f32 1.0, %v3398
  %v3400 = vmul.f32 %v3397, %v3399
  %v3401 = vadd.f32 %v3397, %v3400
  %vm3402 = vweird.f32 %v3381
  %vm3403 = vweird.f32 %v3397
  %vm3404 = vmor %vm3402, %vm3403
  %v3405 = vsel %vm3404, %v3397, %v3401
  %v3406 = vand.u32 2147483647, %v3381
  %vm3407 = vcmp.eq.f32.partialorder %v3406, 8.507059e+37
  %v3408 = vand.u32 %v3381, 2147483648
  %v3409 = vor.u32 1.1754944e-38, %v3408
  %v3410 = vsel %vm3407, %v3409, %v3405
  %v3411 = vmul.f32 1.0, %v3410
  %v3412 = vtanh.pop %v3330
  %v3413 = vtanh.pop %v3334
  %v3414 = vxor.u32 %v3331, 2147483648
  %v3415 = vxor.u32 %v3335, 2147483648
  %v3416 = vmul.f32 %v3414, 1.442695
  %v3417 = vpow.pop %v3416
  %v3418 = vmul.f32 %v3415, 1.442695
  %v3419 = vpow.pop %v3418
  %v3420 = vadd.f32 %v3417, 1.0
  %v3421 = vadd.f32 %v3419, 1.0
  %v3422 = vrcp.pop %v3420
  %v3423 = vmul.f32 %v3420, %v3422
  %v3424 = vsub.f32 1.0, %v3423
  %v3425 = vmul.f32 %v3422, %v3424
  %v3426 = vadd.f32 %v3422, %v3425
  %vm3427 = vweird.f32 %v3420
  %vm3428 = vweird.f32 %v3422
  %vm3429 = vmor %vm3427, %vm3428
  %v3430 = vsel %vm3429, %v3422, %v3426
  %v3431 = vand.u32 2147483647, %v3420
  %vm3432 = vcmp.eq.f32.partialorder %v3431, 8.507059e+37
  %v3433 = vand.u32 %v3420, 2147483648
  %v3434 = vor.u32 1.1754944e-38, %v3433
  %v3435 = vsel %vm3432, %v3434, %v3430
  %v3436 = vmul.f32 1.0, %v3435
  %v3437 = vrcp.pop %v3421
  %v3438 = vmul.f32 %v3421, %v3437
  %v3439 = vsub.f32 1.0, %v3438
  %v3440 = vmul.f32 %v3437, %v3439
  %v3441 = vadd.f32 %v3437, %v3440
  %vm3442 = vweird.f32 %v3421
  %vm3443 = vweird.f32 %v3437
  %vm3444 = vmor %vm3442, %vm3443
  %v3445 = vsel %vm3444, %v3437, %v3441
  %v3446 = vand.u32 2147483647, %v3421
  %vm3447 = vcmp.eq.f32.partialorder %v3446, 8.507059e+37
  %v3448 = vand.u32 %v3421, 2147483648
  %v3449 = vor.u32 1.1754944e-38, %v3448
  %v3450 = vsel %vm3447, %v3449, %v3445
  %v3451 = vmul.f32 1.0, %v3450
  %v3454 = vrot.slane %v3212, 3
  %v3455 = vrot.slane %v3213, 3
  %v3456 = vsel %vm1278, %v3454, %v3455
  %v3459 = vmul.f32 %v3396, %v3456
  %v3460 = vmul.f32 %v3411, %v3455
  %v3461 = vmul.f32 %v3358, %v3412
  %v3462 = vmul.f32 %v3373, %v3413
  %v3463 = vadd.f32 %v3459, %v3461
  %v3464 = vadd.f32 %v3460, %v3462
  %v3465 = vtanh.pop %v3463
  %v3466 = vtanh.pop %v3464
  %v3467 = vmul.f32 %v3436, %v3465
  %v3468 = vmul.f32 %v3451, %v3466
  %s3469 = scalar_lea.vmem %s6, 96
  %3470 = vst.msk [vmem:[%s3469 - $0x4] sm:$0xf0] %vm1787, %v3467
  %3471 = vst.msk [vmem:[%s3469 + $0x4] sm:$0x1] %vm1789, %v3468
  %v3472 = vld [vmem:[#allocation2 + $0x100] sm:$0x3e]
  %v3473 = vld [vmem:[#allocation2 + $0x108] sm:$0x3e]
  %v3474 = vld [vmem:[#allocation2 + $0x110] sm:$0x3e]
  %v3475 = vld [vmem:[#allocation2 + $0x118] sm:$0x3e]
  %v3478 = vrot.slane %v3467, 4
  %v3479 = vrot.slane %v3468, 4
  %v3480 = vsel %vm197, %v3478, %v3479
  %v3481 = vsel %vm700, %v3480, 0
  %3483 = vmatpush.msra.mxu0 0.0
  %3484 = vmatpush.msra.mxu0 0.0
  %3485 = vmatpush.msra.mxu0 0.0
  %3486 = vmatpush.msra.mxu0 0.0
  %3487 = vmatpush.msra.mxu0 0.0
  %3488 = vmatpush.msra.mxu0 0.0
  %3489 = vmatpush.msra.mxu0 0.0
  %3490 = vmatpush.msra.mxu0 0.0
  %3491 = vmatpush.msra.mxu0 0.0
  %3492 = vmatpush.msra.mxu0 0.0
  %3493 = vmatpush.msra.mxu0 0.0
  %3494 = vmatpush.msra.mxu0 0.0
  %3495 = vmatpush.msra.mxu0 0.0
  %3496 = vmatpush.msra.mxu0 %v705
  %3497 = vmatpush.msra.mxu0 %v686
  %3498 = vmatpush.msra.mxu0 %v682
  %3499 = vmatmul.f32.gmra.mxu0 %v3481
  %v3500 = vpop.f32.mrf.mxu0
  %v3501 = vadd.f32 0.0, %v3500
  %3502 = vdwg.mxu0
  %3503 = vmatpush.msra.mxu0 0.0
  %3504 = vmatpush.msra.mxu0 0.0
  %3505 = vmatpush.msra.mxu0 0.0
  %3506 = vmatpush.msra.mxu0 0.0
  %3507 = vmatpush.msra.mxu0 0.0
  %3508 = vmatpush.msra.mxu0 0.0
  %3509 = vmatpush.msra.mxu0 0.0
  %3510 = vmatpush.msra.mxu0 0.0
  %3511 = vmatpush.msra.mxu0 0.0
  %3512 = vmatpush.msra.mxu0 0.0
  %3513 = vmatpush.msra.mxu0 0.0
  %3514 = vmatpush.msra.mxu0 0.0
  %3515 = vmatpush.msra.mxu0 0.0
  %3516 = vmatpush.msra.mxu0 %v708
  %3517 = vmatpush.msra.mxu0 %v687
  %3518 = vmatpush.msra.mxu0 %v683
  %3519 = vmatmul.f32.gmra.mxu0 %v3481
  %v3520 = vpop.f32.mrf.mxu0
  %v3521 = vadd.f32 0.0, %v3520
  %3522 = vdwg.mxu0
  %3523 = vmatpush.msra.mxu0 0.0
  %3524 = vmatpush.msra.mxu0 0.0
  %3525 = vmatpush.msra.mxu0 0.0
  %3526 = vmatpush.msra.mxu0 0.0
  %3527 = vmatpush.msra.mxu0 0.0
  %3528 = vmatpush.msra.mxu0 0.0
  %3529 = vmatpush.msra.mxu0 0.0
  %3530 = vmatpush.msra.mxu0 0.0
  %3531 = vmatpush.msra.mxu0 0.0
  %3532 = vmatpush.msra.mxu0 0.0
  %3533 = vmatpush.msra.mxu0 0.0
  %3534 = vmatpush.msra.mxu0 0.0
  %3535 = vmatpush.msra.mxu0 0.0
  %3536 = vmatpush.msra.mxu0 %v711
  %3537 = vmatpush.msra.mxu0 %v688
  %3538 = vmatpush.msra.mxu0 %v684
  %3539 = vmatmul.f32.gmra.mxu0 %v3481
  %v3540 = vpop.f32.mrf.mxu0
  %v3541 = vadd.f32 0.0, %v3540
  %3542 = vdwg.mxu0
  %3543 = vmatpush.msra.mxu0 0.0
  %3544 = vmatpush.msra.mxu0 0.0
  %3545 = vmatpush.msra.mxu0 0.0
  %3546 = vmatpush.msra.mxu0 0.0
  %3547 = vmatpush.msra.mxu0 0.0
  %3548 = vmatpush.msra.mxu0 0.0
  %3549 = vmatpush.msra.mxu0 0.0
  %3550 = vmatpush.msra.mxu0 0.0
  %3551 = vmatpush.msra.mxu0 0.0
  %3552 = vmatpush.msra.mxu0 0.0
  %3553 = vmatpush.msra.mxu0 0.0
  %3554 = vmatpush.msra.mxu0 0.0
  %3555 = vmatpush.msra.mxu0 0.0
  %3556 = vmatpush.msra.mxu0 %v714
  %3557 = vmatpush.msra.mxu0 %v689
  %3558 = vmatpush.msra.mxu0 %v685
  %3559 = vmatmul.f32.gmra.mxu0 %v3481
  %v3560 = vpop.f32.mrf.mxu0
  %v3561 = vadd.f32 0.0, %v3560
  %3562 = vdwg.mxu0
  %v3567 = vrot.slane %v3501, 7
  %v3568 = vrot.slane %v3521, 7
  %v3569 = vrot.slane %v3541, 7
  %v3570 = vrot.slane %v3561, 7
  %v3575 = vadd.f32 %v3472, %v3567
  %v3576 = vadd.f32 %v3473, %v3568
  %v3577 = vadd.f32 %v3474, %v3569
  %v3578 = vadd.f32 %v3475, %v3570
  %v3579 = vxor.u32 %v3575, 2147483648
  %v3580 = vmul.f32 %v3579, 1.442695
  %v3581 = vpow.pop %v3580
  %v3582 = vadd.f32 %v3581, 1.0
  %v3583 = vrcp.pop %v3582
  %v3584 = vmul.f32 %v3582, %v3583
  %v3585 = vsub.f32 1.0, %v3584
  %v3586 = vmul.f32 %v3583, %v3585
  %v3587 = vadd.f32 %v3583, %v3586
  %vm3588 = vweird.f32 %v3582
  %vm3589 = vweird.f32 %v3583
  %vm3590 = vmor %vm3588, %vm3589
  %v3591 = vsel %vm3590, %v3583, %v3587
  %v3592 = vand.u32 2147483647, %v3582
  %vm3593 = vcmp.eq.f32.partialorder %v3592, 8.507059e+37
  %v3594 = vand.u32 %v3582, 2147483648
  %v3595 = vor.u32 1.1754944e-38, %v3594
  %v3596 = vsel %vm3593, %v3595, %v3591
  %v3597 = vmul.f32 1.0, %v3596
  %v3598 = vxor.u32 %v3576, 2147483648
  %v3599 = vmul.f32 %v3598, 1.442695
  %v3600 = vpow.pop %v3599
  %v3601 = vadd.f32 %v3600, 1.0
  %v3602 = vrcp.pop %v3601
  %v3603 = vmul.f32 %v3601, %v3602
  %v3604 = vsub.f32 1.0, %v3603
  %v3605 = vmul.f32 %v3602, %v3604
  %v3606 = vadd.f32 %v3602, %v3605
  %vm3607 = vweird.f32 %v3601
  %vm3608 = vweird.f32 %v3602
  %vm3609 = vmor %vm3607, %vm3608
  %v3610 = vsel %vm3609, %v3602, %v3606
  %v3611 = vand.u32 2147483647, %v3601
  %vm3612 = vcmp.eq.f32.partialorder %v3611, 8.507059e+37
  %v3613 = vand.u32 %v3601, 2147483648
  %v3614 = vor.u32 1.1754944e-38, %v3613
  %v3615 = vsel %vm3612, %v3614, %v3610
  %v3616 = vmul.f32 1.0, %v3615
  %v3617 = vtanh.pop %v3577
  %v3618 = vxor.u32 %v3578, 2147483648
  %v3619 = vmul.f32 %v3618, 1.442695
  %v3620 = vpow.pop %v3619
  %v3621 = vadd.f32 %v3620, 1.0
  %v3622 = vrcp.pop %v3621
  %v3623 = vmul.f32 %v3621, %v3622
  %v3624 = vsub.f32 1.0, %v3623
  %v3625 = vmul.f32 %v3622, %v3624
  %v3626 = vadd.f32 %v3622, %v3625
  %vm3627 = vweird.f32 %v3621
  %vm3628 = vweird.f32 %v3622
  %vm3629 = vmor %vm3627, %vm3628
  %v3630 = vsel %vm3629, %v3622, %v3626
  %v3631 = vand.u32 2147483647, %v3621
  %vm3632 = vcmp.eq.f32.partialorder %v3631, 8.507059e+37
  %v3633 = vand.u32 %v3621, 2147483648
  %v3634 = vor.u32 1.1754944e-38, %v3633
  %v3635 = vsel %vm3632, %v3634, %v3630
  %v3636 = vmul.f32 1.0, %v3635
  %v3639 = vrot.slane %v3463, 3
  %v3640 = vrot.slane %v3464, 3
  %v3641 = vsel %vm1278, %v3639, %v3640
  %v3643 = vmul.f32 %v3616, %v3641
  %v3644 = vmul.f32 %v3597, %v3617
  %v3645 = vadd.f32 %v3643, %v3644
  %v3646 = vtanh.pop %v3645
  %v3647 = vmul.f32 %v3636, %v3646
  %s3648 = scalar_lea.vmem %s6, 104
  %3649 = vst.msk [vmem:[%s3648 - $0x1] sm:$0x3e] %vm1968, %v3647
  %v3650 = vld [vmem:[#allocation2 + $0x100] sm:$0xc0]
  %v3651 = vld [vmem:[#allocation2 + $0x108] sm:$0xc0]
  %v3652 = vld [vmem:[#allocation2 + $0x110] sm:$0xc0]
  %v3653 = vld [vmem:[#allocation2 + $0x118] sm:$0xc0]
  %v3654 = vld [vmem:[#allocation2 + $0x120] sm:$0x7]
  %v3655 = vld [vmem:[#allocation2 + $0x128] sm:$0x7]
  %v3656 = vld [vmem:[#allocation2 + $0x130] sm:$0x7]
  %v3657 = vld [vmem:[#allocation2 + $0x138] sm:$0x7]
  %v3659 = vrot.slane %v3647, 1
  %v3660 = vsel %vm700, %v3659, 0
  %3662 = vmatpush.msra.mxu0 0.0
  %3663 = vmatpush.msra.mxu0 0.0
  %3664 = vmatpush.msra.mxu0 0.0
  %3665 = vmatpush.msra.mxu0 0.0
  %3666 = vmatpush.msra.mxu0 0.0
  %3667 = vmatpush.msra.mxu0 0.0
  %3668 = vmatpush.msra.mxu0 0.0
  %3669 = vmatpush.msra.mxu0 0.0
  %3670 = vmatpush.msra.mxu0 0.0
  %3671 = vmatpush.msra.mxu0 0.0
  %3672 = vmatpush.msra.mxu0 0.0
  %3673 = vmatpush.msra.mxu0 0.0
  %3674 = vmatpush.msra.mxu0 0.0
  %3675 = vmatpush.msra.mxu0 %v705
  %3676 = vmatpush.msra.mxu0 %v686
  %3677 = vmatpush.msra.mxu0 %v682
  %3678 = vmatmul.f32.gmra.mxu0 %v3660
  %v3679 = vpop.f32.mrf.mxu0
  %v3680 = vadd.f32 0.0, %v3679
  %3681 = vdwg.mxu0
  %3682 = vmatpush.msra.mxu0 0.0
  %3683 = vmatpush.msra.mxu0 0.0
  %3684 = vmatpush.msra.mxu0 0.0
  %3685 = vmatpush.msra.mxu0 0.0
  %3686 = vmatpush.msra.mxu0 0.0
  %3687 = vmatpush.msra.mxu0 0.0
  %3688 = vmatpush.msra.mxu0 0.0
  %3689 = vmatpush.msra.mxu0 0.0
  %3690 = vmatpush.msra.mxu0 0.0
  %3691 = vmatpush.msra.mxu0 0.0
  %3692 = vmatpush.msra.mxu0 0.0
  %3693 = vmatpush.msra.mxu0 0.0
  %3694 = vmatpush.msra.mxu0 0.0
  %3695 = vmatpush.msra.mxu0 %v708
  %3696 = vmatpush.msra.mxu0 %v687
  %3697 = vmatpush.msra.mxu0 %v683
  %3698 = vmatmul.f32.gmra.mxu0 %v3660
  %v3699 = vpop.f32.mrf.mxu0
  %v3700 = vadd.f32 0.0, %v3699
  %3701 = vdwg.mxu0
  %3702 = vmatpush.msra.mxu0 0.0
  %3703 = vmatpush.msra.mxu0 0.0
  %3704 = vmatpush.msra.mxu0 0.0
  %3705 = vmatpush.msra.mxu0 0.0
  %3706 = vmatpush.msra.mxu0 0.0
  %3707 = vmatpush.msra.mxu0 0.0
  %3708 = vmatpush.msra.mxu0 0.0
  %3709 = vmatpush.msra.mxu0 0.0
  %3710 = vmatpush.msra.mxu0 0.0
  %3711 = vmatpush.msra.mxu0 0.0
  %3712 = vmatpush.msra.mxu0 0.0
  %3713 = vmatpush.msra.mxu0 0.0
  %3714 = vmatpush.msra.mxu0 0.0
  %3715 = vmatpush.msra.mxu0 %v711
  %3716 = vmatpush.msra.mxu0 %v688
  %3717 = vmatpush.msra.mxu0 %v684
  %3718 = vmatmul.f32.gmra.mxu0 %v3660
  %v3719 = vpop.f32.mrf.mxu0
  %v3720 = vadd.f32 0.0, %v3719
  %3721 = vdwg.mxu0
  %3722 = vmatpush.msra.mxu0 0.0
  %3723 = vmatpush.msra.mxu0 0.0
  %3724 = vmatpush.msra.mxu0 0.0
  %3725 = vmatpush.msra.mxu0 0.0
  %3726 = vmatpush.msra.mxu0 0.0
  %3727 = vmatpush.msra.mxu0 0.0
  %3728 = vmatpush.msra.mxu0 0.0
  %3729 = vmatpush.msra.mxu0 0.0
  %3730 = vmatpush.msra.mxu0 0.0
  %3731 = vmatpush.msra.mxu0 0.0
  %3732 = vmatpush.msra.mxu0 0.0
  %3733 = vmatpush.msra.mxu0 0.0
  %3734 = vmatpush.msra.mxu0 0.0
  %3735 = vmatpush.msra.mxu0 %v714
  %3736 = vmatpush.msra.mxu0 %v689
  %3737 = vmatpush.msra.mxu0 %v685
  %3738 = vmatmul.f32.gmra.mxu0 %v3660
  %v3739 = vpop.f32.mrf.mxu0
  %v3740 = vadd.f32 0.0, %v3739
  %3741 = vdwg.mxu0
  %v3746 = vrot.slane %v3680, 2
  %v3747 = vrot.slane %v3700, 2
  %v3748 = vrot.slane %v3720, 2
  %v3749 = vrot.slane %v3740, 2
  %v3754 = vadd.f32 %v3650, %v3746
  %v3755 = vadd.f32 %v3651, %v3747
  %v3756 = vadd.f32 %v3652, %v3748
  %v3757 = vadd.f32 %v3653, %v3749
  %v3758 = vadd.f32 %v3654, %v3746
  %v3759 = vadd.f32 %v3655, %v3747
  %v3760 = vadd.f32 %v3656, %v3748
  %v3761 = vadd.f32 %v3657, %v3749
  %v3762 = vxor.u32 %v3754, 2147483648
  %v3763 = vxor.u32 %v3758, 2147483648
  %v3764 = vmul.f32 %v3762, 1.442695
  %v3765 = vpow.pop %v3764
  %v3766 = vmul.f32 %v3763, 1.442695
  %v3767 = vpow.pop %v3766
  %v3768 = vadd.f32 %v3765, 1.0
  %v3769 = vadd.f32 %v3767, 1.0
  %v3770 = vrcp.pop %v3768
  %v3771 = vmul.f32 %v3768, %v3770
  %v3772 = vsub.f32 1.0, %v3771
  %v3773 = vmul.f32 %v3770, %v3772
  %v3774 = vadd.f32 %v3770, %v3773
  %vm3775 = vweird.f32 %v3768
  %vm3776 = vweird.f32 %v3770
  %vm3777 = vmor %vm3775, %vm3776
  %v3778 = vsel %vm3777, %v3770, %v3774
  %v3779 = vand.u32 2147483647, %v3768
  %vm3780 = vcmp.eq.f32.partialorder %v3779, 8.507059e+37
  %v3781 = vand.u32 %v3768, 2147483648
  %v3782 = vor.u32 1.1754944e-38, %v3781
  %v3783 = vsel %vm3780, %v3782, %v3778
  %v3784 = vmul.f32 1.0, %v3783
  %v3785 = vrcp.pop %v3769
  %v3786 = vmul.f32 %v3769, %v3785
  %v3787 = vsub.f32 1.0, %v3786
  %v3788 = vmul.f32 %v3785, %v3787
  %v3789 = vadd.f32 %v3785, %v3788
  %vm3790 = vweird.f32 %v3769
  %vm3791 = vweird.f32 %v3785
  %vm3792 = vmor %vm3790, %vm3791
  %v3793 = vsel %vm3792, %v3785, %v3789
  %v3794 = vand.u32 2147483647, %v3769
  %vm3795 = vcmp.eq.f32.partialorder %v3794, 8.507059e+37
  %v3796 = vand.u32 %v3769, 2147483648
  %v3797 = vor.u32 1.1754944e-38, %v3796
  %v3798 = vsel %vm3795, %v3797, %v3793
  %v3799 = vmul.f32 1.0, %v3798
  %v3800 = vxor.u32 %v3755, 2147483648
  %v3801 = vxor.u32 %v3759, 2147483648
  %v3802 = vmul.f32 %v3800, 1.442695
  %v3803 = vpow.pop %v3802
  %v3804 = vmul.f32 %v3801, 1.442695
  %v3805 = vpow.pop %v3804
  %v3806 = vadd.f32 %v3803, 1.0
  %v3807 = vadd.f32 %v3805, 1.0
  %v3808 = vrcp.pop %v3806
  %v3809 = vmul.f32 %v3806, %v3808
  %v3810 = vsub.f32 1.0, %v3809
  %v3811 = vmul.f32 %v3808, %v3810
  %v3812 = vadd.f32 %v3808, %v3811
  %vm3813 = vweird.f32 %v3806
  %vm3814 = vweird.f32 %v3808
  %vm3815 = vmor %vm3813, %vm3814
  %v3816 = vsel %vm3815, %v3808, %v3812
  %v3817 = vand.u32 2147483647, %v3806
  %vm3818 = vcmp.eq.f32.partialorder %v3817, 8.507059e+37
  %v3819 = vand.u32 %v3806, 2147483648
  %v3820 = vor.u32 1.1754944e-38, %v3819
  %v3821 = vsel %vm3818, %v3820, %v3816
  %v3822 = vmul.f32 1.0, %v3821
  %v3823 = vrcp.pop %v3807
  %v3824 = vmul.f32 %v3807, %v3823
  %v3825 = vsub.f32 1.0, %v3824
  %v3826 = vmul.f32 %v3823, %v3825
  %v3827 = vadd.f32 %v3823, %v3826
  %vm3828 = vweird.f32 %v3807
  %vm3829 = vweird.f32 %v3823
  %vm3830 = vmor %vm3828, %vm3829
  %v3831 = vsel %vm3830, %v3823, %v3827
  %v3832 = vand.u32 2147483647, %v3807
  %vm3833 = vcmp.eq.f32.partialorder %v3832, 8.507059e+37
  %v3834 = vand.u32 %v3807, 2147483648
  %v3835 = vor.u32 1.1754944e-38, %v3834
  %v3836 = vsel %vm3833, %v3835, %v3831
  %v3837 = vmul.f32 1.0, %v3836
  %v3838 = vtanh.pop %v3756
  %v3839 = vtanh.pop %v3760
  %v3840 = vxor.u32 %v3757, 2147483648
  %v3841 = vxor.u32 %v3761, 2147483648
  %v3842 = vmul.f32 %v3840, 1.442695
  %v3843 = vpow.pop %v3842
  %v3844 = vmul.f32 %v3841, 1.442695
  %v3845 = vpow.pop %v3844
  %v3846 = vadd.f32 %v3843, 1.0
  %v3847 = vadd.f32 %v3845, 1.0
  %v3848 = vrcp.pop %v3846
  %v3849 = vmul.f32 %v3846, %v3848
  %v3850 = vsub.f32 1.0, %v3849
  %v3851 = vmul.f32 %v3848, %v3850
  %v3852 = vadd.f32 %v3848, %v3851
  %vm3853 = vweird.f32 %v3846
  %vm3854 = vweird.f32 %v3848
  %vm3855 = vmor %vm3853, %vm3854
  %v3856 = vsel %vm3855, %v3848, %v3852
  %v3857 = vand.u32 2147483647, %v3846
  %vm3858 = vcmp.eq.f32.partialorder %v3857, 8.507059e+37
  %v3859 = vand.u32 %v3846, 2147483648
  %v3860 = vor.u32 1.1754944e-38, %v3859
  %v3861 = vsel %vm3858, %v3860, %v3856
  %v3862 = vmul.f32 1.0, %v3861
  %v3863 = vrcp.pop %v3847
  %v3864 = vmul.f32 %v3847, %v3863
  %v3865 = vsub.f32 1.0, %v3864
  %v3866 = vmul.f32 %v3863, %v3865
  %v3867 = vadd.f32 %v3863, %v3866
  %vm3868 = vweird.f32 %v3847
  %vm3869 = vweird.f32 %v3863
  %vm3870 = vmor %vm3868, %vm3869
  %v3871 = vsel %vm3870, %v3863, %v3867
  %v3872 = vand.u32 2147483647, %v3847
  %vm3873 = vcmp.eq.f32.partialorder %v3872, 8.507059e+37
  %v3874 = vand.u32 %v3847, 2147483648
  %v3875 = vor.u32 1.1754944e-38, %v3874
  %v3876 = vsel %vm3873, %v3875, %v3871
  %v3877 = vmul.f32 1.0, %v3876
  %v3879 = vrot.slane %v3645, 3
  %v3881 = vmul.f32 %v3822, %v3879
  %v3882 = vmul.f32 %v3837, %v3879
  %v3883 = vmul.f32 %v3784, %v3838
  %v3884 = vmul.f32 %v3799, %v3839
  %v3885 = vadd.f32 %v3881, %v3883
  %v3886 = vadd.f32 %v3882, %v3884
  %v3887 = vtanh.pop %v3885
  %v3888 = vtanh.pop %v3886
  %v3889 = vmul.f32 %v3862, %v3887
  %v3890 = vmul.f32 %v3877, %v3888
  %s3891 = scalar_lea.vmem %s6, 112
  %3892 = vst.msk [vmem:[%s3891 - $0x6] sm:$0xc0] %vm2212, %v3889
  %3893 = vst.msk [vmem:[%s3891 + $0x2] sm:$0x7] %vm2214, %v3890
  %v3894 = vld [vmem:[#allocation2 + $0x120] sm:$0xf8]
  %v3895 = vld [vmem:[#allocation2 + $0x128] sm:$0xf8]
  %v3896 = vld [vmem:[#allocation2 + $0x130] sm:$0xf8]
  %v3897 = vld [vmem:[#allocation2 + $0x138] sm:$0xf8]
  %v3900 = vrot.slane %v3889, 6
  %v3901 = vrot.slane %v3890, 6
  %v3902 = vsel %vm2222, %v3900, %v3901
  %v3903 = vsel %vm700, %v3902, 0
  %3905 = vmatpush.msra.mxu0 0.0
  %3906 = vmatpush.msra.mxu0 0.0
  %3907 = vmatpush.msra.mxu0 0.0
  %3908 = vmatpush.msra.mxu0 0.0
  %3909 = vmatpush.msra.mxu0 0.0
  %3910 = vmatpush.msra.mxu0 0.0
  %3911 = vmatpush.msra.mxu0 0.0
  %3912 = vmatpush.msra.mxu0 0.0
  %3913 = vmatpush.msra.mxu0 0.0
  %3914 = vmatpush.msra.mxu0 0.0
  %3915 = vmatpush.msra.mxu0 0.0
  %3916 = vmatpush.msra.mxu0 0.0
  %3917 = vmatpush.msra.mxu0 0.0
  %3918 = vmatpush.msra.mxu0 %v705
  %3919 = vmatpush.msra.mxu0 %v686
  %3920 = vmatpush.msra.mxu0 %v682
  %3921 = vmatmul.f32.gmra.mxu0 %v3903
  %v3922 = vpop.f32.mrf.mxu0
  %v3923 = vadd.f32 0.0, %v3922
  %3924 = vdwg.mxu0
  %3925 = vmatpush.msra.mxu0 0.0
  %3926 = vmatpush.msra.mxu0 0.0
  %3927 = vmatpush.msra.mxu0 0.0
  %3928 = vmatpush.msra.mxu0 0.0
  %3929 = vmatpush.msra.mxu0 0.0
  %3930 = vmatpush.msra.mxu0 0.0
  %3931 = vmatpush.msra.mxu0 0.0
  %3932 = vmatpush.msra.mxu0 0.0
  %3933 = vmatpush.msra.mxu0 0.0
  %3934 = vmatpush.msra.mxu0 0.0
  %3935 = vmatpush.msra.mxu0 0.0
  %3936 = vmatpush.msra.mxu0 0.0
  %3937 = vmatpush.msra.mxu0 0.0
  %3938 = vmatpush.msra.mxu0 %v708
  %3939 = vmatpush.msra.mxu0 %v687
  %3940 = vmatpush.msra.mxu0 %v683
  %3941 = vmatmul.f32.gmra.mxu0 %v3903
  %v3942 = vpop.f32.mrf.mxu0
  %v3943 = vadd.f32 0.0, %v3942
  %3944 = vdwg.mxu0
  %3945 = vmatpush.msra.mxu0 0.0
  %3946 = vmatpush.msra.mxu0 0.0
  %3947 = vmatpush.msra.mxu0 0.0
  %3948 = vmatpush.msra.mxu0 0.0
  %3949 = vmatpush.msra.mxu0 0.0
  %3950 = vmatpush.msra.mxu0 0.0
  %3951 = vmatpush.msra.mxu0 0.0
  %3952 = vmatpush.msra.mxu0 0.0
  %3953 = vmatpush.msra.mxu0 0.0
  %3954 = vmatpush.msra.mxu0 0.0
  %3955 = vmatpush.msra.mxu0 0.0
  %3956 = vmatpush.msra.mxu0 0.0
  %3957 = vmatpush.msra.mxu0 0.0
  %3958 = vmatpush.msra.mxu0 %v711
  %3959 = vmatpush.msra.mxu0 %v688
  %3960 = vmatpush.msra.mxu0 %v684
  %3961 = vmatmul.f32.gmra.mxu0 %v3903
  %v3962 = vpop.f32.mrf.mxu0
  %v3963 = vadd.f32 0.0, %v3962
  %3964 = vdwg.mxu0
  %3965 = vmatpush.msra.mxu0 0.0
  %3966 = vmatpush.msra.mxu0 0.0
  %3967 = vmatpush.msra.mxu0 0.0
  %3968 = vmatpush.msra.mxu0 0.0
  %3969 = vmatpush.msra.mxu0 0.0
  %3970 = vmatpush.msra.mxu0 0.0
  %3971 = vmatpush.msra.mxu0 0.0
  %3972 = vmatpush.msra.mxu0 0.0
  %3973 = vmatpush.msra.mxu0 0.0
  %3974 = vmatpush.msra.mxu0 0.0
  %3975 = vmatpush.msra.mxu0 0.0
  %3976 = vmatpush.msra.mxu0 0.0
  %3977 = vmatpush.msra.mxu0 0.0
  %3978 = vmatpush.msra.mxu0 %v714
  %3979 = vmatpush.msra.mxu0 %v689
  %3980 = vmatpush.msra.mxu0 %v685
  %3981 = vmatmul.f32.gmra.mxu0 %v3903
  %v3982 = vpop.f32.mrf.mxu0
  %v3983 = vadd.f32 0.0, %v3982
  %3984 = vdwg.mxu0
  %v3989 = vrot.slane %v3923, 5
  %v3990 = vrot.slane %v3943, 5
  %v3991 = vrot.slane %v3963, 5
  %v3992 = vrot.slane %v3983, 5
  %v3997 = vadd.f32 %v3894, %v3989
  %v3998 = vadd.f32 %v3895, %v3990
  %v3999 = vadd.f32 %v3896, %v3991
  %v4000 = vadd.f32 %v3897, %v3992
  %v4001 = vxor.u32 %v3997, 2147483648
  %v4002 = vmul.f32 %v4001, 1.442695
  %v4003 = vpow.pop %v4002
  %v4004 = vadd.f32 %v4003, 1.0
  %v4005 = vrcp.pop %v4004
  %v4006 = vmul.f32 %v4004, %v4005
  %v4007 = vsub.f32 1.0, %v4006
  %v4008 = vmul.f32 %v4005, %v4007
  %v4009 = vadd.f32 %v4005, %v4008
  %vm4010 = vweird.f32 %v4004
  %vm4011 = vweird.f32 %v4005
  %vm4012 = vmor %vm4010, %vm4011
  %v4013 = vsel %vm4012, %v4005, %v4009
  %v4014 = vand.u32 2147483647, %v4004
  %vm4015 = vcmp.eq.f32.partialorder %v4014, 8.507059e+37
  %v4016 = vand.u32 %v4004, 2147483648
  %v4017 = vor.u32 1.1754944e-38, %v4016
  %v4018 = vsel %vm4015, %v4017, %v4013
  %v4019 = vmul.f32 1.0, %v4018
  %v4020 = vxor.u32 %v3998, 2147483648
  %v4021 = vmul.f32 %v4020, 1.442695
  %v4022 = vpow.pop %v4021
  %v4023 = vadd.f32 %v4022, 1.0
  %v4024 = vrcp.pop %v4023
  %v4025 = vmul.f32 %v4023, %v4024
  %v4026 = vsub.f32 1.0, %v4025
  %v4027 = vmul.f32 %v4024, %v4026
  %v4028 = vadd.f32 %v4024, %v4027
  %vm4029 = vweird.f32 %v4023
  %vm4030 = vweird.f32 %v4024
  %vm4031 = vmor %vm4029, %vm4030
  %v4032 = vsel %vm4031, %v4024, %v4028
  %v4033 = vand.u32 2147483647, %v4023
  %vm4034 = vcmp.eq.f32.partialorder %v4033, 8.507059e+37
  %v4035 = vand.u32 %v4023, 2147483648
  %v4036 = vor.u32 1.1754944e-38, %v4035
  %v4037 = vsel %vm4034, %v4036, %v4032
  %v4038 = vmul.f32 1.0, %v4037
  %v4039 = vtanh.pop %v3999
  %v4040 = vxor.u32 %v4000, 2147483648
  %v4041 = vmul.f32 %v4040, 1.442695
  %v4042 = vpow.pop %v4041
  %v4043 = vadd.f32 %v4042, 1.0
  %v4044 = vrcp.pop %v4043
  %v4045 = vmul.f32 %v4043, %v4044
  %v4046 = vsub.f32 1.0, %v4045
  %v4047 = vmul.f32 %v4044, %v4046
  %v4048 = vadd.f32 %v4044, %v4047
  %vm4049 = vweird.f32 %v4043
  %vm4050 = vweird.f32 %v4044
  %vm4051 = vmor %vm4049, %vm4050
  %v4052 = vsel %vm4051, %v4044, %v4048
  %v4053 = vand.u32 2147483647, %v4043
  %vm4054 = vcmp.eq.f32.partialorder %v4053, 8.507059e+37
  %v4055 = vand.u32 %v4043, 2147483648
  %v4056 = vor.u32 1.1754944e-38, %v4055
  %v4057 = vsel %vm4054, %v4056, %v4052
  %v4058 = vmul.f32 1.0, %v4057
  %v4061 = vrot.slane %v3885, 3
  %v4062 = vrot.slane %v3886, 3
  %v4063 = vsel %vm1278, %v4061, %v4062
  %v4065 = vmul.f32 %v4038, %v4063
  %v4066 = vmul.f32 %v4019, %v4039
  %v4067 = vadd.f32 %v4065, %v4066
  %v4068 = vtanh.pop %v4067
  %v4069 = vmul.f32 %v4058, %v4068
  %s4070 = scalar_lea.vmem %s6, 120
  %4071 = vst.msk [vmem:[%s4070 - $0x3] sm:$0xf8] %vm2394, %v4069
  %v4072 = vld [vmem:[#allocation2 + $0x140] sm:$0x1f]
  %v4073 = vld [vmem:[#allocation2 + $0x148] sm:$0x1f]
  %v4074 = vld [vmem:[#allocation2 + $0x150] sm:$0x1f]
  %v4075 = vld [vmem:[#allocation2 + $0x158] sm:$0x1f]
  %v4077 = vrot.slane %v4069, 3
  %v4078 = vsel %vm700, %v4077, 0
  %4080 = vmatpush.msra.mxu0 0.0
  %4081 = vmatpush.msra.mxu0 0.0
  %4082 = vmatpush.msra.mxu0 0.0
  %4083 = vmatpush.msra.mxu0 0.0
  %4084 = vmatpush.msra.mxu0 0.0
  %4085 = vmatpush.msra.mxu0 0.0
  %4086 = vmatpush.msra.mxu0 0.0
  %4087 = vmatpush.msra.mxu0 0.0
  %4088 = vmatpush.msra.mxu0 0.0
  %4089 = vmatpush.msra.mxu0 0.0
  %4090 = vmatpush.msra.mxu0 0.0
  %4091 = vmatpush.msra.mxu0 0.0
  %4092 = vmatpush.msra.mxu0 0.0
  %4093 = vmatpush.msra.mxu0 %v705
  %4094 = vmatpush.msra.mxu0 %v686
  %4095 = vmatpush.msra.mxu0 %v682
  %4096 = vmatmul.f32.gmra.mxu0 %v4078
  %v4097 = vpop.f32.mrf.mxu0
  %v4098 = vadd.f32 0.0, %v4097
  %4099 = vdwg.mxu0
  %4100 = vmatpush.msra.mxu0 0.0
  %4101 = vmatpush.msra.mxu0 0.0
  %4102 = vmatpush.msra.mxu0 0.0
  %4103 = vmatpush.msra.mxu0 0.0
  %4104 = vmatpush.msra.mxu0 0.0
  %4105 = vmatpush.msra.mxu0 0.0
  %4106 = vmatpush.msra.mxu0 0.0
  %4107 = vmatpush.msra.mxu0 0.0
  %4108 = vmatpush.msra.mxu0 0.0
  %4109 = vmatpush.msra.mxu0 0.0
  %4110 = vmatpush.msra.mxu0 0.0
  %4111 = vmatpush.msra.mxu0 0.0
  %4112 = vmatpush.msra.mxu0 0.0
  %4113 = vmatpush.msra.mxu0 %v708
  %4114 = vmatpush.msra.mxu0 %v687
  %4115 = vmatpush.msra.mxu0 %v683
  %4116 = vmatmul.f32.gmra.mxu0 %v4078
  %v4117 = vpop.f32.mrf.mxu0
  %v4118 = vadd.f32 0.0, %v4117
  %4119 = vdwg.mxu0
  %4120 = vmatpush.msra.mxu0 0.0
  %4121 = vmatpush.msra.mxu0 0.0
  %4122 = vmatpush.msra.mxu0 0.0
  %4123 = vmatpush.msra.mxu0 0.0
  %4124 = vmatpush.msra.mxu0 0.0
  %4125 = vmatpush.msra.mxu0 0.0
  %4126 = vmatpush.msra.mxu0 0.0
  %4127 = vmatpush.msra.mxu0 0.0
  %4128 = vmatpush.msra.mxu0 0.0
  %4129 = vmatpush.msra.mxu0 0.0
  %4130 = vmatpush.msra.mxu0 0.0
  %4131 = vmatpush.msra.mxu0 0.0
  %4132 = vmatpush.msra.mxu0 0.0
  %4133 = vmatpush.msra.mxu0 %v711
  %4134 = vmatpush.msra.mxu0 %v688
  %4135 = vmatpush.msra.mxu0 %v684
  %4136 = vmatmul.f32.gmra.mxu0 %v4078
  %v4137 = vpop.f32.mrf.mxu0
  %v4138 = vadd.f32 0.0, %v4137
  %4139 = vdwg.mxu0
  %4140 = vmatpush.msra.mxu0 0.0
  %4141 = vmatpush.msra.mxu0 0.0
  %4142 = vmatpush.msra.mxu0 0.0
  %4143 = vmatpush.msra.mxu0 0.0
  %4144 = vmatpush.msra.mxu0 0.0
  %4145 = vmatpush.msra.mxu0 0.0
  %4146 = vmatpush.msra.mxu0 0.0
  %4147 = vmatpush.msra.mxu0 0.0
  %4148 = vmatpush.msra.mxu0 0.0
  %4149 = vmatpush.msra.mxu0 0.0
  %4150 = vmatpush.msra.mxu0 0.0
  %4151 = vmatpush.msra.mxu0 0.0
  %4152 = vmatpush.msra.mxu0 0.0
  %4153 = vmatpush.msra.mxu0 %v714
  %4154 = vmatpush.msra.mxu0 %v689
  %4155 = vmatpush.msra.mxu0 %v685
  %4156 = vmatmul.f32.gmra.mxu0 %v4078
  %v4157 = vpop.f32.mrf.mxu0
  %v4158 = vadd.f32 0.0, %v4157
  %4159 = vdwg.mxu0
  %v4160 = vadd.f32 %v4072, %v4098
  %v4161 = vadd.f32 %v4073, %v4118
  %v4162 = vadd.f32 %v4074, %v4138
  %v4163 = vadd.f32 %v4075, %v4158
  %v4164 = vxor.u32 %v4160, 2147483648
  %v4165 = vmul.f32 %v4164, 1.442695
  %v4166 = vpow.pop %v4165
  %v4167 = vadd.f32 %v4166, 1.0
  %v4168 = vrcp.pop %v4167
  %v4169 = vmul.f32 %v4167, %v4168
  %v4170 = vsub.f32 1.0, %v4169
  %v4171 = vmul.f32 %v4168, %v4170
  %v4172 = vadd.f32 %v4168, %v4171
  %vm4173 = vweird.f32 %v4167
  %vm4174 = vweird.f32 %v4168
  %vm4175 = vmor %vm4173, %vm4174
  %v4176 = vsel %vm4175, %v4168, %v4172
  %v4177 = vand.u32 2147483647, %v4167
  %vm4178 = vcmp.eq.f32.partialorder %v4177, 8.507059e+37
  %v4179 = vand.u32 %v4167, 2147483648
  %v4180 = vor.u32 1.1754944e-38, %v4179
  %v4181 = vsel %vm4178, %v4180, %v4176
  %v4182 = vmul.f32 1.0, %v4181
  %v4183 = vxor.u32 %v4161, 2147483648
  %v4184 = vmul.f32 %v4183, 1.442695
  %v4185 = vpow.pop %v4184
  %v4186 = vadd.f32 %v4185, 1.0
  %v4187 = vrcp.pop %v4186
  %v4188 = vmul.f32 %v4186, %v4187
  %v4189 = vsub.f32 1.0, %v4188
  %v4190 = vmul.f32 %v4187, %v4189
  %v4191 = vadd.f32 %v4187, %v4190
  %vm4192 = vweird.f32 %v4186
  %vm4193 = vweird.f32 %v4187
  %vm4194 = vmor %vm4192, %vm4193
  %v4195 = vsel %vm4194, %v4187, %v4191
  %v4196 = vand.u32 2147483647, %v4186
  %vm4197 = vcmp.eq.f32.partialorder %v4196, 8.507059e+37
  %v4198 = vand.u32 %v4186, 2147483648
  %v4199 = vor.u32 1.1754944e-38, %v4198
  %v4200 = vsel %vm4197, %v4199, %v4195
  %v4201 = vmul.f32 1.0, %v4200
  %v4202 = vtanh.pop %v4162
  %v4203 = vxor.u32 %v4163, 2147483648
  %v4204 = vmul.f32 %v4203, 1.442695
  %v4205 = vpow.pop %v4204
  %v4206 = vadd.f32 %v4205, 1.0
  %v4207 = vrcp.pop %v4206
  %v4208 = vmul.f32 %v4206, %v4207
  %v4209 = vsub.f32 1.0, %v4208
  %v4210 = vmul.f32 %v4207, %v4209
  %v4211 = vadd.f32 %v4207, %v4210
  %vm4212 = vweird.f32 %v4206
  %vm4213 = vweird.f32 %v4207
  %vm4214 = vmor %vm4212, %vm4213
  %v4215 = vsel %vm4214, %v4207, %v4211
  %v4216 = vand.u32 2147483647, %v4206
  %vm4217 = vcmp.eq.f32.partialorder %v4216, 8.507059e+37
  %v4218 = vand.u32 %v4206, 2147483648
  %v4219 = vor.u32 1.1754944e-38, %v4218
  %v4220 = vsel %vm4217, %v4219, %v4215
  %v4221 = vmul.f32 1.0, %v4220
  %v4223 = vrot.slane %v4067, 3
  %v4225 = vmul.f32 %v4201, %v4223
  %v4226 = vmul.f32 %v4182, %v4202
  %v4227 = vadd.f32 %v4225, %v4226
  %v4228 = vtanh.pop %v4227
  %v4229 = vmul.f32 %v4221, %v4228
  %s4230 = scalar_lea.vmem %s6, 128
  %4231 = vst.msk [vmem:[%s4230] sm:$0x1f] %vm863, %v4229
  %v4232 = vld [vmem:[#allocation2 + $0x140] sm:$0xe0]
  %v4233 = vld [vmem:[#allocation2 + $0x148] sm:$0xe0]
  %v4234 = vld [vmem:[#allocation2 + $0x150] sm:$0xe0]
  %v4235 = vld [vmem:[#allocation2 + $0x158] sm:$0xe0]
  %v4236 = vld [vmem:[#allocation2 + $0x160] sm:$0x3]
  %v4237 = vld [vmem:[#allocation2 + $0x168] sm:$0x3]
  %v4238 = vld [vmem:[#allocation2 + $0x170] sm:$0x3]
  %v4239 = vld [vmem:[#allocation2 + $0x178] sm:$0x3]
  %v4241 = vsel %vm700, %v4229, 0
  %4243 = vmatpush.msra.mxu0 0.0
  %4244 = vmatpush.msra.mxu0 0.0
  %4245 = vmatpush.msra.mxu0 0.0
  %4246 = vmatpush.msra.mxu0 0.0
  %4247 = vmatpush.msra.mxu0 0.0
  %4248 = vmatpush.msra.mxu0 0.0
  %4249 = vmatpush.msra.mxu0 0.0
  %4250 = vmatpush.msra.mxu0 0.0
  %4251 = vmatpush.msra.mxu0 0.0
  %4252 = vmatpush.msra.mxu0 0.0
  %4253 = vmatpush.msra.mxu0 0.0
  %4254 = vmatpush.msra.mxu0 0.0
  %4255 = vmatpush.msra.mxu0 0.0
  %4256 = vmatpush.msra.mxu0 %v705
  %4257 = vmatpush.msra.mxu0 %v686
  %4258 = vmatpush.msra.mxu0 %v682
  %4259 = vmatmul.f32.gmra.mxu0 %v4241
  %v4260 = vpop.f32.mrf.mxu0
  %v4261 = vadd.f32 0.0, %v4260
  %4262 = vdwg.mxu0
  %4263 = vmatpush.msra.mxu0 0.0
  %4264 = vmatpush.msra.mxu0 0.0
  %4265 = vmatpush.msra.mxu0 0.0
  %4266 = vmatpush.msra.mxu0 0.0
  %4267 = vmatpush.msra.mxu0 0.0
  %4268 = vmatpush.msra.mxu0 0.0
  %4269 = vmatpush.msra.mxu0 0.0
  %4270 = vmatpush.msra.mxu0 0.0
  %4271 = vmatpush.msra.mxu0 0.0
  %4272 = vmatpush.msra.mxu0 0.0
  %4273 = vmatpush.msra.mxu0 0.0
  %4274 = vmatpush.msra.mxu0 0.0
  %4275 = vmatpush.msra.mxu0 0.0
  %4276 = vmatpush.msra.mxu0 %v708
  %4277 = vmatpush.msra.mxu0 %v687
  %4278 = vmatpush.msra.mxu0 %v683
  %4279 = vmatmul.f32.gmra.mxu0 %v4241
  %v4280 = vpop.f32.mrf.mxu0
  %v4281 = vadd.f32 0.0, %v4280
  %4282 = vdwg.mxu0
  %4283 = vmatpush.msra.mxu0 0.0
  %4284 = vmatpush.msra.mxu0 0.0
  %4285 = vmatpush.msra.mxu0 0.0
  %4286 = vmatpush.msra.mxu0 0.0
  %4287 = vmatpush.msra.mxu0 0.0
  %4288 = vmatpush.msra.mxu0 0.0
  %4289 = vmatpush.msra.mxu0 0.0
  %4290 = vmatpush.msra.mxu0 0.0
  %4291 = vmatpush.msra.mxu0 0.0
  %4292 = vmatpush.msra.mxu0 0.0
  %4293 = vmatpush.msra.mxu0 0.0
  %4294 = vmatpush.msra.mxu0 0.0
  %4295 = vmatpush.msra.mxu0 0.0
  %4296 = vmatpush.msra.mxu0 %v711
  %4297 = vmatpush.msra.mxu0 %v688
  %4298 = vmatpush.msra.mxu0 %v684
  %4299 = vmatmul.f32.gmra.mxu0 %v4241
  %v4300 = vpop.f32.mrf.mxu0
  %v4301 = vadd.f32 0.0, %v4300
  %4302 = vdwg.mxu0
  %4303 = vmatpush.msra.mxu0 0.0
  %4304 = vmatpush.msra.mxu0 0.0
  %4305 = vmatpush.msra.mxu0 0.0
  %4306 = vmatpush.msra.mxu0 0.0
  %4307 = vmatpush.msra.mxu0 0.0
  %4308 = vmatpush.msra.mxu0 0.0
  %4309 = vmatpush.msra.mxu0 0.0
  %4310 = vmatpush.msra.mxu0 0.0
  %4311 = vmatpush.msra.mxu0 0.0
  %4312 = vmatpush.msra.mxu0 0.0
  %4313 = vmatpush.msra.mxu0 0.0
  %4314 = vmatpush.msra.mxu0 0.0
  %4315 = vmatpush.msra.mxu0 0.0
  %4316 = vmatpush.msra.mxu0 %v714
  %4317 = vmatpush.msra.mxu0 %v689
  %4318 = vmatpush.msra.mxu0 %v685
  %4319 = vmatmul.f32.gmra.mxu0 %v4241
  %v4320 = vpop.f32.mrf.mxu0
  %v4321 = vadd.f32 0.0, %v4320
  %4322 = vdwg.mxu0
  %v4327 = vrot.slane %v4261, 3
  %v4328 = vrot.slane %v4281, 3
  %v4329 = vrot.slane %v4301, 3
  %v4330 = vrot.slane %v4321, 3
  %v4335 = vadd.f32 %v4232, %v4327
  %v4336 = vadd.f32 %v4233, %v4328
  %v4337 = vadd.f32 %v4234, %v4329
  %v4338 = vadd.f32 %v4235, %v4330
  %v4339 = vadd.f32 %v4236, %v4327
  %v4340 = vadd.f32 %v4237, %v4328
  %v4341 = vadd.f32 %v4238, %v4329
  %v4342 = vadd.f32 %v4239, %v4330
  %v4343 = vxor.u32 %v4335, 2147483648
  %v4344 = vxor.u32 %v4339, 2147483648
  %v4345 = vmul.f32 %v4343, 1.442695
  %v4346 = vpow.pop %v4345
  %v4347 = vmul.f32 %v4344, 1.442695
  %v4348 = vpow.pop %v4347
  %v4349 = vadd.f32 %v4346, 1.0
  %v4350 = vadd.f32 %v4348, 1.0
  %v4351 = vrcp.pop %v4349
  %v4352 = vmul.f32 %v4349, %v4351
  %v4353 = vsub.f32 1.0, %v4352
  %v4354 = vmul.f32 %v4351, %v4353
  %v4355 = vadd.f32 %v4351, %v4354
  %vm4356 = vweird.f32 %v4349
  %vm4357 = vweird.f32 %v4351
  %vm4358 = vmor %vm4356, %vm4357
  %v4359 = vsel %vm4358, %v4351, %v4355
  %v4360 = vand.u32 2147483647, %v4349
  %vm4361 = vcmp.eq.f32.partialorder %v4360, 8.507059e+37
  %v4362 = vand.u32 %v4349, 2147483648
  %v4363 = vor.u32 1.1754944e-38, %v4362
  %v4364 = vsel %vm4361, %v4363, %v4359
  %v4365 = vmul.f32 1.0, %v4364
  %v4366 = vrcp.pop %v4350
  %v4367 = vmul.f32 %v4350, %v4366
  %v4368 = vsub.f32 1.0, %v4367
  %v4369 = vmul.f32 %v4366, %v4368
  %v4370 = vadd.f32 %v4366, %v4369
  %vm4371 = vweird.f32 %v4350
  %vm4372 = vweird.f32 %v4366
  %vm4373 = vmor %vm4371, %vm4372
  %v4374 = vsel %vm4373, %v4366, %v4370
  %v4375 = vand.u32 2147483647, %v4350
  %vm4376 = vcmp.eq.f32.partialorder %v4375, 8.507059e+37
  %v4377 = vand.u32 %v4350, 2147483648
  %v4378 = vor.u32 1.1754944e-38, %v4377
  %v4379 = vsel %vm4376, %v4378, %v4374
  %v4380 = vmul.f32 1.0, %v4379
  %v4381 = vxor.u32 %v4336, 2147483648
  %v4382 = vxor.u32 %v4340, 2147483648
  %v4383 = vmul.f32 %v4381, 1.442695
  %v4384 = vpow.pop %v4383
  %v4385 = vmul.f32 %v4382, 1.442695
  %v4386 = vpow.pop %v4385
  %v4387 = vadd.f32 %v4384, 1.0
  %v4388 = vadd.f32 %v4386, 1.0
  %v4389 = vrcp.pop %v4387
  %v4390 = vmul.f32 %v4387, %v4389
  %v4391 = vsub.f32 1.0, %v4390
  %v4392 = vmul.f32 %v4389, %v4391
  %v4393 = vadd.f32 %v4389, %v4392
  %vm4394 = vweird.f32 %v4387
  %vm4395 = vweird.f32 %v4389
  %vm4396 = vmor %vm4394, %vm4395
  %v4397 = vsel %vm4396, %v4389, %v4393
  %v4398 = vand.u32 2147483647, %v4387
  %vm4399 = vcmp.eq.f32.partialorder %v4398, 8.507059e+37
  %v4400 = vand.u32 %v4387, 2147483648
  %v4401 = vor.u32 1.1754944e-38, %v4400
  %v4402 = vsel %vm4399, %v4401, %v4397
  %v4403 = vmul.f32 1.0, %v4402
  %v4404 = vrcp.pop %v4388
  %v4405 = vmul.f32 %v4388, %v4404
  %v4406 = vsub.f32 1.0, %v4405
  %v4407 = vmul.f32 %v4404, %v4406
  %v4408 = vadd.f32 %v4404, %v4407
  %vm4409 = vweird.f32 %v4388
  %vm4410 = vweird.f32 %v4404
  %vm4411 = vmor %vm4409, %vm4410
  %v4412 = vsel %vm4411, %v4404, %v4408
  %v4413 = vand.u32 2147483647, %v4388
  %vm4414 = vcmp.eq.f32.partialorder %v4413, 8.507059e+37
  %v4415 = vand.u32 %v4388, 2147483648
  %v4416 = vor.u32 1.1754944e-38, %v4415
  %v4417 = vsel %vm4414, %v4416, %v4412
  %v4418 = vmul.f32 1.0, %v4417
  %v4419 = vtanh.pop %v4337
  %v4420 = vtanh.pop %v4341
  %v4421 = vxor.u32 %v4338, 2147483648
  %v4422 = vxor.u32 %v4342, 2147483648
  %v4423 = vmul.f32 %v4421, 1.442695
  %v4424 = vpow.pop %v4423
  %v4425 = vmul.f32 %v4422, 1.442695
  %v4426 = vpow.pop %v4425
  %v4427 = vadd.f32 %v4424, 1.0
  %v4428 = vadd.f32 %v4426, 1.0
  %v4429 = vrcp.pop %v4427
  %v4430 = vmul.f32 %v4427, %v4429
  %v4431 = vsub.f32 1.0, %v4430
  %v4432 = vmul.f32 %v4429, %v4431
  %v4433 = vadd.f32 %v4429, %v4432
  %vm4434 = vweird.f32 %v4427
  %vm4435 = vweird.f32 %v4429
  %vm4436 = vmor %vm4434, %vm4435
  %v4437 = vsel %vm4436, %v4429, %v4433
  %v4438 = vand.u32 2147483647, %v4427
  %vm4439 = vcmp.eq.f32.partialorder %v4438, 8.507059e+37
  %v4440 = vand.u32 %v4427, 2147483648
  %v4441 = vor.u32 1.1754944e-38, %v4440
  %v4442 = vsel %vm4439, %v4441, %v4437
  %v4443 = vmul.f32 1.0, %v4442
  %v4444 = vrcp.pop %v4428
  %v4445 = vmul.f32 %v4428, %v4444
  %v4446 = vsub.f32 1.0, %v4445
  %v4447 = vmul.f32 %v4444, %v4446
  %v4448 = vadd.f32 %v4444, %v4447
  %vm4449 = vweird.f32 %v4428
  %vm4450 = vweird.f32 %v4444
  %vm4451 = vmor %vm4449, %vm4450
  %v4452 = vsel %vm4451, %v4444, %v4448
  %v4453 = vand.u32 2147483647, %v4428
  %vm4454 = vcmp.eq.f32.partialorder %v4453, 8.507059e+37
  %v4455 = vand.u32 %v4428, 2147483648
  %v4456 = vor.u32 1.1754944e-38, %v4455
  %v4457 = vsel %vm4454, %v4456, %v4452
  %v4458 = vmul.f32 1.0, %v4457
  %v4460 = vrot.slane %v4227, 3
  %v4462 = vmul.f32 %v4403, %v4460
  %v4463 = vmul.f32 %v4418, %v4460
  %v4464 = vmul.f32 %v4365, %v4419
  %v4465 = vmul.f32 %v4380, %v4420
  %v4466 = vadd.f32 %v4462, %v4464
  %v4467 = vadd.f32 %v4463, %v4465
  %v4468 = vtanh.pop %v4466
  %v4469 = vtanh.pop %v4467
  %v4470 = vmul.f32 %v4443, %v4468
  %v4471 = vmul.f32 %v4458, %v4469
  %s4472 = scalar_lea.vmem %s6, 136
  %4473 = vst.msk [vmem:[%s4472 - $0x5] sm:$0xe0] %vm1106, %v4470
  %4474 = vst.msk [vmem:[%s4472 + $0x3] sm:$0x3] %vm1108, %v4471
  %4475 = vst.msk [vmem:[%s7 - $0x5] sm:$0xe0] %vm1106, %v4470
  %4476 = vst.msk [vmem:[%s7 + $0x3] sm:$0x3] %vm1108, %v4471
  %4477 = vst.msk [vmem:[%s8 - $0x5] sm:$0xe0] %vm1106, %v4466
  %4478 = vst.msk [vmem:[%s8 + $0x3] sm:$0x3] %vm1108, %v4467
  // Predicated region
  $region26: #{run.1} parent=0 // pred_check
    _
  $region27: #{run.1} parent=0 // pred_check_branch
    %4480 = sbr.rel (0) target = $region29
  $region28: #{run.1} parent=0 // pred_region
    _
  $region29: #{run.1} parent=0 // pred_fallthru
    _
  // Predicated region
  $region30: #{run.1} parent=0 // pred_check
    _
  $region31: #{run.1} parent=0 // pred_check_branch
    %4482 = sbr.rel (0) target = $region33
  $region32: #{run.1} parent=0 // pred_region
    _
  $region33: #{run.1} parent=0 // pred_fallthru
    _
  // Predicated region
  $region34: #{run.1} parent=0 // pred_check
    _
  $region35: #{run.1} parent=0 // pred_check_branch
    %4484 = sbr.rel (0) target = $region37
  $region36: #{run.1} parent=0 // pred_region
    _
  $region37: #{run.1} parent=0 // pred_fallthru
    _
  // Predicated region
  $region38: #{run.1} parent=0 // pred_check
    _
  $region39: #{run.1} parent=0 // pred_check_branch
    %4486 = sbr.rel (0) target = $region41
  $region40: #{run.1} parent=0 // pred_region
    _
  $region41: #{run.1} parent=0 // pred_fallthru
    _
  // Predicated region
  $region42: #{run.1} parent=0 // pred_check
    _
  $region43: #{run.1} parent=0 // pred_check_branch
    %4488 = sbr.rel (0) target = $region45
  $region44: #{run.1} parent=0 // pred_region
    _
  $region45: #{run.1} parent=0 // pred_fallthru
    _
  // Predicated region
  $region46: #{run.1} parent=0 // pred_check
    _
  $region47: #{run.1} parent=0 // pred_check_branch
    %4490 = sbr.rel (0) target = $region49
  $region48: #{run.1} parent=0 // pred_region
    _
  $region49: #{run.1} parent=0 // pred_fallthru
    _

</llo_original>
